<compile_context>
chip_gen: v6e
topology: v6e:2x2x1
jax: 0.10.0
libtpu: 0.0.40
codegen_flags: <defaults>
</compile_context>

<pallas_src>
import jax
import jax.numpy as jnp
import numpy as np
from jax.experimental import pallas as pl
from jax.experimental.pallas import tpu as pltpu


def _round_up(x, m):
    return ((x + m - 1) // m) * m


def _pick_tile(total, cap):
    """Largest multiple of 128 dividing `total` (itself a multiple of 128), <= cap."""
    t = max(128, min(total, (cap // 128) * 128))
    while total % t != 0:
        t -= 128
    return t


def _vmem_tier():
    """(tile-selection budget, vmem_limit cap) for this TPU generation."""
    try:
        cap = int(pltpu.get_tpu_info().vmem_capacity_bytes)
    except Exception:
        cap = 64 * 1024 * 1024                  # assume the tighter (v7x) budget
    if cap <= 96 * 1024 * 1024:                 # v7x: 64 MiB physical VMEM
        return 24 * 1024 * 1024, 48 * 1024 * 1024
    return 40 * 1024 * 1024, 56 * 1024 * 1024   # v5e / v6e: 128 MiB


# ------------------------------ DoReFa quantizers -----------------------------

def _dorefa_weight_quant(w, w_bits):
    if w_bits == 32:
        return w
    out = jnp.tanh(w)
    out = out / (2.0 * jnp.max(jnp.abs(out))) + 0.5
    n = 2.0 ** w_bits - 1.0
    out = jnp.round(out * n) / n
    return 2.0 * out - 1.0


def _dorefa_activation_quant(x, a_bits):
    if a_bits == 32:
        return x
    n = 2.0 ** a_bits - 1.0
    return jnp.round(jnp.clip(x, 0.0, 1.0) * n) / n


def _prepare_operands(x, weight, bias, gamma, beta, running_mean, running_var,
                      a_bits, w_bits, first_layer, eps):
    """Quantize to exact integer codes where possible; fold BN+bias+code scale."""
    x = x.astype(jnp.float32)
    weight = weight.astype(jnp.float32)
    OC = weight.shape[0]
    quant_act = (not first_layer) and a_bits != 32
    wq = _dorefa_weight_quant(weight, w_bits)
    use_codes = quant_act and a_bits <= 8 and (w_bits != 32 and w_bits <= 8)
    if use_codes:
        na = 2.0 ** a_bits - 1.0
        nw = 2.0 ** w_bits - 1.0
        # integer codes (|code| <= 255) are exactly representable in bf16
        x_in = jnp.round(jnp.clip(x, 0.0, 1.0) * na).astype(jnp.bfloat16)
        w_in = jnp.round(wq * nw).astype(jnp.bfloat16)
        code_scale = 1.0 / (na * nw)
        in_dtype = jnp.bfloat16
    else:
        x_in = _dorefa_activation_quant(x, a_bits) if quant_act else x
        w_in = wq
        code_scale = 1.0
        in_dtype = jnp.float32

    if bias is None:
        bias = jnp.zeros((OC,), jnp.float32)
    inv_std = 1.0 / jnp.sqrt(running_var.astype(jnp.float32) + eps)
    bn_scale = gamma.astype(jnp.float32) * inv_std
    shift = (beta.astype(jnp.float32)
             + (bias.astype(jnp.float32)
                - running_mean.astype(jnp.float32)) * bn_scale)
    scale = bn_scale * code_scale
    return x_in, w_in, scale, shift, in_dtype


# ------------------------- fused (no-im2col) main path ------------------------

def _make_fused_kernel(KH, KW, toh, OWp, C, tile_oc):
    def kernel(x_ref, w_ref, ss_ref, o_ref):
        # x_ref : (Hpp, Wpp, C)        padded activation codes for one image
        # w_ref : (KH*KW, C, tile_oc)  weight codes
        # ss_ref: (2, tile_oc)         row 0 = folded BN scale, row 1 = shift
        # o_ref : (toh, OWp, tile_oc)
        row0 = pl.program_id(1) * toh            # stride == 1 on this path
        acc = jnp.zeros((toh * OWp, tile_oc), jnp.float32)
        for kh in range(KH):
            for kw in range(KW):
                patch = x_ref[pl.ds(row0 + kh, toh), pl.ds(kw, OWp), :]
                patch = patch.reshape(toh * OWp, C)   # OWp % 8 == 0 -> layout-preserving
                acc = acc + jnp.dot(patch, w_ref[kh * KW + kw],
                                    preferred_element_type=jnp.float32)
        y = jnp.maximum(acc * ss_ref[0:1, :] + ss_ref[1:2, :], 0.0)
        o_ref[...] = y.reshape(toh, OWp, tile_oc).astype(o_ref.dtype)
    return kernel


def _forward_fused(x_in, w_in, scale, shift, in_dtype, *,
                   N, C, H, W, OC, KH, KW, padding, OH, OW, out_dtype):
    budget, vmem_cap = _vmem_tier()
    ibytes = jnp.dtype(in_dtype).itemsize
    sub = 8 if ibytes == 4 else 16

    OWp = _round_up(OW, 8)
    Wpp = max(W + 2 * padding, OWp + KW - 1)
    OC_pad = _round_up(OC, 128)

    # Grid-resident weights whenever they fit; otherwise split the OC axis.
    if 2 * KH * KW * _round_up(C, sub) * OC_pad * ibytes <= 8 * 1024 * 1024:
        tile_oc = OC_pad
    else:
        tile_oc = _pick_tile(OC_pad, 512)
    n_oc = OC_pad // tile_oc

    # OH tile: big enough to feed the MXU, small enough for VMEM, and leave
    # >= 4 grid tiles so v7x megacore has work on both TensorCores.
    toh = max(1, min(OH, 2048 // OWp))

    def n_tiles(t):
        return N * -(-OH // t) * n_oc

    while toh > 1 and n_tiles(toh) < 4:
        toh = max(1, (toh + 1) // 2)

    def vmem_need(t):
        n_oh_ = -(-OH // t)
        Hpp_ = max(H + 2 * padding, n_oh_ * t - 1 + KH)
        x_blk = Hpp_ * _round_up(Wpp, sub) * _round_up(C, 128) * ibytes
        w_blk = KH * KW * _round_up(C, sub) * tile_oc * ibytes
        o_blk = t * OWp * tile_oc * 4
        tmp = 3 * t * OWp * tile_oc * 4            # f32 accumulator + epilogue temps
        return 2 * (x_blk + w_blk + o_blk) + 2 * 8 * tile_oc * 4 + tmp, Hpp_, n_oh_

    need, Hpp, n_oh = vmem_need(toh)
    while need > budget and toh > 1:
        toh = max(1, toh // 2)
        need, Hpp, n_oh = vmem_need(toh)
    if need > budget:
        raise ValueError("fused conv tiles do not fit the VMEM budget")
    OHp = n_oh * toh

    # ---- glue: NHWC + spatial zero-pad of the already-quantized codes -------
    x_nhwc = jnp.transpose(x_in, (0, 2, 3, 1))                       # (N,H,W,C)
    x_pad = jnp.pad(
        x_nhwc,
        ((0, 0), (padding, Hpp - H - padding), (padding, Wpp - W - padding), (0, 0)))
    w_mat = jnp.transpose(w_in, (2, 3, 1, 0)).reshape(KH * KW, C, OC)
    w_mat = jnp.pad(w_mat, ((0, 0), (0, 0), (0, OC_pad - OC)))
    ss = jnp.stack([jnp.pad(scale, (0, OC_pad - OC)),
                    jnp.pad(shift, (0, OC_pad - OC))], axis=0).astype(jnp.float32)

    out = pl.pallas_call(
        _make_fused_kernel(KH, KW, toh, OWp, C, tile_oc),
        out_shape=jax.ShapeDtypeStruct((N, OHp, OWp, OC_pad), out_dtype),
        grid_spec=pltpu.PrefetchScalarGridSpec(
            num_scalar_prefetch=0,
            grid=(N, n_oh, n_oc),
            in_specs=[
                # whole padded image per block; constant along (i, j) -> fetched
                # once per image (no re-DMA while the block index is unchanged)
                pl.BlockSpec((None, Hpp, Wpp, C), lambda n, i, j: (n, 0, 0, 0)),
                pl.BlockSpec((KH * KW, C, tile_oc), lambda n, i, j: (0, 0, j)),
                pl.BlockSpec((2, tile_oc), lambda n, i, j: (0, j)),
            ],
            out_specs=pl.BlockSpec((None, toh, OWp, tile_oc),
                                   lambda n, i, j: (n, i, 0, j)),
        ),
        compiler_params=pltpu.CompilerParams(
            dimension_semantics=("parallel", "parallel", "parallel"),
            vmem_limit_bytes=int(min(vmem_cap, max(2 * need, 32 * 1024 * 1024))),
        ),
    )(x_pad, w_mat, ss)

    out = out[:, :OH, :OW, :OC]
    return jnp.transpose(out, (0, 3, 1, 2))          # module contract: NCHW


# ------------------------ materialized-im2col fallback ------------------------

def _im2col_kernel(p_ref, w_ref, ss_ref, o_ref):
    acc = jnp.dot(p_ref[...], w_ref[...], preferred_element_type=jnp.float32)
    y = acc * ss_ref[0:1, :] + ss_ref[1:2, :]
    o_ref[...] = jnp.maximum(y, 0.0).astype(o_ref.dtype)


def _forward_im2col(x_in, w_in, scale, shift, in_dtype, *,
                    N, C, H, W, OC, KH, KW, stride, padding, OH, OW,
                    out_dtype, max_tile_m=1024):
    M = N * OH * OW
    K = C * KH * KW
    budget, vmem_cap = _vmem_tier()
    ibytes = jnp.dtype(in_dtype).itemsize

    # im2col on the already-quantized (bf16-coded) input -> 2-byte intermediates
    xp = jnp.pad(x_in, ((0, 0), (0, 0), (padding, padding), (padding, padding)))
    cols = []
    for kh in range(KH):
        for kw in range(KW):
            cols.append(xp[:, :, kh:kh + stride * OH:stride,
                           kw:kw + stride * OW:stride])
    patches = jnp.stack(cols, axis=0)                       # (KH*KW,N,C,OH,OW)
    patches = jnp.transpose(patches, (1, 3, 4, 2, 0)).reshape(M, K)
    w_mat = w_in.reshape(OC, K).T                           # (K, OC), same K order

    OC_pad = _round_up(OC, 128)
    K_pad = _round_up(K, 128)
    tile_oc = _pick_tile(OC_pad, 512)

    patches = jnp.pad(patches, ((0, 0), (0, K_pad - K)))
    w_mat = jnp.pad(w_mat, ((0, K_pad - K), (0, OC_pad - OC)))
    ss = jnp.stack([jnp.pad(scale, (0, OC_pad - OC)),
                    jnp.pad(shift, (0, OC_pad - OC))], axis=0).astype(jnp.float32)

    tile_m = 128
    need = 0
    m_cap = max(_round_up(M, 128), 128)
    for tm in (max_tile_m, 512, 256, 128):
        tm = min(tm, m_cap)
        need = (2 * tm * K_pad * ibytes            # double-buffered patch tile
                + 2 * K_pad * tile_oc * ibytes     # double-buffered weight tile
                + 2 * 8 * tile_oc * 4              # scale/shift
                + 4 * tm * tile_oc * 4)            # out tile x2 + f32 epilogue temp
        tile_m = tm
        if need <= budget:
            break
    M_pad = _round_up(M, tile_m)
    patches = jnp.pad(patches, ((0, M_pad - M), (0, 0)))

    out = pl.pallas_call(
        _im2col_kernel,
        out_shape=jax.ShapeDtypeStruct((M_pad, OC_pad), out_dtype),
        grid_spec=pltpu.PrefetchScalarGridSpec(
            num_scalar_prefetch=0,
            grid=(M_pad // tile_m, OC_pad // tile_oc),
            in_specs=[
                pl.BlockSpec((tile_m, K_pad), lambda i, j: (i, 0)),
                pl.BlockSpec((K_pad, tile_oc), lambda i, j: (0, j)),
                pl.BlockSpec((2, tile_oc), lambda i, j: (0, j)),
            ],
            out_specs=pl.BlockSpec((tile_m, tile_oc), lambda i, j: (i, j)),
        ),
        compiler_params=pltpu.CompilerParams(
            dimension_semantics=("parallel", "parallel"),
            vmem_limit_bytes=int(min(vmem_cap, max(2 * need, 32 * 1024 * 1024))),
        ),
    )(patches, w_mat, ss)

    out = out[:M, :OC].reshape(N, OH, OW, OC)
    return jnp.transpose(out, (0, 3, 1, 2))


# ----------------------------------- wrapper ----------------------------------

def quant_conv_bn_relu(x, weight, bias, gamma, beta, running_mean, running_var,
                       *, stride=1, padding=0, dilation=1, groups=1,
                       a_bits=8, w_bits=8, first_layer=0, eps=1e-5,
                       out_dtype=jnp.float32):
    assert groups == 1 and dilation == 1, "groups=1, dilation=1 only"
    N, C, H, W = x.shape
    OC, C_w, KH, KW = weight.shape
    assert C == C_w
    OH = (H + 2 * padding - KH) // stride + 1
    OW = (W + 2 * padding - KW) // stride + 1
    assert OH >= 1 and OW >= 1

    x_in, w_in, scale, shift, in_dtype = _prepare_operands(
        x, weight, bias, gamma, beta, running_mean, running_var,
        a_bits, w_bits, first_layer, eps)

    dims = dict(N=N, C=C, H=H, W=W, OC=OC, KH=KH, KW=KW,
                padding=padding, OH=OH, OW=OW, out_dtype=out_dtype)
    if stride == 1:
        try:
            return _forward_fused(x_in, w_in, scale, shift, in_dtype, **dims)
        except Exception:
            pass   # fall back to the materialized-im2col path
    return _forward_im2col(x_in, w_in, scale, shift, in_dtype,
                           stride=stride, **dims)


# ---------------------------------- reference ---------------------------------

def _reference(x, weight, bias, gamma, beta, running_mean, running_var,
               *, stride, padding, a_bits, w_bits, eps=1e-5):
    xq = _dorefa_activation_quant(x, a_bits)
    wq = _dorefa_weight_quant(weight, w_bits)
    y = jax.lax.conv_general_dilated(
        xq, wq, window_strides=(stride, stride),
        padding=[(padding, padding), (padding, padding)],
        dimension_numbers=("NCHW", "OIHW", "NCHW"),
        precision=jax.lax.Precision.HIGHEST,
    ) + bias.reshape(1, -1, 1, 1)
    y = (y - running_mean.reshape(1, -1, 1, 1)) / jnp.sqrt(
        running_var.reshape(1, -1, 1, 1) + eps
    ) * gamma.reshape(1, -1, 1, 1) + beta.reshape(1, -1, 1, 1)
    return jnp.maximum(y, 0.0)


if __name__ == "__main__":
    key = jax.random.PRNGKey(0)
    k = jax.random.split(key, 8)

    N, C, H, W = 2, 4, 16, 16
    OC, KH, KW = 8, 3, 3
    stride, padding = 1, 1
    a_bits = w_bits = 8

    x = jax.random.normal(k[0], (N, C, H, W), jnp.float32)
    weight = 0.1 * jax.random.normal(k[1], (OC, C, KH, KW), jnp.float32)
    bias = 0.1 * jax.random.normal(k[2], (OC,), jnp.float32)
    gamma = 0.5 + jax.random.uniform(k[3], (OC,), jnp.float32)
    beta = 0.1 * jax.random.normal(k[4], (OC,), jnp.float32)
    running_mean = 0.1 * jax.random.normal(k[5], (OC,), jnp.float32)
    running_var = 0.5 + jax.random.uniform(k[6], (OC,), jnp.float32)

    out = quant_conv_bn_relu(
        x, weight, bias, gamma, beta, running_mean, running_var,
        stride=stride, padding=padding, a_bits=a_bits, w_bits=w_bits,
        first_layer=0,
    )
    out = jax.block_until_ready(out)

    ref = _reference(
        x, weight, bias, gamma, beta, running_mean, running_var,
        stride=stride, padding=padding, a_bits=a_bits, w_bits=w_bits,
    )
    np.testing.assert_allclose(np.asarray(out, dtype=np.float32),
                               np.asarray(ref), atol=2e-3, rtol=2e-3)
    print("KERNEL_OK")
</pallas_src>

<mosaic_0001>
module attributes {stable_mosaic.version = 11 : i64} {
  func.func @kernel(%arg0: i32, %arg1: i32, %arg2: i32, %arg3: memref<1x18x18x4xbf16, #tpu.memory_space<vmem>>, %arg4: memref<9x4x128xbf16, #tpu.memory_space<vmem>>, %arg5: memref<2x128xf32, #tpu.memory_space<vmem>>, %arg6: memref<1x8x16x128xf32, #tpu.memory_space<vmem>>) attributes {dimension_semantics = [#tpu.dimension_semantics<parallel>, #tpu.dimension_semantics<parallel>, #tpu.dimension_semantics<parallel>], iteration_bounds = array<i64: 2, 2, 1>, scalar_prefetch = 0 : i64, scratch_operands = 0 : i64, tpu.core_type = #tpu.core_type<tc>, window_params = [{transform_indices = @transform_0, window_bounds = array<i64: 1, 18, 18, 4>}, {transform_indices = @transform_1, window_bounds = array<i64: 9, 4, 128>}, {transform_indices = @transform_2, window_bounds = array<i64: 2, 128>}, {transform_indices = @transform_3, window_bounds = array<i64: 1, 8, 16, 128>}]} {
    %c8_i32 = arith.constant 8 : i32
    %0 = arith.muli %arg1, %c8_i32 : i32
    %cst = arith.constant 0.000000e+00 : f32
    %1 = vector.broadcast %cst : f32 to vector<128x128xf32>
    %c0_i32 = arith.constant 0 : i32
    %2 = arith.addi %0, %c0_i32 : i32
    %c0 = arith.constant 0 : index
    %3 = arith.index_cast %2 : i32 to index
    %c0_0 = arith.constant 0 : index
    %c0_1 = arith.constant 0 : index
    %4 = vector.load %arg3[%c0, %3, %c0_0, %c0_1] : memref<1x18x18x4xbf16, #tpu.memory_space<vmem>>, vector<1x8x16x4xbf16>
    %5 = vector.shape_cast %4 : vector<1x8x16x4xbf16> to vector<8x16x4xbf16>
    %6 = vector.shape_cast %5 : vector<8x16x4xbf16> to vector<128x4xbf16>
    %c0_2 = arith.constant 0 : index
    %c0_3 = arith.constant 0 : index
    %c0_4 = arith.constant 0 : index
    %7 = vector.load %arg4[%c0_2, %c0_3, %c0_4] : memref<9x4x128xbf16, #tpu.memory_space<vmem>>, vector<1x4x128xbf16>
    %8 = vector.shape_cast %7 : vector<1x4x128xbf16> to vector<4x128xbf16>
    %cst_5 = arith.constant dense<0.000000e+00> : vector<128x128xf32>
    %9 = tpu.matmul %6, %8, %cst_5 {dimension_numbers = #tpu.dot_dimension_numbers<[1], [0], [0], [1], [0, 0, 1, 1], [], []>} : vector<128x4xbf16>, vector<4x128xbf16>, vector<128x128xf32> -> vector<128x128xf32>
    %10 = arith.addf %1, %9 : vector<128x128xf32>
    %c0_i32_6 = arith.constant 0 : i32
    %11 = arith.addi %0, %c0_i32_6 : i32
    %c0_7 = arith.constant 0 : index
    %12 = arith.index_cast %11 : i32 to index
    %c1 = arith.constant 1 : index
    %c0_8 = arith.constant 0 : index
    %13 = vector.load %arg3[%c0_7, %12, %c1, %c0_8] : memref<1x18x18x4xbf16, #tpu.memory_space<vmem>>, vector<1x8x16x4xbf16>
    %14 = vector.shape_cast %13 : vector<1x8x16x4xbf16> to vector<8x16x4xbf16>
    %15 = vector.shape_cast %14 : vector<8x16x4xbf16> to vector<128x4xbf16>
    %c1_9 = arith.constant 1 : index
    %c0_10 = arith.constant 0 : index
    %c0_11 = arith.constant 0 : index
    %16 = vector.load %arg4[%c1_9, %c0_10, %c0_11] : memref<9x4x128xbf16, #tpu.memory_space<vmem>>, vector<1x4x128xbf16>
    %17 = vector.shape_cast %16 : vector<1x4x128xbf16> to vector<4x128xbf16>
    %cst_12 = arith.constant dense<0.000000e+00> : vector<128x128xf32>
    %18 = tpu.matmul %15, %17, %cst_12 {dimension_numbers = #tpu.dot_dimension_numbers<[1], [0], [0], [1], [0, 0, 1, 1], [], []>} : vector<128x4xbf16>, vector<4x128xbf16>, vector<128x128xf32> -> vector<128x128xf32>
    %19 = arith.addf %10, %18 : vector<128x128xf32>
    %c0_i32_13 = arith.constant 0 : i32
    %20 = arith.addi %0, %c0_i32_13 : i32
    %c0_14 = arith.constant 0 : index
    %21 = arith.index_cast %20 : i32 to index
    %c2 = arith.constant 2 : index
    %c0_15 = arith.constant 0 : index
    %22 = vector.load %arg3[%c0_14, %21, %c2, %c0_15] : memref<1x18x18x4xbf16, #tpu.memory_space<vmem>>, vector<1x8x16x4xbf16>
    %23 = vector.shape_cast %22 : vector<1x8x16x4xbf16> to vector<8x16x4xbf16>
    %24 = vector.shape_cast %23 : vector<8x16x4xbf16> to vector<128x4xbf16>
    %c2_16 = arith.constant 2 : index
    %c0_17 = arith.constant 0 : index
    %c0_18 = arith.constant 0 : index
    %25 = vector.load %arg4[%c2_16, %c0_17, %c0_18] : memref<9x4x128xbf16, #tpu.memory_space<vmem>>, vector<1x4x128xbf16>
    %26 = vector.shape_cast %25 : vector<1x4x128xbf16> to vector<4x128xbf16>
    %cst_19 = arith.constant dense<0.000000e+00> : vector<128x128xf32>
    %27 = tpu.matmul %24, %26, %cst_19 {dimension_numbers = #tpu.dot_dimension_numbers<[1], [0], [0], [1], [0, 0, 1, 1], [], []>} : vector<128x4xbf16>, vector<4x128xbf16>, vector<128x128xf32> -> vector<128x128xf32>
    %28 = arith.addf %19, %27 : vector<128x128xf32>
    %c1_i32 = arith.constant 1 : i32
    %29 = arith.addi %0, %c1_i32 : i32
    %c0_20 = arith.constant 0 : index
    %30 = arith.index_cast %29 : i32 to index
    %c0_21 = arith.constant 0 : index
    %c0_22 = arith.constant 0 : index
    %31 = vector.load %arg3[%c0_20, %30, %c0_21, %c0_22] : memref<1x18x18x4xbf16, #tpu.memory_space<vmem>>, vector<1x8x16x4xbf16>
    %32 = vector.shape_cast %31 : vector<1x8x16x4xbf16> to vector<8x16x4xbf16>
    %33 = vector.shape_cast %32 : vector<8x16x4xbf16> to vector<128x4xbf16>
    %c3 = arith.constant 3 : index
    %c0_23 = arith.constant 0 : index
    %c0_24 = arith.constant 0 : index
    %34 = vector.load %arg4[%c3, %c0_23, %c0_24] : memref<9x4x128xbf16, #tpu.memory_space<vmem>>, vector<1x4x128xbf16>
    %35 = vector.shape_cast %34 : vector<1x4x128xbf16> to vector<4x128xbf16>
    %cst_25 = arith.constant dense<0.000000e+00> : vector<128x128xf32>
    %36 = tpu.matmul %33, %35, %cst_25 {dimension_numbers = #tpu.dot_dimension_numbers<[1], [0], [0], [1], [0, 0, 1, 1], [], []>} : vector<128x4xbf16>, vector<4x128xbf16>, vector<128x128xf32> -> vector<128x128xf32>
    %37 = arith.addf %28, %36 : vector<128x128xf32>
    %c1_i32_26 = arith.constant 1 : i32
    %38 = arith.addi %0, %c1_i32_26 : i32
    %c0_27 = arith.constant 0 : index
    %39 = arith.index_cast %38 : i32 to index
    %c1_28 = arith.constant 1 : index
    %c0_29 = arith.constant 0 : index
    %40 = vector.load %arg3[%c0_27, %39, %c1_28, %c0_29] : memref<1x18x18x4xbf16, #tpu.memory_space<vmem>>, vector<1x8x16x4xbf16>
    %41 = vector.shape_cast %40 : vector<1x8x16x4xbf16> to vector<8x16x4xbf16>
    %42 = vector.shape_cast %41 : vector<8x16x4xbf16> to vector<128x4xbf16>
    %c4 = arith.constant 4 : index
    %c0_30 = arith.constant 0 : index
    %c0_31 = arith.constant 0 : index
    %43 = vector.load %arg4[%c4, %c0_30, %c0_31] : memref<9x4x128xbf16, #tpu.memory_space<vmem>>, vector<1x4x128xbf16>
    %44 = vector.shape_cast %43 : vector<1x4x128xbf16> to vector<4x128xbf16>
    %cst_32 = arith.constant dense<0.000000e+00> : vector<128x128xf32>
    %45 = tpu.matmul %42, %44, %cst_32 {dimension_numbers = #tpu.dot_dimension_numbers<[1], [0], [0], [1], [0, 0, 1, 1], [], []>} : vector<128x4xbf16>, vector<4x128xbf16>, vector<128x128xf32> -> vector<128x128xf32>
    %46 = arith.addf %37, %45 : vector<128x128xf32>
    %c1_i32_33 = arith.constant 1 : i32
    %47 = arith.addi %0, %c1_i32_33 : i32
    %c0_34 = arith.constant 0 : index
    %48 = arith.index_cast %47 : i32 to index
    %c2_35 = arith.constant 2 : index
    %c0_36 = arith.constant 0 : index
    %49 = vector.load %arg3[%c0_34, %48, %c2_35, %c0_36] : memref<1x18x18x4xbf16, #tpu.memory_space<vmem>>, vector<1x8x16x4xbf16>
    %50 = vector.shape_cast %49 : vector<1x8x16x4xbf16> to vector<8x16x4xbf16>
    %51 = vector.shape_cast %50 : vector<8x16x4xbf16> to vector<128x4xbf16>
    %c5 = arith.constant 5 : index
    %c0_37 = arith.constant 0 : index
    %c0_38 = arith.constant 0 : index
    %52 = vector.load %arg4[%c5, %c0_37, %c0_38] : memref<9x4x128xbf16, #tpu.memory_space<vmem>>, vector<1x4x128xbf16>
    %53 = vector.shape_cast %52 : vector<1x4x128xbf16> to vector<4x128xbf16>
    %cst_39 = arith.constant dense<0.000000e+00> : vector<128x128xf32>
    %54 = tpu.matmul %51, %53, %cst_39 {dimension_numbers = #tpu.dot_dimension_numbers<[1], [0], [0], [1], [0, 0, 1, 1], [], []>} : vector<128x4xbf16>, vector<4x128xbf16>, vector<128x128xf32> -> vector<128x128xf32>
    %55 = arith.addf %46, %54 : vector<128x128xf32>
    %c2_i32 = arith.constant 2 : i32
    %56 = arith.addi %0, %c2_i32 : i32
    %c0_40 = arith.constant 0 : index
    %57 = arith.index_cast %56 : i32 to index
    %c0_41 = arith.constant 0 : index
    %c0_42 = arith.constant 0 : index
    %58 = vector.load %arg3[%c0_40, %57, %c0_41, %c0_42] : memref<1x18x18x4xbf16, #tpu.memory_space<vmem>>, vector<1x8x16x4xbf16>
    %59 = vector.shape_cast %58 : vector<1x8x16x4xbf16> to vector<8x16x4xbf16>
    %60 = vector.shape_cast %59 : vector<8x16x4xbf16> to vector<128x4xbf16>
    %c6 = arith.constant 6 : index
    %c0_43 = arith.constant 0 : index
    %c0_44 = arith.constant 0 : index
    %61 = vector.load %arg4[%c6, %c0_43, %c0_44] : memref<9x4x128xbf16, #tpu.memory_space<vmem>>, vector<1x4x128xbf16>
    %62 = vector.shape_cast %61 : vector<1x4x128xbf16> to vector<4x128xbf16>
    %cst_45 = arith.constant dense<0.000000e+00> : vector<128x128xf32>
    %63 = tpu.matmul %60, %62, %cst_45 {dimension_numbers = #tpu.dot_dimension_numbers<[1], [0], [0], [1], [0, 0, 1, 1], [], []>} : vector<128x4xbf16>, vector<4x128xbf16>, vector<128x128xf32> -> vector<128x128xf32>
    %64 = arith.addf %55, %63 : vector<128x128xf32>
    %c2_i32_46 = arith.constant 2 : i32
    %65 = arith.addi %0, %c2_i32_46 : i32
    %c0_47 = arith.constant 0 : index
    %66 = arith.index_cast %65 : i32 to index
    %c1_48 = arith.constant 1 : index
    %c0_49 = arith.constant 0 : index
    %67 = vector.load %arg3[%c0_47, %66, %c1_48, %c0_49] : memref<1x18x18x4xbf16, #tpu.memory_space<vmem>>, vector<1x8x16x4xbf16>
    %68 = vector.shape_cast %67 : vector<1x8x16x4xbf16> to vector<8x16x4xbf16>
    %69 = vector.shape_cast %68 : vector<8x16x4xbf16> to vector<128x4xbf16>
    %c7 = arith.constant 7 : index
    %c0_50 = arith.constant 0 : index
    %c0_51 = arith.constant 0 : index
    %70 = vector.load %arg4[%c7, %c0_50, %c0_51] : memref<9x4x128xbf16, #tpu.memory_space<vmem>>, vector<1x4x128xbf16>
    %71 = vector.shape_cast %70 : vector<1x4x128xbf16> to vector<4x128xbf16>
    %cst_52 = arith.constant dense<0.000000e+00> : vector<128x128xf32>
    %72 = tpu.matmul %69, %71, %cst_52 {dimension_numbers = #tpu.dot_dimension_numbers<[1], [0], [0], [1], [0, 0, 1, 1], [], []>} : vector<128x4xbf16>, vector<4x128xbf16>, vector<128x128xf32> -> vector<128x128xf32>
    %73 = arith.addf %64, %72 : vector<128x128xf32>
    %c2_i32_53 = arith.constant 2 : i32
    %74 = arith.addi %0, %c2_i32_53 : i32
    %c0_54 = arith.constant 0 : index
    %75 = arith.index_cast %74 : i32 to index
    %c2_55 = arith.constant 2 : index
    %c0_56 = arith.constant 0 : index
    %76 = vector.load %arg3[%c0_54, %75, %c2_55, %c0_56] : memref<1x18x18x4xbf16, #tpu.memory_space<vmem>>, vector<1x8x16x4xbf16>
    %77 = vector.shape_cast %76 : vector<1x8x16x4xbf16> to vector<8x16x4xbf16>
    %78 = vector.shape_cast %77 : vector<8x16x4xbf16> to vector<128x4xbf16>
    %c8 = arith.constant 8 : index
    %c0_57 = arith.constant 0 : index
    %c0_58 = arith.constant 0 : index
    %79 = vector.load %arg4[%c8, %c0_57, %c0_58] : memref<9x4x128xbf16, #tpu.memory_space<vmem>>, vector<1x4x128xbf16>
    %80 = vector.shape_cast %79 : vector<1x4x128xbf16> to vector<4x128xbf16>
    %cst_59 = arith.constant dense<0.000000e+00> : vector<128x128xf32>
    %81 = tpu.matmul %78, %80, %cst_59 {dimension_numbers = #tpu.dot_dimension_numbers<[1], [0], [0], [1], [0, 0, 1, 1], [], []>} : vector<128x4xbf16>, vector<4x128xbf16>, vector<128x128xf32> -> vector<128x128xf32>
    %82 = arith.addf %73, %81 : vector<128x128xf32>
    %c0_60 = arith.constant 0 : index
    %c0_61 = arith.constant 0 : index
    %83 = vector.load %arg5[%c0_60, %c0_61] : memref<2x128xf32, #tpu.memory_space<vmem>>, vector<1x128xf32>
    %84 = vector.broadcast %83 : vector<1x128xf32> to vector<128x128xf32>
    %85 = arith.mulf %82, %84 : vector<128x128xf32>
    %c1_62 = arith.constant 1 : index
    %c0_63 = arith.constant 0 : index
    %86 = vector.load %arg5[%c1_62, %c0_63] : memref<2x128xf32, #tpu.memory_space<vmem>>, vector<1x128xf32>
    %87 = vector.broadcast %86 : vector<1x128xf32> to vector<128x128xf32>
    %88 = arith.addf %85, %87 : vector<128x128xf32>
    %cst_64 = arith.constant 0.000000e+00 : f32
    %89 = vector.broadcast %cst_64 : f32 to vector<128x128xf32>
    %90 = arith.maximumf %88, %89 : vector<128x128xf32>
    %91 = vector.shape_cast %90 : vector<128x128xf32> to vector<8x16x128xf32>
    %c0_65 = arith.constant 0 : index
    %c0_66 = arith.constant 0 : index
    %c0_67 = arith.constant 0 : index
    %c0_68 = arith.constant 0 : index
    %92 = vector.load %arg6[%c0_65, %c0_66, %c0_67, %c0_68] : memref<1x8x16x128xf32, #tpu.memory_space<vmem>>, vector<1x8x16x128xf32>
    %93 = vector.shape_cast %92 : vector<1x8x16x128xf32> to vector<8x16x128xf32>
    %94 = vector.shape_cast %91 : vector<8x16x128xf32> to vector<1x8x16x128xf32>
    tpu.vector_store %arg6[%c0_65, %c0_66, %c0_67, %c0_68], %94 {strides = array<i32>} : memref<1x8x16x128xf32, #tpu.memory_space<vmem>>, vector<1x8x16x128xf32>,
    return
  }
  func.func @transform_0(%arg0: i32, %arg1: i32, %arg2: i32) -> (i32, i32, i32, i32) {
    %c0_i32 = arith.constant 0 : i32
    %c0_i32_0 = arith.constant 0 : i32
    %c0_i32_1 = arith.constant 0 : i32
    %c0_i32_2 = arith.constant 0 : i32
    return %arg0, %c0_i32, %c0_i32_0, %c0_i32_1 : i32, i32, i32, i32
  }
  func.func @transform_1(%arg0: i32, %arg1: i32, %arg2: i32) -> (i32, i32, i32) {
    %c0_i32 = arith.constant 0 : i32
    %c0_i32_0 = arith.constant 0 : i32
    %c0_i32_1 = arith.constant 0 : i32
    return %c0_i32, %c0_i32_0, %arg2 : i32, i32, i32
  }
  func.func @transform_2(%arg0: i32, %arg1: i32, %arg2: i32) -> (i32, i32) {
    %c0_i32 = arith.constant 0 : i32
    %c0_i32_0 = arith.constant 0 : i32
    return %c0_i32, %arg2 : i32, i32
  }
  func.func @transform_3(%arg0: i32, %arg1: i32, %arg2: i32) -> (i32, i32, i32, i32) {
    %c0_i32 = arith.constant 0 : i32
    %c0_i32_0 = arith.constant 0 : i32
    return %arg0, %arg1, %c0_i32, %arg2 : i32, i32, i32, i32
  }
}

module attributes {stable_mosaic.version = 11 : i64} {
  func.func @_im2col_kernel(%arg0: i32, %arg1: i32, %arg2: memref<512x128xbf16, #tpu.memory_space<vmem>>, %arg3: memref<128x128xbf16, #tpu.memory_space<vmem>>, %arg4: memref<2x128xf32, #tpu.memory_space<vmem>>, %arg5: memref<512x128xf32, #tpu.memory_space<vmem>>) attributes {dimension_semantics = [#tpu.dimension_semantics<parallel>, #tpu.dimension_semantics<parallel>], iteration_bounds = array<i64: 1, 1>, scalar_prefetch = 0 : i64, scratch_operands = 0 : i64, tpu.core_type = #tpu.core_type<tc>, window_params = [{transform_indices = @transform_0, window_bounds = array<i64: 512, 128>}, {transform_indices = @transform_1, window_bounds = array<i64: 128, 128>}, {transform_indices = @transform_2, window_bounds = array<i64: 2, 128>}, {transform_indices = @transform_3, window_bounds = array<i64: 512, 128>}]} {
    %c0 = arith.constant 0 : index
    %c0_0 = arith.constant 0 : index
    %0 = vector.load %arg2[%c0, %c0_0] : memref<512x128xbf16, #tpu.memory_space<vmem>>, vector<512x128xbf16>
    %c0_1 = arith.constant 0 : index
    %c0_2 = arith.constant 0 : index
    %1 = vector.load %arg3[%c0_1, %c0_2] : memref<128x128xbf16, #tpu.memory_space<vmem>>, vector<128x128xbf16>
    %cst = arith.constant dense<0.000000e+00> : vector<512x128xf32>
    %2 = tpu.matmul %0, %1, %cst {dimension_numbers = #tpu.dot_dimension_numbers<[1], [0], [0], [1], [0, 0, 1, 1], [], []>} : vector<512x128xbf16>, vector<128x128xbf16>, vector<512x128xf32> -> vector<512x128xf32>
    %c0_3 = arith.constant 0 : index
    %c0_4 = arith.constant 0 : index
    %3 = vector.load %arg4[%c0_3, %c0_4] : memref<2x128xf32, #tpu.memory_space<vmem>>, vector<1x128xf32>
    %4 = vector.broadcast %3 : vector<1x128xf32> to vector<512x128xf32>
    %5 = arith.mulf %2, %4 : vector<512x128xf32>
    %c1 = arith.constant 1 : index
    %c0_5 = arith.constant 0 : index
    %6 = vector.load %arg4[%c1, %c0_5] : memref<2x128xf32, #tpu.memory_space<vmem>>, vector<1x128xf32>
    %7 = vector.broadcast %6 : vector<1x128xf32> to vector<512x128xf32>
    %8 = arith.addf %5, %7 : vector<512x128xf32>
    %cst_6 = arith.constant 0.000000e+00 : f32
    %9 = vector.broadcast %cst_6 : f32 to vector<512x128xf32>
    %10 = arith.maximumf %8, %9 : vector<512x128xf32>
    %c0_7 = arith.constant 0 : index
    %c0_8 = arith.constant 0 : index
    %11 = vector.load %arg5[%c0_7, %c0_8] : memref<512x128xf32, #tpu.memory_space<vmem>>, vector<512x128xf32>
    tpu.vector_store %arg5[%c0_7, %c0_8], %10 {strides = array<i32>} : memref<512x128xf32, #tpu.memory_space<vmem>>, vector<512x128xf32>,
    return
  }
  func.func @transform_0(%arg0: i32, %arg1: i32) -> (i32, i32) {
    %c0_i32 = arith.constant 0 : i32
    %c0_i32_0 = arith.constant 0 : i32
    return %arg0, %c0_i32 : i32, i32
  }
  func.func @transform_1(%arg0: i32, %arg1: i32) -> (i32, i32) {
    %c0_i32 = arith.constant 0 : i32
    %c0_i32_0 = arith.constant 0 : i32
    return %c0_i32, %arg1 : i32, i32
  }
  func.func @transform_2(%arg0: i32, %arg1: i32) -> (i32, i32) {
    %c0_i32 = arith.constant 0 : i32
    %c0_i32_0 = arith.constant 0 : i32
    return %c0_i32, %arg1 : i32, i32
  }
  func.func @transform_3(%arg0: i32, %arg1: i32) -> (i32, i32) {
    %c0_i32 = arith.constant 0 : i32
    return %arg0, %arg1 : i32, i32
  }
}

</mosaic_0001>

<llo_original>
// kernel: tpu_custom_call.1
$region0: #{tpu_custom_call.1}
  #allocation0 [shape = 'u32[]', space=smem, size = 0x4, offset = 0x4, fixed_abs, tag = 'smem constant byte address 0x4 - core index']
  #allocation1 [shape = 'u32[144,128]{1,0:T(1,128)}', space=vmem, size = 0x12000, scoped, tag = 'internal scratch']
  %s0 = inlined_call_operand.vmem [shape: bf16[2,18,18,4], index: 0, kind: input, shape index: {}]
  %s1 = inlined_call_operand.vmem [shape: bf16[9,4,128], index: 1, kind: input, shape index: {}]
  %s2 = inlined_call_operand.vmem [shape: f32[2,128], index: 2, kind: input, shape index: {}]
  %s3 = inlined_call_operand.hbm [shape: f32[2,16,16,128], index: 3, kind: output, shape index: {}]
  %s4 = sld [smem:[#allocation0]]
  $region45: #{tpu_custom_call.1} parent=0
    _
  %s6 = ssub.s32 1, %s4
  %s7 = scalar_select 0, %s6, %s4
  $region1: #{tpu_custom_call.1} parent=0
    #allocation2 [shape = 'u8[131072]{0}', space=vmem, size = 0x20000, scoped, tag = 'output window, operand 0']
    #allocation3 [shape = 's32[2]{0}', space=sflag, size = 0x8, scoped, tag = 'scoped memory for tpu_custom_call.1']
    %8 = vsyncpa [#allocation3], 0
    %s9 = scalar_lea.sflag [#allocation3], 1
    %10 = vsyncpa %s9, 0
    loop: start=0, step=1, limit=6
    $region2: #{tpu_custom_call.1} parent=1 // loop_pre_header
      _
    $region3: #{tpu_custom_call.1} parent=1 // loop_header
      %s12 = sphi 0, %s16
      %p13 = scmp.ge.s32.totalorder %s12, 6
      %s19 = sphi 0, %s38
      %s20 = sphi 0, %s34
      %s21 = sphi 0, %s30
      %s22 = sphi 0, %s19
      %s23 = sphi 0, %s20
      %s24 = sphi 0, %s21
      %s25 = sphi 0, %s22
      %s26 = sphi 0, %s23
      %s27 = sphi 0, %s24
      %s41 = sphi 0, %s43
      %s44 = sphi 0, %s41
      %s45 = sphi 0, %s44
      %s61 = sphi 0, %s45
      %s67 = sphi 0, %s69
      %s70 = sphi 0, %s67
      %s71 = sphi 0, %s70
      %s87 = sphi 0, %s71
      %s93 = sphi 0, %s95
      %s96 = sphi 0, %s93
      %s97 = sphi 0, %s96
      %s113 = sphi 0, %s97
      %s123 = sphi 0, %s125
      %s126 = sphi 0, %s123
      %s127 = sphi 0, %s126
      %s143 = sphi 0, %s127
    $region4: #{tpu_custom_call.1} parent=1 // loop_header_branch
      %15 = sbr.rel (%p13) target = $region8
    $region5: #{tpu_custom_call.1} parent=1 // loop_body
      %s17 = ssub.s32 %s12, 1
      %s18 = ssub.s32 %s12, 2
      %s28 = sadd.s32 1, %s21
      %p29 = scmp.ge.s32.totalorder %s28, 1
      %s30 = scalar_select %p29, 0, %s28
      %s31 = sadd.s32 1, %s20
      %s32 = scalar_select %p29, %s31, %s20
      %p33 = scmp.ge.s32.totalorder %s32, 2
      %s34 = scalar_select %p33, 0, %s32
      %s35 = sadd.s32 1, %s19
      %s36 = scalar_select %p33, %s35, %s19
      %p37 = scmp.ge.s32.totalorder %s36, 2
      %s38 = scalar_select %p37, 0, %s36
      %s39 = ssub.s32 %s19, %s38
      %p40 = scmp.eq.s32.totalorder %s39, 0
      %s42 = sadd.s32 %s41, 1
      %s43 = scalar_select %p40, %s41, %s42
      %p46 = pneg %p40
      %p47 = scmp.eq.s32.totalorder %s12, 3
      %p48 = por %p46, %p47
      %p49 = scmp.ne.s32.totalorder %s41, %s44
      %p50 = scmp.eq.s32.totalorder %s12, 0
      %p51 = por %p49, %p50
      %p52 = scmp.ne.s32.totalorder %s41, %s44
      %p53 = scmp.eq.s32.totalorder %s17, 3
      %p54 = por %p52, %p53
      %p55 = scmp.ne.s32.totalorder %s44, %s45
      %p56 = scmp.eq.s32.totalorder %s17, 0
      %p57 = por %p55, %p56
      %p58 = scmp.ne.s32.totalorder %s44, %s45
      %p59 = scmp.eq.s32.totalorder %s18, 3
      %p60 = por %p58, %p59
      %p62 = scmp.ne.s32.totalorder %s45, %s61
      %p63 = scmp.eq.s32.totalorder %s18, 0
      %p64 = por %p62, %p63
      %s65 = ssub.s32 %s21, %s30
      %p66 = scmp.eq.s32.totalorder %s65, 0
      %s68 = sadd.s32 %s67, 1
      %s69 = scalar_select %p66, %s67, %s68
      %p72 = pneg %p66
      %p73 = scmp.eq.s32.totalorder %s12, 3
      %p74 = por %p72, %p73
      %p75 = scmp.ne.s32.totalorder %s67, %s70
      %p76 = scmp.eq.s32.totalorder %s12, 0
      %p77 = por %p75, %p76
      %p78 = scmp.ne.s32.totalorder %s67, %s70
      %p79 = scmp.eq.s32.totalorder %s17, 3
      %p80 = por %p78, %p79
      %p81 = scmp.ne.s32.totalorder %s70, %s71
      %p82 = scmp.eq.s32.totalorder %s17, 0
      %p83 = por %p81, %p82
      %p84 = scmp.ne.s32.totalorder %s70, %s71
      %p85 = scmp.eq.s32.totalorder %s18, 3
      %p86 = por %p84, %p85
      %p88 = scmp.ne.s32.totalorder %s71, %s87
      %p89 = scmp.eq.s32.totalorder %s18, 0
      %p90 = por %p88, %p89
      %s91 = ssub.s32 %s21, %s30
      %p92 = scmp.eq.s32.totalorder %s91, 0
      %s94 = sadd.s32 %s93, 1
      %s95 = scalar_select %p92, %s93, %s94
      %p98 = pneg %p92
      %p99 = scmp.eq.s32.totalorder %s12, 3
      %p100 = por %p98, %p99
      %p101 = scmp.ne.s32.totalorder %s93, %s96
      %p102 = scmp.eq.s32.totalorder %s12, 0
      %p103 = por %p101, %p102
      %p104 = scmp.ne.s32.totalorder %s93, %s96
      %p105 = scmp.eq.s32.totalorder %s17, 3
      %p106 = por %p104, %p105
      %p107 = scmp.ne.s32.totalorder %s96, %s97
      %p108 = scmp.eq.s32.totalorder %s17, 0
      %p109 = por %p107, %p108
      %p110 = scmp.ne.s32.totalorder %s96, %s97
      %p111 = scmp.eq.s32.totalorder %s18, 3
      %p112 = por %p110, %p111
      %p114 = scmp.ne.s32.totalorder %s97, %s113
      %p115 = scmp.eq.s32.totalorder %s18, 0
      %p116 = por %p114, %p115
      %s117 = ssub.s32 %s19, %s38
      %s118 = ssub.s32 %s20, %s34
      %s119 = sor.u32 %s117, %s118
      %s120 = ssub.s32 %s21, %s30
      %s121 = sor.u32 %s119, %s120
      %p122 = scmp.eq.s32.totalorder %s121, 0
      %s124 = sadd.s32 %s123, 1
      %s125 = scalar_select %p122, %s123, %s124
      %p128 = pneg %p122
      %p129 = scmp.eq.s32.totalorder %s12, 3
      %p130 = por %p128, %p129
      %p131 = scmp.ne.s32.totalorder %s123, %s126
      %p132 = scmp.eq.s32.totalorder %s12, 0
      %p133 = por %p131, %p132
      %p134 = scmp.ne.s32.totalorder %s123, %s126
      %p135 = scmp.eq.s32.totalorder %s17, 3
      %p136 = por %p134, %p135
      %p137 = scmp.ne.s32.totalorder %s126, %s127
      %p138 = scmp.eq.s32.totalorder %s17, 0
      %p139 = por %p137, %p138
      %p140 = scmp.ne.s32.totalorder %s126, %s127
      %p141 = scmp.eq.s32.totalorder %s18, 3
      %p142 = por %p140, %p141
      %p144 = scmp.ne.s32.totalorder %s127, %s143
      %p145 = scmp.eq.s32.totalorder %s18, 0
      %p146 = por %p144, %p145
      %p147 = scmp.le.s32.totalorder 1, %s12
      %p148 = scmp.lt.s32.totalorder %s12, 5
      %p149 = pnand %p147, %p148
      %p150 = pneg %p149
      // Predicated region
      $region9: #{tpu_custom_call.1} parent=5 // pred_check
        _
      $region10: #{tpu_custom_call.1} parent=5 // pred_check_branch
        %152 = sbr.rel (%p149) target = $region12
      $region11: #{tpu_custom_call.1} parent=5 // pred_region
        %s153 = ssub.s32 %s12, 1
        // Predicated region
        $region13: #{tpu_custom_call.1} parent=11 // pred_check
          %p154 = pneg %p83
        $region14: #{tpu_custom_call.1} parent=11 // pred_check_branch
          %156 = sbr.rel (%p154) target = $region16
        $region15: #{tpu_custom_call.1} parent=11 // pred_region
          %p157 = scmp.lt.s32.totalorder %s24, 0
          %s158 = scalar_select %p157, %s24, 0
          %s159 = smul.addr %s158, 2
          %s160 = scalar_lea.vmem %s1, %s159
        $region16: #{tpu_custom_call.1} parent=11 // pred_fallthru
          _
        // Predicated region
        $region17: #{tpu_custom_call.1} parent=11 // pred_check
          %p161 = pneg %p109
        $region18: #{tpu_custom_call.1} parent=11 // pred_check_branch
          %163 = sbr.rel (%p161) target = $region20
        $region19: #{tpu_custom_call.1} parent=11 // pred_region
          %p164 = scmp.lt.s32.totalorder %s24, 0
          %s165 = scalar_select %p164, %s24, 0
          %s166 = smul.addr %s165, 2
          %s167 = scalar_lea.vmem %s2, %s166
        $region20: #{tpu_custom_call.1} parent=11 // pred_fallthru
          _
      $region12: #{tpu_custom_call.1} parent=5 // pred_fallthru
        _
      %p168 = scmp.lt.s32.totalorder %s12, 4
      // Predicated region
      $region21: #{tpu_custom_call.1} parent=5 // pred_check
        %p169 = pneg %p168
      $region22: #{tpu_custom_call.1} parent=5 // pred_check_branch
        %171 = sbr.rel (%p169) target = $region24
      $region23: #{tpu_custom_call.1} parent=5 // pred_region
        // Predicated region
        $region25: #{tpu_custom_call.1} parent=23 // pred_check
          %p172 = pneg %p51
        $region26: #{tpu_custom_call.1} parent=23 // pred_check_branch
          %174 = sbr.rel (%p172) target = $region28
        $region27: #{tpu_custom_call.1} parent=23 // pred_region
          %p175 = scmp.lt.s32.totalorder %s19, 1
          %s176 = scalar_select %p175, %s19, 1
          %s177 = smul.addr %s176, 54
          %s178 = smul.addr %s177, 4
          %s179 = scalar_lea.vmem %s0, %s178
        $region28: #{tpu_custom_call.1} parent=23 // pred_fallthru
          _
      $region24: #{tpu_custom_call.1} parent=5 // pred_fallthru
        _
      %p180 = scmp.le.s32.totalorder 1, %s12
      %p181 = scmp.lt.s32.totalorder %s12, 5
      %p182 = pnand %p180, %p181
      %p183 = pneg %p182
      // Predicated region
      $region29: #{tpu_custom_call.1} parent=5 // pred_check
        _
      $region30: #{tpu_custom_call.1} parent=5 // pred_check_branch
        %185 = sbr.rel (%p182) target = $region32
      $region31: #{tpu_custom_call.1} parent=5 // pred_region
        %s186 = ssub.s32 %s12, 1
        %p187 = scmp.lt.s32.totalorder %s22, 1
        %s188 = scalar_select %p187, %s22, 1
        %s189 = smul.addr %s188, 54
        %s190 = smul.addr %s189, 4
        %s191 = scalar_lea.vmem %s0, %s190
        %p192 = pneg %p57
        %p193 = pneg %p54
        %p194 = scmp.lt.s32.totalorder %s24, 0
        %s195 = scalar_select %p194, %s24, 0
        %s196 = smul.addr %s195, 2
        %s197 = scalar_lea.vmem %s1, %s196
        %p198 = pneg %p83
        %p199 = pneg %p80
        %p200 = scmp.lt.s32.totalorder %s24, 0
        %s201 = scalar_select %p200, %s24, 0
        %s202 = smul.addr %s201, 2
        %s203 = scalar_lea.vmem %s2, %s202
        %p204 = pneg %p109
        %p205 = pneg %p106
        %p206 = pneg %p139
        %p207 = pneg %p136
        %s208 = sand.u32 %s126, 1
        %s209 = scalar_lea.sflag [#allocation3], %s208
        %s210 = sand.u32 %s126, 1
        %s211 = smul.addr %s210, 128
        %s212 = scalar_lea.vmem [#allocation2], %s211
        %p213 = scmp.lt.s32.totalorder %s22, 1
        %s214 = scalar_select %p213, %s22, 1
        %s215 = smul.addr %s214, 54
        %s216 = smul.addr %s215, 4
        %s217 = scalar_lea.vmem %s0, %s216
        %p218 = scmp.lt.s32.totalorder %s24, 0
        %s219 = scalar_select %p218, %s24, 0
        %s220 = smul.addr %s219, 2
        %s221 = scalar_lea.vmem %s1, %s220
        %p222 = scmp.lt.s32.totalorder %s24, 0
        %s223 = scalar_select %p222, %s24, 0
        %s224 = smul.addr %s223, 2
        %s225 = scalar_lea.vmem %s2, %s224
        %s226 = smul.u32 8, %s23
        %s228 = smul.u32 %s23, 8
        %s229 = smul.u32 %s228, 3
        %s230 = smul.addr %s229, 4
        %s231 = scalar_lea.vmem %s217, %s230
        %v232 = vld [vmem:[%s231] sm:$0xf]
        %v233 = vld [vmem:[%s231 + $0x4] sm:$0xf]
        %v234 = vld [vmem:[%s231 + $0xc] sm:$0xf]
        %v235 = vld [vmem:[%s231 + $0x10] sm:$0xf]
        %v236 = vld [vmem:[%s231 + $0x18] sm:$0xf]
        %v237 = vld [vmem:[%s231 + $0x1c] sm:$0xf]
        %v238 = vld [vmem:[%s231 + $0x24] sm:$0xf]
        %v239 = vld [vmem:[%s231 + $0x28] sm:$0xf]
        %v240 = vld [vmem:[%s231 + $0x30] sm:$0xf]
        %v241 = vld [vmem:[%s231 + $0x34] sm:$0xf]
        %v242 = vld [vmem:[%s231 + $0x3c] sm:$0xf]
        %v243 = vld [vmem:[%s231 + $0x40] sm:$0xf]
        %v244 = vld [vmem:[%s231 + $0x48] sm:$0xf]
        %v245 = vld [vmem:[%s231 + $0x4c] sm:$0xf]
        %v246 = vld [vmem:[%s231 + $0x54] sm:$0xf]
        %v247 = vld [vmem:[%s231 + $0x58] sm:$0xf]
        %v248 = vld [vmem:[%s221] sm:$0x3]
        %v249 = vld [vmem:[%s231 + $0x8] sm:$0x1]
        %v250 = vld [vmem:[%s231 + $0x14] sm:$0x1]
        %v251 = vld [vmem:[%s231 + $0x20] sm:$0x1]
        %v252 = vld [vmem:[%s231 + $0x2c] sm:$0x1]
        %v253 = vld [vmem:[%s231 + $0x38] sm:$0x1]
        %v254 = vld [vmem:[%s231 + $0x44] sm:$0x1]
        %v255 = vld [vmem:[%s231 + $0x50] sm:$0x1]
        %v256 = vld [vmem:[%s231 + $0x5c] sm:$0x1]
        %vm257 = vsmask.f32 3328
        %vm258 = vsmask.f32 7440
        %vm259 = vmor %vm257, %vm258
        %v261 = vshrl.u32 %v232, 16
        %v263 = vrot.slane %v261, 4
        %v264 = vshll.u32 %v232, 16
        %v266 = vrot.slane %v264, 5
        %v267 = vor.u32 %v263, %v266
        %v268 = vrot.slane %v267, 4
        %v270 = vshll.u32 %v233, 16
        %v272 = vrot.slane %v270, 5
        %v273 = vsel %vm259, %v268, %v272
        %v274 = vshrl.u32 %v233, 16
        %v276 = vrot.slane %v274, 4
        %v277 = vor.u32 %v276, %v272
        %v278 = vrot.slane %v277, 4
        %v280 = vshll.u32 %v249, 16
        %v282 = vrot.slane %v280, 5
        %v283 = vsel %vm259, %v278, %v282
        %v285 = vshrl.u32 %v234, 16
        %v287 = vrot.slane %v285, 4
        %v288 = vshll.u32 %v234, 16
        %v290 = vrot.slane %v288, 5
        %v291 = vor.u32 %v287, %v290
        %v292 = vrot.slane %v291, 4
        %v294 = vshll.u32 %v235, 16
        %v296 = vrot.slane %v294, 5
        %v297 = vsel %vm259, %v292, %v296
        %v298 = vshrl.u32 %v235, 16
        %v300 = vrot.slane %v298, 4
        %v301 = vor.u32 %v300, %v296
        %v302 = vrot.slane %v301, 4
        %v304 = vshll.u32 %v250, 16
        %v306 = vrot.slane %v304, 5
        %v307 = vsel %vm259, %v302, %v306
        %v309 = vshrl.u32 %v236, 16
        %v311 = vrot.slane %v309, 4
        %v312 = vshll.u32 %v236, 16
        %v314 = vrot.slane %v312, 5
        %v315 = vor.u32 %v311, %v314
        %v316 = vrot.slane %v315, 4
        %v318 = vshll.u32 %v237, 16
        %v320 = vrot.slane %v318, 5
        %v321 = vsel %vm259, %v316, %v320
        %v322 = vshrl.u32 %v237, 16
        %v324 = vrot.slane %v322, 4
        %v325 = vor.u32 %v324, %v320
        %v326 = vrot.slane %v325, 4
        %v328 = vshll.u32 %v251, 16
        %v330 = vrot.slane %v328, 5
        %v331 = vsel %vm259, %v326, %v330
        %v333 = vshrl.u32 %v238, 16
        %v335 = vrot.slane %v333, 4
        %v336 = vshll.u32 %v238, 16
        %v338 = vrot.slane %v336, 5
        %v339 = vor.u32 %v335, %v338
        %v340 = vrot.slane %v339, 4
        %v342 = vshll.u32 %v239, 16
        %v344 = vrot.slane %v342, 5
        %v345 = vsel %vm259, %v340, %v344
        %v346 = vshrl.u32 %v239, 16
        %v348 = vrot.slane %v346, 4
        %v349 = vor.u32 %v348, %v344
        %v350 = vrot.slane %v349, 4
        %v352 = vshll.u32 %v252, 16
        %v354 = vrot.slane %v352, 5
        %v355 = vsel %vm259, %v350, %v354
        %v357 = vshrl.u32 %v240, 16
        %v359 = vrot.slane %v357, 4
        %v360 = vshll.u32 %v240, 16
        %v362 = vrot.slane %v360, 5
        %v363 = vor.u32 %v359, %v362
        %v364 = vrot.slane %v363, 4
        %v366 = vshll.u32 %v241, 16
        %v368 = vrot.slane %v366, 5
        %v369 = vsel %vm259, %v364, %v368
        %v370 = vshrl.u32 %v241, 16
        %v372 = vrot.slane %v370, 4
        %v373 = vor.u32 %v372, %v368
        %v374 = vrot.slane %v373, 4
        %v376 = vshll.u32 %v253, 16
        %v378 = vrot.slane %v376, 5
        %v379 = vsel %vm259, %v374, %v378
        %v381 = vshrl.u32 %v242, 16
        %v383 = vrot.slane %v381, 4
        %v384 = vshll.u32 %v242, 16
        %v386 = vrot.slane %v384, 5
        %v387 = vor.u32 %v383, %v386
        %v388 = vrot.slane %v387, 4
        %v390 = vshll.u32 %v243, 16
        %v392 = vrot.slane %v390, 5
        %v393 = vsel %vm259, %v388, %v392
        %v394 = vshrl.u32 %v243, 16
        %v396 = vrot.slane %v394, 4
        %v397 = vor.u32 %v396, %v392
        %v398 = vrot.slane %v397, 4
        %v400 = vshll.u32 %v254, 16
        %v402 = vrot.slane %v400, 5
        %v403 = vsel %vm259, %v398, %v402
        %v405 = vshrl.u32 %v244, 16
        %v407 = vrot.slane %v405, 4
        %v408 = vshll.u32 %v244, 16
        %v410 = vrot.slane %v408, 5
        %v411 = vor.u32 %v407, %v410
        %v412 = vrot.slane %v411, 4
        %v414 = vshll.u32 %v245, 16
        %v416 = vrot.slane %v414, 5
        %v417 = vsel %vm259, %v412, %v416
        %v418 = vshrl.u32 %v245, 16
        %v420 = vrot.slane %v418, 4
        %v421 = vor.u32 %v420, %v416
        %v422 = vrot.slane %v421, 4
        %v424 = vshll.u32 %v255, 16
        %v426 = vrot.slane %v424, 5
        %v427 = vsel %vm259, %v422, %v426
        %v429 = vshrl.u32 %v246, 16
        %v431 = vrot.slane %v429, 4
        %v432 = vshll.u32 %v246, 16
        %v434 = vrot.slane %v432, 5
        %v435 = vor.u32 %v431, %v434
        %v436 = vrot.slane %v435, 4
        %v438 = vshll.u32 %v247, 16
        %v440 = vrot.slane %v438, 5
        %v441 = vsel %vm259, %v436, %v440
        %v442 = vshrl.u32 %v247, 16
        %v444 = vrot.slane %v442, 4
        %v445 = vor.u32 %v444, %v440
        %v446 = vrot.slane %v445, 4
        %v448 = vshll.u32 %v256, 16
        %v450 = vrot.slane %v448, 5
        %v451 = vsel %vm259, %v446, %v450
        %s452 = scalar_lea.vmem %s221, 2
        %v453 = vld [vmem:[%s452] sm:$0x3]
        %v454 = vunpack.c.l.b16 %v273
        %v455 = vunpack.c.l.b16 %v283
        %v456 = vunpack.c.l.b16 %v297
        %v457 = vunpack.c.l.b16 %v307
        %v458 = vunpack.c.l.b16 %v321
        %v459 = vunpack.c.l.b16 %v331
        %v460 = vunpack.c.l.b16 %v345
        %v461 = vunpack.c.l.b16 %v355
        %v462 = vunpack.c.l.b16 %v369
        %v463 = vunpack.c.l.b16 %v379
        %v464 = vunpack.c.l.b16 %v393
        %v465 = vunpack.c.l.b16 %v403
        %v466 = vunpack.c.l.b16 %v417
        %v467 = vunpack.c.l.b16 %v427
        %v468 = vunpack.c.l.b16 %v441
        %v469 = vunpack.c.l.b16 %v451
        %v470 = vpack.c.b16 %v455, %v454
        %v471 = vpack.c.b16 %v457, %v456
        %v472 = vpack.c.b16 %v459, %v458
        %v473 = vpack.c.b16 %v461, %v460
        %v474 = vpack.c.b16 %v463, %v462
        %v475 = vpack.c.b16 %v465, %v464
        %v476 = vpack.c.b16 %v467, %v466
        %v477 = vpack.c.b16 %v469, %v468
        %vm478 = vcmask 31744
        %v480 = vsel %vm478, %v470, 0
        %v483 = vsel %vm478, %v471, 0
        %v486 = vsel %vm478, %v472, 0
        %v489 = vsel %vm478, %v473, 0
        %v492 = vsel %vm478, %v474, 0
        %v495 = vsel %vm478, %v475, 0
        %v498 = vsel %vm478, %v476, 0
        %v501 = vsel %vm478, %v477, 0
        %vm503 = vcmask 1041408
        %v505 = vsel %vm503, %v453, 0
        %507 = vmatprep.subr.bf16.mxu0 0
        %508 = vmatpush1.bf16.msra.mxu0 0
        %509 = vmatprep.subr.bf16.mxu0 0
        %510 = vmatpush1.bf16.msra.mxu0 0
        %511 = vmatprep.subr.bf16.mxu0 0
        %512 = vmatpush1.bf16.msra.mxu0 0
        %513 = vmatprep.subr.bf16.mxu0 0
        %514 = vmatpush1.bf16.msra.mxu0 0
        %515 = vmatprep.subr.bf16.mxu0 0
        %516 = vmatpush1.bf16.msra.mxu0 0
        %517 = vmatprep.subr.bf16.mxu0 0
        %518 = vmatpush1.bf16.msra.mxu0 0
        %519 = vmatprep.subr.bf16.mxu0 0
        %520 = vmatpush1.bf16.msra.mxu0 0
        %521 = vmatprep.subr.bf16.mxu0 0
        %522 = vmatpush1.bf16.msra.mxu0 %v505
        %523 = vmatprep.subr.bf16.mxu0 0
        %524 = vmatpush2.bf16.msra.mxu0 0
        %525 = vmatprep.subr.bf16.mxu0 0
        %526 = vmatpush2.bf16.msra.mxu0 0
        %527 = vmatprep.subr.bf16.mxu0 0
        %528 = vmatpush2.bf16.msra.mxu0 0
        %529 = vmatprep.subr.bf16.mxu0 0
        %530 = vmatpush2.bf16.msra.mxu0 0
        %531 = vmatprep.subr.bf16.mxu0 0
        %532 = vmatpush2.bf16.msra.mxu0 0
        %533 = vmatprep.subr.bf16.mxu0 0
        %534 = vmatpush2.bf16.msra.mxu0 0
        %535 = vmatprep.subr.bf16.mxu0 0
        %536 = vmatpush2.bf16.msra.mxu0 0
        %537 = vmatprep.subr.bf16.mxu0 0
        %538 = vmatpush2.bf16.msra.mxu0 0
        %539 = vmatprep.mubr.bf16.mxu0 0
        %540 = vmatmul.mubr.bf16.gmra.mxu0 %v480
        %v541 = vpop.f32.mrf.mxu0
        %v542 = vadd.f32 0.0, %v541
        %v543 = vpop.f32.mrf.mxu0
        %v544 = vpop.f32.mrf.mxu0
        %v545 = vadd.f32 0.0, %v544
        %v546 = vpop.f32.mrf.mxu0
        %547 = vmatprep.mubr.bf16.mxu0 0
        %548 = vmatmul.mubr.bf16.gmra.mxu0 %v483
        %v549 = vpop.f32.mrf.mxu0
        %v550 = vadd.f32 0.0, %v549
        %v551 = vpop.f32.mrf.mxu0
        %v552 = vpop.f32.mrf.mxu0
        %v553 = vadd.f32 0.0, %v552
        %v554 = vpop.f32.mrf.mxu0
        %555 = vmatprep.mubr.bf16.mxu0 0
        %556 = vmatmul.mubr.bf16.gmra.mxu0 %v486
        %v557 = vpop.f32.mrf.mxu0
        %v558 = vadd.f32 0.0, %v557
        %v559 = vpop.f32.mrf.mxu0
        %v560 = vpop.f32.mrf.mxu0
        %v561 = vadd.f32 0.0, %v560
        %v562 = vpop.f32.mrf.mxu0
        %563 = vmatprep.mubr.bf16.mxu0 0
        %564 = vmatmul.mubr.bf16.gmra.mxu0 %v489
        %v565 = vpop.f32.mrf.mxu0
        %v566 = vadd.f32 0.0, %v565
        %v567 = vpop.f32.mrf.mxu0
        %v568 = vpop.f32.mrf.mxu0
        %v569 = vadd.f32 0.0, %v568
        %v570 = vpop.f32.mrf.mxu0
        %571 = vmatprep.mubr.bf16.mxu0 0
        %572 = vmatmul.mubr.bf16.gmra.mxu0 %v492
        %v573 = vpop.f32.mrf.mxu0
        %v574 = vadd.f32 0.0, %v573
        %v575 = vpop.f32.mrf.mxu0
        %v576 = vpop.f32.mrf.mxu0
        %v577 = vadd.f32 0.0, %v576
        %v578 = vpop.f32.mrf.mxu0
        %579 = vmatprep.mubr.bf16.mxu0 0
        %580 = vmatmul.mubr.bf16.gmra.mxu0 %v495
        %v581 = vpop.f32.mrf.mxu0
        %v582 = vadd.f32 0.0, %v581
        %v583 = vpop.f32.mrf.mxu0
        %v584 = vpop.f32.mrf.mxu0
        %v585 = vadd.f32 0.0, %v584
        %v586 = vpop.f32.mrf.mxu0
        %587 = vmatprep.mubr.bf16.mxu0 0
        %588 = vmatmul.mubr.bf16.gmra.mxu0 %v498
        %v589 = vpop.f32.mrf.mxu0
        %v590 = vadd.f32 0.0, %v589
        %v591 = vpop.f32.mrf.mxu0
        %v592 = vpop.f32.mrf.mxu0
        %v593 = vadd.f32 0.0, %v592
        %v594 = vpop.f32.mrf.mxu0
        %595 = vmatprep.mubr.bf16.mxu0 0
        %596 = vmatmul.mubr.bf16.gmra.mxu0 %v501
        %v597 = vpop.f32.mrf.mxu0
        %v598 = vadd.f32 0.0, %v597
        %v599 = vpop.f32.mrf.mxu0
        %v600 = vpop.f32.mrf.mxu0
        %v601 = vadd.f32 0.0, %v600
        %v602 = vpop.f32.mrf.mxu0
        %603 = vdwg.mxu0
        %v620 = vunpack.c.l.b16 %v232
        %v621 = vunpack.c.l.b16 %v233
        %v622 = vunpack.c.l.b16 %v234
        %v623 = vunpack.c.l.b16 %v235
        %v624 = vunpack.c.l.b16 %v236
        %v625 = vunpack.c.l.b16 %v237
        %v626 = vunpack.c.l.b16 %v238
        %v627 = vunpack.c.l.b16 %v239
        %v628 = vunpack.c.l.b16 %v240
        %v629 = vunpack.c.l.b16 %v241
        %v630 = vunpack.c.l.b16 %v242
        %v631 = vunpack.c.l.b16 %v243
        %v632 = vunpack.c.l.b16 %v244
        %v633 = vunpack.c.l.b16 %v245
        %v634 = vunpack.c.l.b16 %v246
        %v635 = vunpack.c.l.b16 %v247
        %v636 = vpack.c.b16 %v621, %v620
        %v637 = vpack.c.b16 %v623, %v622
        %v638 = vpack.c.b16 %v625, %v624
        %v639 = vpack.c.b16 %v627, %v626
        %v640 = vpack.c.b16 %v629, %v628
        %v641 = vpack.c.b16 %v631, %v630
        %v642 = vpack.c.b16 %v633, %v632
        %v643 = vpack.c.b16 %v635, %v634
        %v645 = vsel %vm478, %v636, 0
        %v648 = vsel %vm478, %v637, 0
        %v651 = vsel %vm478, %v638, 0
        %v654 = vsel %vm478, %v639, 0
        %v657 = vsel %vm478, %v640, 0
        %v660 = vsel %vm478, %v641, 0
        %v663 = vsel %vm478, %v642, 0
        %v666 = vsel %vm478, %v643, 0
        %v669 = vsel %vm503, %v248, 0
        %671 = vmatprep.subr.bf16.mxu0 0
        %672 = vmatpush1.bf16.msra.mxu0 0
        %673 = vmatprep.subr.bf16.mxu0 0
        %674 = vmatpush1.bf16.msra.mxu0 0
        %675 = vmatprep.subr.bf16.mxu0 0
        %676 = vmatpush1.bf16.msra.mxu0 0
        %677 = vmatprep.subr.bf16.mxu0 0
        %678 = vmatpush1.bf16.msra.mxu0 0
        %679 = vmatprep.subr.bf16.mxu0 0
        %680 = vmatpush1.bf16.msra.mxu0 0
        %681 = vmatprep.subr.bf16.mxu0 0
        %682 = vmatpush1.bf16.msra.mxu0 0
        %683 = vmatprep.subr.bf16.mxu0 0
        %684 = vmatpush1.bf16.msra.mxu0 0
        %685 = vmatprep.subr.bf16.mxu0 0
        %686 = vmatpush1.bf16.msra.mxu0 %v669
        %687 = vmatprep.subr.bf16.mxu0 0
        %688 = vmatpush2.bf16.msra.mxu0 0
        %689 = vmatprep.subr.bf16.mxu0 0
        %690 = vmatpush2.bf16.msra.mxu0 0
        %691 = vmatprep.subr.bf16.mxu0 0
        %692 = vmatpush2.bf16.msra.mxu0 0
        %693 = vmatprep.subr.bf16.mxu0 0
        %694 = vmatpush2.bf16.msra.mxu0 0
        %695 = vmatprep.subr.bf16.mxu0 0
        %696 = vmatpush2.bf16.msra.mxu0 0
        %697 = vmatprep.subr.bf16.mxu0 0
        %698 = vmatpush2.bf16.msra.mxu0 0
        %699 = vmatprep.subr.bf16.mxu0 0
        %700 = vmatpush2.bf16.msra.mxu0 0
        %701 = vmatprep.subr.bf16.mxu0 0
        %702 = vmatpush2.bf16.msra.mxu0 0
        %703 = vmatprep.mubr.bf16.mxu0 0
        %704 = vmatmul.mubr.bf16.gmra.mxu0 %v645
        %v705 = vpop.f32.mrf.mxu0
        %v706 = vadd.f32 %v542, %v705
        %v707 = vpop.f32.mrf.mxu0
        %v708 = vpop.f32.mrf.mxu0
        %v709 = vadd.f32 %v545, %v708
        %v710 = vpop.f32.mrf.mxu0
        %711 = vmatprep.mubr.bf16.mxu0 0
        %712 = vmatmul.mubr.bf16.gmra.mxu0 %v648
        %v713 = vpop.f32.mrf.mxu0
        %v714 = vadd.f32 %v550, %v713
        %v715 = vpop.f32.mrf.mxu0
        %v716 = vpop.f32.mrf.mxu0
        %v717 = vadd.f32 %v553, %v716
        %v718 = vpop.f32.mrf.mxu0
        %719 = vmatprep.mubr.bf16.mxu0 0
        %720 = vmatmul.mubr.bf16.gmra.mxu0 %v651
        %v721 = vpop.f32.mrf.mxu0
        %v722 = vadd.f32 %v558, %v721
        %v723 = vpop.f32.mrf.mxu0
        %v724 = vpop.f32.mrf.mxu0
        %v725 = vadd.f32 %v561, %v724
        %v726 = vpop.f32.mrf.mxu0
        %727 = vmatprep.mubr.bf16.mxu0 0
        %728 = vmatmul.mubr.bf16.gmra.mxu0 %v654
        %v729 = vpop.f32.mrf.mxu0
        %v730 = vadd.f32 %v566, %v729
        %v731 = vpop.f32.mrf.mxu0
        %v732 = vpop.f32.mrf.mxu0
        %v733 = vadd.f32 %v569, %v732
        %v734 = vpop.f32.mrf.mxu0
        %735 = vmatprep.mubr.bf16.mxu0 0
        %736 = vmatmul.mubr.bf16.gmra.mxu0 %v657
        %v737 = vpop.f32.mrf.mxu0
        %v738 = vadd.f32 %v574, %v737
        %v739 = vpop.f32.mrf.mxu0
        %v740 = vpop.f32.mrf.mxu0
        %v741 = vadd.f32 %v577, %v740
        %v742 = vpop.f32.mrf.mxu0
        %743 = vmatprep.mubr.bf16.mxu0 0
        %744 = vmatmul.mubr.bf16.gmra.mxu0 %v660
        %v745 = vpop.f32.mrf.mxu0
        %v746 = vadd.f32 %v582, %v745
        %v747 = vpop.f32.mrf.mxu0
        %v748 = vpop.f32.mrf.mxu0
        %v749 = vadd.f32 %v585, %v748
        %v750 = vpop.f32.mrf.mxu0
        %751 = vmatprep.mubr.bf16.mxu0 0
        %752 = vmatmul.mubr.bf16.gmra.mxu0 %v663
        %v753 = vpop.f32.mrf.mxu0
        %v754 = vadd.f32 %v590, %v753
        %v755 = vpop.f32.mrf.mxu0
        %v756 = vpop.f32.mrf.mxu0
        %v757 = vadd.f32 %v593, %v756
        %v758 = vpop.f32.mrf.mxu0
        %759 = vmatprep.mubr.bf16.mxu0 0
        %760 = vmatmul.mubr.bf16.gmra.mxu0 %v666
        %v761 = vpop.f32.mrf.mxu0
        %v762 = vadd.f32 %v598, %v761
        %v763 = vpop.f32.mrf.mxu0
        %v764 = vpop.f32.mrf.mxu0
        %v765 = vadd.f32 %v601, %v764
        %v766 = vpop.f32.mrf.mxu0
        %767 = vdwg.mxu0
        %v768 = vld [vmem:[%s231] sm:$0xe]
        %v769 = vld [vmem:[%s231 + $0xc] sm:$0xe]
        %v770 = vld [vmem:[%s231 + $0x18] sm:$0xe]
        %v771 = vld [vmem:[%s231 + $0x24] sm:$0xe]
        %v772 = vld [vmem:[%s231 + $0x30] sm:$0xe]
        %v773 = vld [vmem:[%s231 + $0x3c] sm:$0xe]
        %v774 = vld [vmem:[%s231 + $0x48] sm:$0xe]
        %v775 = vld [vmem:[%s231 + $0x54] sm:$0xe]
        %vm792 = vcmask 1042432
        %vm793 = vcmask 1046532
        %vm794 = vmor %vm792, %vm793
        %v795 = vrot.slane %v768, 5
        %v796 = vrot.slane %v795, 4
        %v797 = vrot.slane %v233, 5
        %v798 = vsel %vm794, %v796, %v797
        %v799 = vrot.slane %v797, 4
        %v800 = vrot.slane %v249, 5
        %v801 = vsel %vm794, %v799, %v800
        %v802 = vrot.slane %v769, 5
        %v803 = vrot.slane %v802, 4
        %v804 = vrot.slane %v235, 5
        %v805 = vsel %vm794, %v803, %v804
        %v806 = vrot.slane %v804, 4
        %v807 = vrot.slane %v250, 5
        %v808 = vsel %vm794, %v806, %v807
        %v809 = vrot.slane %v770, 5
        %v810 = vrot.slane %v809, 4
        %v811 = vrot.slane %v237, 5
        %v812 = vsel %vm794, %v810, %v811
        %v813 = vrot.slane %v811, 4
        %v814 = vrot.slane %v251, 5
        %v815 = vsel %vm794, %v813, %v814
        %v816 = vrot.slane %v771, 5
        %v817 = vrot.slane %v816, 4
        %v818 = vrot.slane %v239, 5
        %v819 = vsel %vm794, %v817, %v818
        %v820 = vrot.slane %v818, 4
        %v821 = vrot.slane %v252, 5
        %v822 = vsel %vm794, %v820, %v821
        %v823 = vrot.slane %v772, 5
        %v824 = vrot.slane %v823, 4
        %v825 = vrot.slane %v241, 5
        %v826 = vsel %vm794, %v824, %v825
        %v827 = vrot.slane %v825, 4
        %v828 = vrot.slane %v253, 5
        %v829 = vsel %vm794, %v827, %v828
        %v830 = vrot.slane %v773, 5
        %v831 = vrot.slane %v830, 4
        %v832 = vrot.slane %v243, 5
        %v833 = vsel %vm794, %v831, %v832
        %v834 = vrot.slane %v832, 4
        %v835 = vrot.slane %v254, 5
        %v836 = vsel %vm794, %v834, %v835
        %v837 = vrot.slane %v774, 5
        %v838 = vrot.slane %v837, 4
        %v839 = vrot.slane %v245, 5
        %v840 = vsel %vm794, %v838, %v839
        %v841 = vrot.slane %v839, 4
        %v842 = vrot.slane %v255, 5
        %v843 = vsel %vm794, %v841, %v842
        %v844 = vrot.slane %v775, 5
        %v845 = vrot.slane %v844, 4
        %v846 = vrot.slane %v247, 5
        %v847 = vsel %vm794, %v845, %v846
        %v848 = vrot.slane %v846, 4
        %v849 = vrot.slane %v256, 5
        %v850 = vsel %vm794, %v848, %v849
        %s851 = scalar_lea.vmem %s221, 4
        %v852 = vld [vmem:[%s851] sm:$0x3]
        %v853 = vunpack.c.l.b16 %v798
        %v854 = vunpack.c.l.b16 %v801
        %v855 = vunpack.c.l.b16 %v805
        %v856 = vunpack.c.l.b16 %v808
        %v857 = vunpack.c.l.b16 %v812
        %v858 = vunpack.c.l.b16 %v815
        %v859 = vunpack.c.l.b16 %v819
        %v860 = vunpack.c.l.b16 %v822
        %v861 = vunpack.c.l.b16 %v826
        %v862 = vunpack.c.l.b16 %v829
        %v863 = vunpack.c.l.b16 %v833
        %v864 = vunpack.c.l.b16 %v836
        %v865 = vunpack.c.l.b16 %v840
        %v866 = vunpack.c.l.b16 %v843
        %v867 = vunpack.c.l.b16 %v847
        %v868 = vunpack.c.l.b16 %v850
        %v869 = vpack.c.b16 %v854, %v853
        %v870 = vpack.c.b16 %v856, %v855
        %v871 = vpack.c.b16 %v858, %v857
        %v872 = vpack.c.b16 %v860, %v859
        %v873 = vpack.c.b16 %v862, %v861
        %v874 = vpack.c.b16 %v864, %v863
        %v875 = vpack.c.b16 %v866, %v865
        %v876 = vpack.c.b16 %v868, %v867
        %v878 = vsel %vm478, %v869, 0
        %v881 = vsel %vm478, %v870, 0
        %v884 = vsel %vm478, %v871, 0
        %v887 = vsel %vm478, %v872, 0
        %v890 = vsel %vm478, %v873, 0
        %v893 = vsel %vm478, %v874, 0
        %v896 = vsel %vm478, %v875, 0
        %v899 = vsel %vm478, %v876, 0
        %v902 = vsel %vm503, %v852, 0
        %904 = vmatprep.subr.bf16.mxu0 0
        %905 = vmatpush1.bf16.msra.mxu0 0
        %906 = vmatprep.subr.bf16.mxu0 0
        %907 = vmatpush1.bf16.msra.mxu0 0
        %908 = vmatprep.subr.bf16.mxu0 0
        %909 = vmatpush1.bf16.msra.mxu0 0
        %910 = vmatprep.subr.bf16.mxu0 0
        %911 = vmatpush1.bf16.msra.mxu0 0
        %912 = vmatprep.subr.bf16.mxu0 0
        %913 = vmatpush1.bf16.msra.mxu0 0
        %914 = vmatprep.subr.bf16.mxu0 0
        %915 = vmatpush1.bf16.msra.mxu0 0
        %916 = vmatprep.subr.bf16.mxu0 0
        %917 = vmatpush1.bf16.msra.mxu0 0
        %918 = vmatprep.subr.bf16.mxu0 0
        %919 = vmatpush1.bf16.msra.mxu0 %v902
        %920 = vmatprep.subr.bf16.mxu0 0
        %921 = vmatpush2.bf16.msra.mxu0 0
        %922 = vmatprep.subr.bf16.mxu0 0
        %923 = vmatpush2.bf16.msra.mxu0 0
        %924 = vmatprep.subr.bf16.mxu0 0
        %925 = vmatpush2.bf16.msra.mxu0 0
        %926 = vmatprep.subr.bf16.mxu0 0
        %927 = vmatpush2.bf16.msra.mxu0 0
        %928 = vmatprep.subr.bf16.mxu0 0
        %929 = vmatpush2.bf16.msra.mxu0 0
        %930 = vmatprep.subr.bf16.mxu0 0
        %931 = vmatpush2.bf16.msra.mxu0 0
        %932 = vmatprep.subr.bf16.mxu0 0
        %933 = vmatpush2.bf16.msra.mxu0 0
        %934 = vmatprep.subr.bf16.mxu0 0
        %935 = vmatpush2.bf16.msra.mxu0 0
        %936 = vmatprep.mubr.bf16.mxu0 0
        %937 = vmatmul.mubr.bf16.gmra.mxu0 %v878
        %v938 = vpop.f32.mrf.mxu0
        %v939 = vadd.f32 0.0, %v938
        %v940 = vpop.f32.mrf.mxu0
        %v941 = vpop.f32.mrf.mxu0
        %v942 = vadd.f32 0.0, %v941
        %v943 = vpop.f32.mrf.mxu0
        %944 = vmatprep.mubr.bf16.mxu0 0
        %945 = vmatmul.mubr.bf16.gmra.mxu0 %v881
        %v946 = vpop.f32.mrf.mxu0
        %v947 = vadd.f32 0.0, %v946
        %v948 = vpop.f32.mrf.mxu0
        %v949 = vpop.f32.mrf.mxu0
        %v950 = vadd.f32 0.0, %v949
        %v951 = vpop.f32.mrf.mxu0
        %952 = vmatprep.mubr.bf16.mxu0 0
        %953 = vmatmul.mubr.bf16.gmra.mxu0 %v884
        %v954 = vpop.f32.mrf.mxu0
        %v955 = vadd.f32 0.0, %v954
        %v956 = vpop.f32.mrf.mxu0
        %v957 = vpop.f32.mrf.mxu0
        %v958 = vadd.f32 0.0, %v957
        %v959 = vpop.f32.mrf.mxu0
        %960 = vmatprep.mubr.bf16.mxu0 0
        %961 = vmatmul.mubr.bf16.gmra.mxu0 %v887
        %v962 = vpop.f32.mrf.mxu0
        %v963 = vadd.f32 0.0, %v962
        %v964 = vpop.f32.mrf.mxu0
        %v965 = vpop.f32.mrf.mxu0
        %v966 = vadd.f32 0.0, %v965
        %v967 = vpop.f32.mrf.mxu0
        %968 = vmatprep.mubr.bf16.mxu0 0
        %969 = vmatmul.mubr.bf16.gmra.mxu0 %v890
        %v970 = vpop.f32.mrf.mxu0
        %v971 = vadd.f32 0.0, %v970
        %v972 = vpop.f32.mrf.mxu0
        %v973 = vpop.f32.mrf.mxu0
        %v974 = vadd.f32 0.0, %v973
        %v975 = vpop.f32.mrf.mxu0
        %976 = vmatprep.mubr.bf16.mxu0 0
        %977 = vmatmul.mubr.bf16.gmra.mxu0 %v893
        %v978 = vpop.f32.mrf.mxu0
        %v979 = vadd.f32 0.0, %v978
        %v980 = vpop.f32.mrf.mxu0
        %v981 = vpop.f32.mrf.mxu0
        %v982 = vadd.f32 0.0, %v981
        %v983 = vpop.f32.mrf.mxu0
        %984 = vmatprep.mubr.bf16.mxu0 0
        %985 = vmatmul.mubr.bf16.gmra.mxu0 %v896
        %v986 = vpop.f32.mrf.mxu0
        %v987 = vadd.f32 0.0, %v986
        %v988 = vpop.f32.mrf.mxu0
        %v989 = vpop.f32.mrf.mxu0
        %v990 = vadd.f32 0.0, %v989
        %v991 = vpop.f32.mrf.mxu0
        %992 = vmatprep.mubr.bf16.mxu0 0
        %993 = vmatmul.mubr.bf16.gmra.mxu0 %v899
        %v994 = vpop.f32.mrf.mxu0
        %v995 = vadd.f32 0.0, %v994
        %v996 = vpop.f32.mrf.mxu0
        %v997 = vpop.f32.mrf.mxu0
        %v998 = vadd.f32 0.0, %v997
        %v999 = vpop.f32.mrf.mxu0
        %1000 = vdwg.mxu0
        %v1001 = vadd.f32 %v706, %v939
        %v1002 = vadd.f32 %v709, %v942
        %v1003 = vadd.f32 %v714, %v947
        %v1004 = vadd.f32 %v717, %v950
        %v1005 = vadd.f32 %v722, %v955
        %v1006 = vadd.f32 %v725, %v958
        %v1007 = vadd.f32 %v730, %v963
        %v1008 = vadd.f32 %v733, %v966
        %v1009 = vadd.f32 %v738, %v971
        %v1010 = vadd.f32 %v741, %v974
        %v1011 = vadd.f32 %v746, %v979
        %v1012 = vadd.f32 %v749, %v982
        %v1013 = vadd.f32 %v754, %v987
        %v1014 = vadd.f32 %v757, %v990
        %v1015 = vadd.f32 %v762, %v995
        %v1016 = vadd.f32 %v765, %v998
        %s1017 = sadd.s32 %s228, 1
        %s1018 = smul.u32 %s1017, 3
        %s1019 = smul.addr %s1018, 4
        %s1020 = scalar_lea.vmem %s217, %s1019
        %v1021 = vld [vmem:[%s1020] sm:$0xf]
        %v1022 = vld [vmem:[%s1020 + $0x4] sm:$0xf]
        %v1023 = vld [vmem:[%s1020 + $0xc] sm:$0xf]
        %v1024 = vld [vmem:[%s1020 + $0x10] sm:$0xf]
        %v1025 = vld [vmem:[%s1020 + $0x18] sm:$0xf]
        %v1026 = vld [vmem:[%s1020 + $0x1c] sm:$0xf]
        %v1027 = vld [vmem:[%s1020 + $0x24] sm:$0xf]
        %v1028 = vld [vmem:[%s1020 + $0x28] sm:$0xf]
        %v1029 = vld [vmem:[%s1020 + $0x30] sm:$0xf]
        %v1030 = vld [vmem:[%s1020 + $0x34] sm:$0xf]
        %v1031 = vld [vmem:[%s1020 + $0x3c] sm:$0xf]
        %v1032 = vld [vmem:[%s1020 + $0x40] sm:$0xf]
        %v1033 = vld [vmem:[%s1020 + $0x48] sm:$0xf]
        %v1034 = vld [vmem:[%s1020 + $0x4c] sm:$0xf]
        %v1035 = vld [vmem:[%s1020 + $0x54] sm:$0xf]
        %v1036 = vld [vmem:[%s1020 + $0x58] sm:$0xf]
        %s1037 = scalar_lea.vmem %s221, 6
        %v1038 = vld [vmem:[%s1037] sm:$0x3]
        %v1055 = vunpack.c.l.b16 %v1021
        %v1056 = vunpack.c.l.b16 %v1022
        %v1057 = vunpack.c.l.b16 %v1023
        %v1058 = vunpack.c.l.b16 %v1024
        %v1059 = vunpack.c.l.b16 %v1025
        %v1060 = vunpack.c.l.b16 %v1026
        %v1061 = vunpack.c.l.b16 %v1027
        %v1062 = vunpack.c.l.b16 %v1028
        %v1063 = vunpack.c.l.b16 %v1029
        %v1064 = vunpack.c.l.b16 %v1030
        %v1065 = vunpack.c.l.b16 %v1031
        %v1066 = vunpack.c.l.b16 %v1032
        %v1067 = vunpack.c.l.b16 %v1033
        %v1068 = vunpack.c.l.b16 %v1034
        %v1069 = vunpack.c.l.b16 %v1035
        %v1070 = vunpack.c.l.b16 %v1036
        %v1071 = vpack.c.b16 %v1056, %v1055
        %v1072 = vpack.c.b16 %v1058, %v1057
        %v1073 = vpack.c.b16 %v1060, %v1059
        %v1074 = vpack.c.b16 %v1062, %v1061
        %v1075 = vpack.c.b16 %v1064, %v1063
        %v1076 = vpack.c.b16 %v1066, %v1065
        %v1077 = vpack.c.b16 %v1068, %v1067
        %v1078 = vpack.c.b16 %v1070, %v1069
        %v1080 = vsel %vm478, %v1071, 0
        %v1083 = vsel %vm478, %v1072, 0
        %v1086 = vsel %vm478, %v1073, 0
        %v1089 = vsel %vm478, %v1074, 0
        %v1092 = vsel %vm478, %v1075, 0
        %v1095 = vsel %vm478, %v1076, 0
        %v1098 = vsel %vm478, %v1077, 0
        %v1101 = vsel %vm478, %v1078, 0
        %v1104 = vsel %vm503, %v1038, 0
        %1106 = vmatprep.subr.bf16.mxu0 0
        %1107 = vmatpush1.bf16.msra.mxu0 0
        %1108 = vmatprep.subr.bf16.mxu0 0
        %1109 = vmatpush1.bf16.msra.mxu0 0
        %1110 = vmatprep.subr.bf16.mxu0 0
        %1111 = vmatpush1.bf16.msra.mxu0 0
        %1112 = vmatprep.subr.bf16.mxu0 0
        %1113 = vmatpush1.bf16.msra.mxu0 0
        %1114 = vmatprep.subr.bf16.mxu0 0
        %1115 = vmatpush1.bf16.msra.mxu0 0
        %1116 = vmatprep.subr.bf16.mxu0 0
        %1117 = vmatpush1.bf16.msra.mxu0 0
        %1118 = vmatprep.subr.bf16.mxu0 0
        %1119 = vmatpush1.bf16.msra.mxu0 0
        %1120 = vmatprep.subr.bf16.mxu0 0
        %1121 = vmatpush1.bf16.msra.mxu0 %v1104
        %1122 = vmatprep.subr.bf16.mxu0 0
        %1123 = vmatpush2.bf16.msra.mxu0 0
        %1124 = vmatprep.subr.bf16.mxu0 0
        %1125 = vmatpush2.bf16.msra.mxu0 0
        %1126 = vmatprep.subr.bf16.mxu0 0
        %1127 = vmatpush2.bf16.msra.mxu0 0
        %1128 = vmatprep.subr.bf16.mxu0 0
        %1129 = vmatpush2.bf16.msra.mxu0 0
        %1130 = vmatprep.subr.bf16.mxu0 0
        %1131 = vmatpush2.bf16.msra.mxu0 0
        %1132 = vmatprep.subr.bf16.mxu0 0
        %1133 = vmatpush2.bf16.msra.mxu0 0
        %1134 = vmatprep.subr.bf16.mxu0 0
        %1135 = vmatpush2.bf16.msra.mxu0 0
        %1136 = vmatprep.subr.bf16.mxu0 0
        %1137 = vmatpush2.bf16.msra.mxu0 0
        %1138 = vmatprep.mubr.bf16.mxu0 0
        %1139 = vmatmul.mubr.bf16.gmra.mxu0 %v1080
        %v1140 = vpop.f32.mrf.mxu0
        %v1141 = vadd.f32 0.0, %v1140
        %v1142 = vpop.f32.mrf.mxu0
        %v1143 = vpop.f32.mrf.mxu0
        %v1144 = vadd.f32 0.0, %v1143
        %v1145 = vpop.f32.mrf.mxu0
        %1146 = vmatprep.mubr.bf16.mxu0 0
        %1147 = vmatmul.mubr.bf16.gmra.mxu0 %v1083
        %v1148 = vpop.f32.mrf.mxu0
        %v1149 = vadd.f32 0.0, %v1148
        %v1150 = vpop.f32.mrf.mxu0
        %v1151 = vpop.f32.mrf.mxu0
        %v1152 = vadd.f32 0.0, %v1151
        %v1153 = vpop.f32.mrf.mxu0
        %1154 = vmatprep.mubr.bf16.mxu0 0
        %1155 = vmatmul.mubr.bf16.gmra.mxu0 %v1086
        %v1156 = vpop.f32.mrf.mxu0
        %v1157 = vadd.f32 0.0, %v1156
        %v1158 = vpop.f32.mrf.mxu0
        %v1159 = vpop.f32.mrf.mxu0
        %v1160 = vadd.f32 0.0, %v1159
        %v1161 = vpop.f32.mrf.mxu0
        %1162 = vmatprep.mubr.bf16.mxu0 0
        %1163 = vmatmul.mubr.bf16.gmra.mxu0 %v1089
        %v1164 = vpop.f32.mrf.mxu0
        %v1165 = vadd.f32 0.0, %v1164
        %v1166 = vpop.f32.mrf.mxu0
        %v1167 = vpop.f32.mrf.mxu0
        %v1168 = vadd.f32 0.0, %v1167
        %v1169 = vpop.f32.mrf.mxu0
        %1170 = vmatprep.mubr.bf16.mxu0 0
        %1171 = vmatmul.mubr.bf16.gmra.mxu0 %v1092
        %v1172 = vpop.f32.mrf.mxu0
        %v1173 = vadd.f32 0.0, %v1172
        %v1174 = vpop.f32.mrf.mxu0
        %v1175 = vpop.f32.mrf.mxu0
        %v1176 = vadd.f32 0.0, %v1175
        %v1177 = vpop.f32.mrf.mxu0
        %1178 = vmatprep.mubr.bf16.mxu0 0
        %1179 = vmatmul.mubr.bf16.gmra.mxu0 %v1095
        %v1180 = vpop.f32.mrf.mxu0
        %v1181 = vadd.f32 0.0, %v1180
        %v1182 = vpop.f32.mrf.mxu0
        %v1183 = vpop.f32.mrf.mxu0
        %v1184 = vadd.f32 0.0, %v1183
        %v1185 = vpop.f32.mrf.mxu0
        %1186 = vmatprep.mubr.bf16.mxu0 0
        %1187 = vmatmul.mubr.bf16.gmra.mxu0 %v1098
        %v1188 = vpop.f32.mrf.mxu0
        %v1189 = vadd.f32 0.0, %v1188
        %v1190 = vpop.f32.mrf.mxu0
        %v1191 = vpop.f32.mrf.mxu0
        %v1192 = vadd.f32 0.0, %v1191
        %v1193 = vpop.f32.mrf.mxu0
        %1194 = vmatprep.mubr.bf16.mxu0 0
        %1195 = vmatmul.mubr.bf16.gmra.mxu0 %v1101
        %v1196 = vpop.f32.mrf.mxu0
        %v1197 = vadd.f32 0.0, %v1196
        %v1198 = vpop.f32.mrf.mxu0
        %v1199 = vpop.f32.mrf.mxu0
        %v1200 = vadd.f32 0.0, %v1199
        %v1201 = vpop.f32.mrf.mxu0
        %1202 = vdwg.mxu0
        %v1203 = vadd.f32 %v1001, %v1141
        %v1204 = vadd.f32 %v1002, %v1144
        %v1205 = vadd.f32 %v1003, %v1149
        %v1206 = vadd.f32 %v1004, %v1152
        %v1207 = vadd.f32 %v1005, %v1157
        %v1208 = vadd.f32 %v1006, %v1160
        %v1209 = vadd.f32 %v1007, %v1165
        %v1210 = vadd.f32 %v1008, %v1168
        %v1211 = vadd.f32 %v1009, %v1173
        %v1212 = vadd.f32 %v1010, %v1176
        %v1213 = vadd.f32 %v1011, %v1181
        %v1214 = vadd.f32 %v1012, %v1184
        %v1215 = vadd.f32 %v1013, %v1189
        %v1216 = vadd.f32 %v1014, %v1192
        %v1217 = vadd.f32 %v1015, %v1197
        %v1218 = vadd.f32 %v1016, %v1200
        %v1219 = vld [vmem:[%s1020] sm:$0xf]
        %v1220 = vld [vmem:[%s1020 + $0x4] sm:$0xf]
        %v1221 = vld [vmem:[%s1020 + $0x8] sm:$0x1]
        %v1222 = vld [vmem:[%s1020 + $0xc] sm:$0xf]
        %v1223 = vld [vmem:[%s1020 + $0x10] sm:$0xf]
        %v1224 = vld [vmem:[%s1020 + $0x14] sm:$0x1]
        %v1225 = vld [vmem:[%s1020 + $0x18] sm:$0xf]
        %v1226 = vld [vmem:[%s1020 + $0x1c] sm:$0xf]
        %v1227 = vld [vmem:[%s1020 + $0x20] sm:$0x1]
        %v1228 = vld [vmem:[%s1020 + $0x24] sm:$0xf]
        %v1229 = vld [vmem:[%s1020 + $0x28] sm:$0xf]
        %v1230 = vld [vmem:[%s1020 + $0x2c] sm:$0x1]
        %v1231 = vld [vmem:[%s1020 + $0x30] sm:$0xf]
        %v1232 = vld [vmem:[%s1020 + $0x34] sm:$0xf]
        %v1233 = vld [vmem:[%s1020 + $0x38] sm:$0x1]
        %v1234 = vld [vmem:[%s1020 + $0x3c] sm:$0xf]
        %v1235 = vld [vmem:[%s1020 + $0x40] sm:$0xf]
        %v1236 = vld [vmem:[%s1020 + $0x44] sm:$0x1]
        %v1237 = vld [vmem:[%s1020 + $0x48] sm:$0xf]
        %v1238 = vld [vmem:[%s1020 + $0x4c] sm:$0xf]
        %v1239 = vld [vmem:[%s1020 + $0x50] sm:$0x1]
        %v1240 = vld [vmem:[%s1020 + $0x54] sm:$0xf]
        %v1241 = vld [vmem:[%s1020 + $0x58] sm:$0xf]
        %v1242 = vld [vmem:[%s1020 + $0x5c] sm:$0x1]
        %v1244 = vshrl.u32 %v1219, 16
        %v1246 = vrot.slane %v1244, 4
        %v1247 = vshll.u32 %v1219, 16
        %v1249 = vrot.slane %v1247, 5
        %v1250 = vor.u32 %v1246, %v1249
        %v1251 = vrot.slane %v1250, 4
        %v1253 = vshll.u32 %v1220, 16
        %v1255 = vrot.slane %v1253, 5
        %v1256 = vsel %vm259, %v1251, %v1255
        %v1257 = vshrl.u32 %v1220, 16
        %v1259 = vrot.slane %v1257, 4
        %v1260 = vor.u32 %v1259, %v1255
        %v1261 = vrot.slane %v1260, 4
        %v1263 = vshll.u32 %v1221, 16
        %v1265 = vrot.slane %v1263, 5
        %v1266 = vsel %vm259, %v1261, %v1265
        %v1268 = vshrl.u32 %v1222, 16
        %v1270 = vrot.slane %v1268, 4
        %v1271 = vshll.u32 %v1222, 16
        %v1273 = vrot.slane %v1271, 5
        %v1274 = vor.u32 %v1270, %v1273
        %v1275 = vrot.slane %v1274, 4
        %v1277 = vshll.u32 %v1223, 16
        %v1279 = vrot.slane %v1277, 5
        %v1280 = vsel %vm259, %v1275, %v1279
        %v1281 = vshrl.u32 %v1223, 16
        %v1283 = vrot.slane %v1281, 4
        %v1284 = vor.u32 %v1283, %v1279
        %v1285 = vrot.slane %v1284, 4
        %v1287 = vshll.u32 %v1224, 16
        %v1289 = vrot.slane %v1287, 5
        %v1290 = vsel %vm259, %v1285, %v1289
        %v1292 = vshrl.u32 %v1225, 16
        %v1294 = vrot.slane %v1292, 4
        %v1295 = vshll.u32 %v1225, 16
        %v1297 = vrot.slane %v1295, 5
        %v1298 = vor.u32 %v1294, %v1297
        %v1299 = vrot.slane %v1298, 4
        %v1301 = vshll.u32 %v1226, 16
        %v1303 = vrot.slane %v1301, 5
        %v1304 = vsel %vm259, %v1299, %v1303
        %v1305 = vshrl.u32 %v1226, 16
        %v1307 = vrot.slane %v1305, 4
        %v1308 = vor.u32 %v1307, %v1303
        %v1309 = vrot.slane %v1308, 4
        %v1311 = vshll.u32 %v1227, 16
        %v1313 = vrot.slane %v1311, 5
        %v1314 = vsel %vm259, %v1309, %v1313
        %v1316 = vshrl.u32 %v1228, 16
        %v1318 = vrot.slane %v1316, 4
        %v1319 = vshll.u32 %v1228, 16
        %v1321 = vrot.slane %v1319, 5
        %v1322 = vor.u32 %v1318, %v1321
        %v1323 = vrot.slane %v1322, 4
        %v1325 = vshll.u32 %v1229, 16
        %v1327 = vrot.slane %v1325, 5
        %v1328 = vsel %vm259, %v1323, %v1327
        %v1329 = vshrl.u32 %v1229, 16
        %v1331 = vrot.slane %v1329, 4
        %v1332 = vor.u32 %v1331, %v1327
        %v1333 = vrot.slane %v1332, 4
        %v1335 = vshll.u32 %v1230, 16
        %v1337 = vrot.slane %v1335, 5
        %v1338 = vsel %vm259, %v1333, %v1337
        %v1340 = vshrl.u32 %v1231, 16
        %v1342 = vrot.slane %v1340, 4
        %v1343 = vshll.u32 %v1231, 16
        %v1345 = vrot.slane %v1343, 5
        %v1346 = vor.u32 %v1342, %v1345
        %v1347 = vrot.slane %v1346, 4
        %v1349 = vshll.u32 %v1232, 16
        %v1351 = vrot.slane %v1349, 5
        %v1352 = vsel %vm259, %v1347, %v1351
        %v1353 = vshrl.u32 %v1232, 16
        %v1355 = vrot.slane %v1353, 4
        %v1356 = vor.u32 %v1355, %v1351
        %v1357 = vrot.slane %v1356, 4
        %v1359 = vshll.u32 %v1233, 16
        %v1361 = vrot.slane %v1359, 5
        %v1362 = vsel %vm259, %v1357, %v1361
        %v1364 = vshrl.u32 %v1234, 16
        %v1366 = vrot.slane %v1364, 4
        %v1367 = vshll.u32 %v1234, 16
        %v1369 = vrot.slane %v1367, 5
        %v1370 = vor.u32 %v1366, %v1369
        %v1371 = vrot.slane %v1370, 4
        %v1373 = vshll.u32 %v1235, 16
        %v1375 = vrot.slane %v1373, 5
        %v1376 = vsel %vm259, %v1371, %v1375
        %v1377 = vshrl.u32 %v1235, 16
        %v1379 = vrot.slane %v1377, 4
        %v1380 = vor.u32 %v1379, %v1375
        %v1381 = vrot.slane %v1380, 4
        %v1383 = vshll.u32 %v1236, 16
        %v1385 = vrot.slane %v1383, 5
        %v1386 = vsel %vm259, %v1381, %v1385
        %v1388 = vshrl.u32 %v1237, 16
        %v1390 = vrot.slane %v1388, 4
        %v1391 = vshll.u32 %v1237, 16
        %v1393 = vrot.slane %v1391, 5
        %v1394 = vor.u32 %v1390, %v1393
        %v1395 = vrot.slane %v1394, 4
        %v1397 = vshll.u32 %v1238, 16
        %v1399 = vrot.slane %v1397, 5
        %v1400 = vsel %vm259, %v1395, %v1399
        %v1401 = vshrl.u32 %v1238, 16
        %v1403 = vrot.slane %v1401, 4
        %v1404 = vor.u32 %v1403, %v1399
        %v1405 = vrot.slane %v1404, 4
        %v1407 = vshll.u32 %v1239, 16
        %v1409 = vrot.slane %v1407, 5
        %v1410 = vsel %vm259, %v1405, %v1409
        %v1412 = vshrl.u32 %v1240, 16
        %v1414 = vrot.slane %v1412, 4
        %v1415 = vshll.u32 %v1240, 16
        %v1417 = vrot.slane %v1415, 5
        %v1418 = vor.u32 %v1414, %v1417
        %v1419 = vrot.slane %v1418, 4
        %v1421 = vshll.u32 %v1241, 16
        %v1423 = vrot.slane %v1421, 5
        %v1424 = vsel %vm259, %v1419, %v1423
        %v1425 = vshrl.u32 %v1241, 16
        %v1427 = vrot.slane %v1425, 4
        %v1428 = vor.u32 %v1427, %v1423
        %v1429 = vrot.slane %v1428, 4
        %v1431 = vshll.u32 %v1242, 16
        %v1433 = vrot.slane %v1431, 5
        %v1434 = vsel %vm259, %v1429, %v1433
        %s1435 = scalar_lea.vmem %s221, 8
        %v1436 = vld [vmem:[%s1435] sm:$0x3]
        %v1437 = vunpack.c.l.b16 %v1256
        %v1438 = vunpack.c.l.b16 %v1266
        %v1439 = vunpack.c.l.b16 %v1280
        %v1440 = vunpack.c.l.b16 %v1290
        %v1441 = vunpack.c.l.b16 %v1304
        %v1442 = vunpack.c.l.b16 %v1314
        %v1443 = vunpack.c.l.b16 %v1328
        %v1444 = vunpack.c.l.b16 %v1338
        %v1445 = vunpack.c.l.b16 %v1352
        %v1446 = vunpack.c.l.b16 %v1362
        %v1447 = vunpack.c.l.b16 %v1376
        %v1448 = vunpack.c.l.b16 %v1386
        %v1449 = vunpack.c.l.b16 %v1400
        %v1450 = vunpack.c.l.b16 %v1410
        %v1451 = vunpack.c.l.b16 %v1424
        %v1452 = vunpack.c.l.b16 %v1434
        %v1453 = vpack.c.b16 %v1438, %v1437
        %v1454 = vpack.c.b16 %v1440, %v1439
        %v1455 = vpack.c.b16 %v1442, %v1441
        %v1456 = vpack.c.b16 %v1444, %v1443
        %v1457 = vpack.c.b16 %v1446, %v1445
        %v1458 = vpack.c.b16 %v1448, %v1447
        %v1459 = vpack.c.b16 %v1450, %v1449
        %v1460 = vpack.c.b16 %v1452, %v1451
        %v1462 = vsel %vm478, %v1453, 0
        %v1465 = vsel %vm478, %v1454, 0
        %v1468 = vsel %vm478, %v1455, 0
        %v1471 = vsel %vm478, %v1456, 0
        %v1474 = vsel %vm478, %v1457, 0
        %v1477 = vsel %vm478, %v1458, 0
        %v1480 = vsel %vm478, %v1459, 0
        %v1483 = vsel %vm478, %v1460, 0
        %v1486 = vsel %vm503, %v1436, 0
        %1488 = vmatprep.subr.bf16.mxu0 0
        %1489 = vmatpush1.bf16.msra.mxu0 0
        %1490 = vmatprep.subr.bf16.mxu0 0
        %1491 = vmatpush1.bf16.msra.mxu0 0
        %1492 = vmatprep.subr.bf16.mxu0 0
        %1493 = vmatpush1.bf16.msra.mxu0 0
        %1494 = vmatprep.subr.bf16.mxu0 0
        %1495 = vmatpush1.bf16.msra.mxu0 0
        %1496 = vmatprep.subr.bf16.mxu0 0
        %1497 = vmatpush1.bf16.msra.mxu0 0
        %1498 = vmatprep.subr.bf16.mxu0 0
        %1499 = vmatpush1.bf16.msra.mxu0 0
        %1500 = vmatprep.subr.bf16.mxu0 0
        %1501 = vmatpush1.bf16.msra.mxu0 0
        %1502 = vmatprep.subr.bf16.mxu0 0
        %1503 = vmatpush1.bf16.msra.mxu0 %v1486
        %1504 = vmatprep.subr.bf16.mxu0 0
        %1505 = vmatpush2.bf16.msra.mxu0 0
        %1506 = vmatprep.subr.bf16.mxu0 0
        %1507 = vmatpush2.bf16.msra.mxu0 0
        %1508 = vmatprep.subr.bf16.mxu0 0
        %1509 = vmatpush2.bf16.msra.mxu0 0
        %1510 = vmatprep.subr.bf16.mxu0 0
        %1511 = vmatpush2.bf16.msra.mxu0 0
        %1512 = vmatprep.subr.bf16.mxu0 0
        %1513 = vmatpush2.bf16.msra.mxu0 0
        %1514 = vmatprep.subr.bf16.mxu0 0
        %1515 = vmatpush2.bf16.msra.mxu0 0
        %1516 = vmatprep.subr.bf16.mxu0 0
        %1517 = vmatpush2.bf16.msra.mxu0 0
        %1518 = vmatprep.subr.bf16.mxu0 0
        %1519 = vmatpush2.bf16.msra.mxu0 0
        %1520 = vmatprep.mubr.bf16.mxu0 0
        %1521 = vmatmul.mubr.bf16.gmra.mxu0 %v1462
        %v1522 = vpop.f32.mrf.mxu0
        %v1523 = vadd.f32 0.0, %v1522
        %v1524 = vpop.f32.mrf.mxu0
        %v1525 = vpop.f32.mrf.mxu0
        %v1526 = vadd.f32 0.0, %v1525
        %v1527 = vpop.f32.mrf.mxu0
        %1528 = vmatprep.mubr.bf16.mxu0 0
        %1529 = vmatmul.mubr.bf16.gmra.mxu0 %v1465
        %v1530 = vpop.f32.mrf.mxu0
        %v1531 = vadd.f32 0.0, %v1530
        %v1532 = vpop.f32.mrf.mxu0
        %v1533 = vpop.f32.mrf.mxu0
        %v1534 = vadd.f32 0.0, %v1533
        %v1535 = vpop.f32.mrf.mxu0
        %1536 = vmatprep.mubr.bf16.mxu0 0
        %1537 = vmatmul.mubr.bf16.gmra.mxu0 %v1468
        %v1538 = vpop.f32.mrf.mxu0
        %v1539 = vadd.f32 0.0, %v1538
        %v1540 = vpop.f32.mrf.mxu0
        %v1541 = vpop.f32.mrf.mxu0
        %v1542 = vadd.f32 0.0, %v1541
        %v1543 = vpop.f32.mrf.mxu0
        %1544 = vmatprep.mubr.bf16.mxu0 0
        %1545 = vmatmul.mubr.bf16.gmra.mxu0 %v1471
        %v1546 = vpop.f32.mrf.mxu0
        %v1547 = vadd.f32 0.0, %v1546
        %v1548 = vpop.f32.mrf.mxu0
        %v1549 = vpop.f32.mrf.mxu0
        %v1550 = vadd.f32 0.0, %v1549
        %v1551 = vpop.f32.mrf.mxu0
        %1552 = vmatprep.mubr.bf16.mxu0 0
        %1553 = vmatmul.mubr.bf16.gmra.mxu0 %v1474
        %v1554 = vpop.f32.mrf.mxu0
        %v1555 = vadd.f32 0.0, %v1554
        %v1556 = vpop.f32.mrf.mxu0
        %v1557 = vpop.f32.mrf.mxu0
        %v1558 = vadd.f32 0.0, %v1557
        %v1559 = vpop.f32.mrf.mxu0
        %1560 = vmatprep.mubr.bf16.mxu0 0
        %1561 = vmatmul.mubr.bf16.gmra.mxu0 %v1477
        %v1562 = vpop.f32.mrf.mxu0
        %v1563 = vadd.f32 0.0, %v1562
        %v1564 = vpop.f32.mrf.mxu0
        %v1565 = vpop.f32.mrf.mxu0
        %v1566 = vadd.f32 0.0, %v1565
        %v1567 = vpop.f32.mrf.mxu0
        %1568 = vmatprep.mubr.bf16.mxu0 0
        %1569 = vmatmul.mubr.bf16.gmra.mxu0 %v1480
        %v1570 = vpop.f32.mrf.mxu0
        %v1571 = vadd.f32 0.0, %v1570
        %v1572 = vpop.f32.mrf.mxu0
        %v1573 = vpop.f32.mrf.mxu0
        %v1574 = vadd.f32 0.0, %v1573
        %v1575 = vpop.f32.mrf.mxu0
        %1576 = vmatprep.mubr.bf16.mxu0 0
        %1577 = vmatmul.mubr.bf16.gmra.mxu0 %v1483
        %v1578 = vpop.f32.mrf.mxu0
        %v1579 = vadd.f32 0.0, %v1578
        %v1580 = vpop.f32.mrf.mxu0
        %v1581 = vpop.f32.mrf.mxu0
        %v1582 = vadd.f32 0.0, %v1581
        %v1583 = vpop.f32.mrf.mxu0
        %1584 = vdwg.mxu0
        %v1585 = vadd.f32 %v1203, %v1523
        %v1586 = vadd.f32 %v1204, %v1526
        %v1587 = vadd.f32 %v1205, %v1531
        %v1588 = vadd.f32 %v1206, %v1534
        %v1589 = vadd.f32 %v1207, %v1539
        %v1590 = vadd.f32 %v1208, %v1542
        %v1591 = vadd.f32 %v1209, %v1547
        %v1592 = vadd.f32 %v1210, %v1550
        %v1593 = vadd.f32 %v1211, %v1555
        %v1594 = vadd.f32 %v1212, %v1558
        %v1595 = vadd.f32 %v1213, %v1563
        %v1596 = vadd.f32 %v1214, %v1566
        %v1597 = vadd.f32 %v1215, %v1571
        %v1598 = vadd.f32 %v1216, %v1574
        %v1599 = vadd.f32 %v1217, %v1579
        %v1600 = vadd.f32 %v1218, %v1582
        %v1601 = vld [vmem:[%s1020] sm:$0xe]
        %v1602 = vld [vmem:[%s1020 + $0xc] sm:$0xe]
        %v1603 = vld [vmem:[%s1020 + $0x18] sm:$0xe]
        %v1604 = vld [vmem:[%s1020 + $0x24] sm:$0xe]
        %v1605 = vld [vmem:[%s1020 + $0x30] sm:$0xe]
        %v1606 = vld [vmem:[%s1020 + $0x3c] sm:$0xe]
        %v1607 = vld [vmem:[%s1020 + $0x48] sm:$0xe]
        %v1608 = vld [vmem:[%s1020 + $0x54] sm:$0xe]
        %v1633 = vrot.slane %v1601, 5
        %v1634 = vrot.slane %v1633, 4
        %v1635 = vrot.slane %v1220, 5
        %v1636 = vsel %vm794, %v1634, %v1635
        %v1637 = vrot.slane %v1635, 4
        %v1638 = vrot.slane %v1221, 5
        %v1639 = vsel %vm794, %v1637, %v1638
        %v1640 = vrot.slane %v1602, 5
        %v1641 = vrot.slane %v1640, 4
        %v1642 = vrot.slane %v1223, 5
        %v1643 = vsel %vm794, %v1641, %v1642
        %v1644 = vrot.slane %v1642, 4
        %v1645 = vrot.slane %v1224, 5
        %v1646 = vsel %vm794, %v1644, %v1645
        %v1647 = vrot.slane %v1603, 5
        %v1648 = vrot.slane %v1647, 4
        %v1649 = vrot.slane %v1226, 5
        %v1650 = vsel %vm794, %v1648, %v1649
        %v1651 = vrot.slane %v1649, 4
        %v1652 = vrot.slane %v1227, 5
        %v1653 = vsel %vm794, %v1651, %v1652
        %v1654 = vrot.slane %v1604, 5
        %v1655 = vrot.slane %v1654, 4
        %v1656 = vrot.slane %v1229, 5
        %v1657 = vsel %vm794, %v1655, %v1656
        %v1658 = vrot.slane %v1656, 4
        %v1659 = vrot.slane %v1230, 5
        %v1660 = vsel %vm794, %v1658, %v1659
        %v1661 = vrot.slane %v1605, 5
        %v1662 = vrot.slane %v1661, 4
        %v1663 = vrot.slane %v1232, 5
        %v1664 = vsel %vm794, %v1662, %v1663
        %v1665 = vrot.slane %v1663, 4
        %v1666 = vrot.slane %v1233, 5
        %v1667 = vsel %vm794, %v1665, %v1666
        %v1668 = vrot.slane %v1606, 5
        %v1669 = vrot.slane %v1668, 4
        %v1670 = vrot.slane %v1235, 5
        %v1671 = vsel %vm794, %v1669, %v1670
        %v1672 = vrot.slane %v1670, 4
        %v1673 = vrot.slane %v1236, 5
        %v1674 = vsel %vm794, %v1672, %v1673
        %v1675 = vrot.slane %v1607, 5
        %v1676 = vrot.slane %v1675, 4
        %v1677 = vrot.slane %v1238, 5
        %v1678 = vsel %vm794, %v1676, %v1677
        %v1679 = vrot.slane %v1677, 4
        %v1680 = vrot.slane %v1239, 5
        %v1681 = vsel %vm794, %v1679, %v1680
        %v1682 = vrot.slane %v1608, 5
        %v1683 = vrot.slane %v1682, 4
        %v1684 = vrot.slane %v1241, 5
        %v1685 = vsel %vm794, %v1683, %v1684
        %v1686 = vrot.slane %v1684, 4
        %v1687 = vrot.slane %v1242, 5
        %v1688 = vsel %vm794, %v1686, %v1687
        %s1689 = scalar_lea.vmem %s221, 10
        %v1690 = vld [vmem:[%s1689] sm:$0x3]
        %v1691 = vunpack.c.l.b16 %v1636
        %v1692 = vunpack.c.l.b16 %v1639
        %v1693 = vunpack.c.l.b16 %v1643
        %v1694 = vunpack.c.l.b16 %v1646
        %v1695 = vunpack.c.l.b16 %v1650
        %v1696 = vunpack.c.l.b16 %v1653
        %v1697 = vunpack.c.l.b16 %v1657
        %v1698 = vunpack.c.l.b16 %v1660
        %v1699 = vunpack.c.l.b16 %v1664
        %v1700 = vunpack.c.l.b16 %v1667
        %v1701 = vunpack.c.l.b16 %v1671
        %v1702 = vunpack.c.l.b16 %v1674
        %v1703 = vunpack.c.l.b16 %v1678
        %v1704 = vunpack.c.l.b16 %v1681
        %v1705 = vunpack.c.l.b16 %v1685
        %v1706 = vunpack.c.l.b16 %v1688
        %v1707 = vpack.c.b16 %v1692, %v1691
        %v1708 = vpack.c.b16 %v1694, %v1693
        %v1709 = vpack.c.b16 %v1696, %v1695
        %v1710 = vpack.c.b16 %v1698, %v1697
        %v1711 = vpack.c.b16 %v1700, %v1699
        %v1712 = vpack.c.b16 %v1702, %v1701
        %v1713 = vpack.c.b16 %v1704, %v1703
        %v1714 = vpack.c.b16 %v1706, %v1705
        %v1716 = vsel %vm478, %v1707, 0
        %v1719 = vsel %vm478, %v1708, 0
        %v1722 = vsel %vm478, %v1709, 0
        %v1725 = vsel %vm478, %v1710, 0
        %v1728 = vsel %vm478, %v1711, 0
        %v1731 = vsel %vm478, %v1712, 0
        %v1734 = vsel %vm478, %v1713, 0
        %v1737 = vsel %vm478, %v1714, 0
        %v1740 = vsel %vm503, %v1690, 0
        %1742 = vmatprep.subr.bf16.mxu0 0
        %1743 = vmatpush1.bf16.msra.mxu0 0
        %1744 = vmatprep.subr.bf16.mxu0 0
        %1745 = vmatpush1.bf16.msra.mxu0 0
        %1746 = vmatprep.subr.bf16.mxu0 0
        %1747 = vmatpush1.bf16.msra.mxu0 0
        %1748 = vmatprep.subr.bf16.mxu0 0
        %1749 = vmatpush1.bf16.msra.mxu0 0
        %1750 = vmatprep.subr.bf16.mxu0 0
        %1751 = vmatpush1.bf16.msra.mxu0 0
        %1752 = vmatprep.subr.bf16.mxu0 0
        %1753 = vmatpush1.bf16.msra.mxu0 0
        %1754 = vmatprep.subr.bf16.mxu0 0
        %1755 = vmatpush1.bf16.msra.mxu0 0
        %1756 = vmatprep.subr.bf16.mxu0 0
        %1757 = vmatpush1.bf16.msra.mxu0 %v1740
        %1758 = vmatprep.subr.bf16.mxu0 0
        %1759 = vmatpush2.bf16.msra.mxu0 0
        %1760 = vmatprep.subr.bf16.mxu0 0
        %1761 = vmatpush2.bf16.msra.mxu0 0
        %1762 = vmatprep.subr.bf16.mxu0 0
        %1763 = vmatpush2.bf16.msra.mxu0 0
        %1764 = vmatprep.subr.bf16.mxu0 0
        %1765 = vmatpush2.bf16.msra.mxu0 0
        %1766 = vmatprep.subr.bf16.mxu0 0
        %1767 = vmatpush2.bf16.msra.mxu0 0
        %1768 = vmatprep.subr.bf16.mxu0 0
        %1769 = vmatpush2.bf16.msra.mxu0 0
        %1770 = vmatprep.subr.bf16.mxu0 0
        %1771 = vmatpush2.bf16.msra.mxu0 0
        %1772 = vmatprep.subr.bf16.mxu0 0
        %1773 = vmatpush2.bf16.msra.mxu0 0
        %1774 = vmatprep.mubr.bf16.mxu0 0
        %1775 = vmatmul.mubr.bf16.gmra.mxu0 %v1716
        %v1776 = vpop.f32.mrf.mxu0
        %v1777 = vadd.f32 0.0, %v1776
        %v1778 = vpop.f32.mrf.mxu0
        %v1779 = vpop.f32.mrf.mxu0
        %v1780 = vadd.f32 0.0, %v1779
        %v1781 = vpop.f32.mrf.mxu0
        %1782 = vmatprep.mubr.bf16.mxu0 0
        %1783 = vmatmul.mubr.bf16.gmra.mxu0 %v1719
        %v1784 = vpop.f32.mrf.mxu0
        %v1785 = vadd.f32 0.0, %v1784
        %v1786 = vpop.f32.mrf.mxu0
        %v1787 = vpop.f32.mrf.mxu0
        %v1788 = vadd.f32 0.0, %v1787
        %v1789 = vpop.f32.mrf.mxu0
        %1790 = vmatprep.mubr.bf16.mxu0 0
        %1791 = vmatmul.mubr.bf16.gmra.mxu0 %v1722
        %v1792 = vpop.f32.mrf.mxu0
        %v1793 = vadd.f32 0.0, %v1792
        %v1794 = vpop.f32.mrf.mxu0
        %v1795 = vpop.f32.mrf.mxu0
        %v1796 = vadd.f32 0.0, %v1795
        %v1797 = vpop.f32.mrf.mxu0
        %1798 = vmatprep.mubr.bf16.mxu0 0
        %1799 = vmatmul.mubr.bf16.gmra.mxu0 %v1725
        %v1800 = vpop.f32.mrf.mxu0
        %v1801 = vadd.f32 0.0, %v1800
        %v1802 = vpop.f32.mrf.mxu0
        %v1803 = vpop.f32.mrf.mxu0
        %v1804 = vadd.f32 0.0, %v1803
        %v1805 = vpop.f32.mrf.mxu0
        %1806 = vmatprep.mubr.bf16.mxu0 0
        %1807 = vmatmul.mubr.bf16.gmra.mxu0 %v1728
        %v1808 = vpop.f32.mrf.mxu0
        %v1809 = vadd.f32 0.0, %v1808
        %v1810 = vpop.f32.mrf.mxu0
        %v1811 = vpop.f32.mrf.mxu0
        %v1812 = vadd.f32 0.0, %v1811
        %v1813 = vpop.f32.mrf.mxu0
        %1814 = vmatprep.mubr.bf16.mxu0 0
        %1815 = vmatmul.mubr.bf16.gmra.mxu0 %v1731
        %v1816 = vpop.f32.mrf.mxu0
        %v1817 = vadd.f32 0.0, %v1816
        %v1818 = vpop.f32.mrf.mxu0
        %v1819 = vpop.f32.mrf.mxu0
        %v1820 = vadd.f32 0.0, %v1819
        %v1821 = vpop.f32.mrf.mxu0
        %1822 = vmatprep.mubr.bf16.mxu0 0
        %1823 = vmatmul.mubr.bf16.gmra.mxu0 %v1734
        %v1824 = vpop.f32.mrf.mxu0
        %v1825 = vadd.f32 0.0, %v1824
        %v1826 = vpop.f32.mrf.mxu0
        %v1827 = vpop.f32.mrf.mxu0
        %v1828 = vadd.f32 0.0, %v1827
        %v1829 = vpop.f32.mrf.mxu0
        %1830 = vmatprep.mubr.bf16.mxu0 0
        %1831 = vmatmul.mubr.bf16.gmra.mxu0 %v1737
        %v1832 = vpop.f32.mrf.mxu0
        %v1833 = vadd.f32 0.0, %v1832
        %v1834 = vpop.f32.mrf.mxu0
        %v1835 = vpop.f32.mrf.mxu0
        %v1836 = vadd.f32 0.0, %v1835
        %v1837 = vpop.f32.mrf.mxu0
        %1838 = vdwg.mxu0
        %v1839 = vadd.f32 %v1585, %v1777
        %v1840 = vadd.f32 %v1586, %v1780
        %v1841 = vadd.f32 %v1587, %v1785
        %v1842 = vadd.f32 %v1588, %v1788
        %v1843 = vadd.f32 %v1589, %v1793
        %v1844 = vadd.f32 %v1590, %v1796
        %v1845 = vadd.f32 %v1591, %v1801
        %v1846 = vadd.f32 %v1592, %v1804
        %v1847 = vadd.f32 %v1593, %v1809
        %v1848 = vadd.f32 %v1594, %v1812
        %v1849 = vadd.f32 %v1595, %v1817
        %v1850 = vadd.f32 %v1596, %v1820
        %v1851 = vadd.f32 %v1597, %v1825
        %v1852 = vadd.f32 %v1598, %v1828
        %v1853 = vadd.f32 %v1599, %v1833
        %v1854 = vadd.f32 %v1600, %v1836
        %s1855 = sadd.s32 %s228, 2
        %s1856 = smul.u32 %s1855, 3
        %s1857 = smul.addr %s1856, 4
        %s1858 = scalar_lea.vmem %s217, %s1857
        %v1859 = vld [vmem:[%s1858] sm:$0xf]
        %v1860 = vld [vmem:[%s1858 + $0x4] sm:$0xf]
        %v1861 = vld [vmem:[%s1858 + $0xc] sm:$0xf]
        %v1862 = vld [vmem:[%s1858 + $0x10] sm:$0xf]
        %v1863 = vld [vmem:[%s1858 + $0x18] sm:$0xf]
        %v1864 = vld [vmem:[%s1858 + $0x1c] sm:$0xf]
        %v1865 = vld [vmem:[%s1858 + $0x24] sm:$0xf]
        %v1866 = vld [vmem:[%s1858 + $0x28] sm:$0xf]
        %v1867 = vld [vmem:[%s1858 + $0x30] sm:$0xf]
        %v1868 = vld [vmem:[%s1858 + $0x34] sm:$0xf]
        %v1869 = vld [vmem:[%s1858 + $0x3c] sm:$0xf]
        %v1870 = vld [vmem:[%s1858 + $0x40] sm:$0xf]
        %v1871 = vld [vmem:[%s1858 + $0x48] sm:$0xf]
        %v1872 = vld [vmem:[%s1858 + $0x4c] sm:$0xf]
        %v1873 = vld [vmem:[%s1858 + $0x54] sm:$0xf]
        %v1874 = vld [vmem:[%s1858 + $0x58] sm:$0xf]
        %s1875 = scalar_lea.vmem %s221, 12
        %v1876 = vld [vmem:[%s1875] sm:$0x3]
        %v1893 = vunpack.c.l.b16 %v1859
        %v1894 = vunpack.c.l.b16 %v1860
        %v1895 = vunpack.c.l.b16 %v1861
        %v1896 = vunpack.c.l.b16 %v1862
        %v1897 = vunpack.c.l.b16 %v1863
        %v1898 = vunpack.c.l.b16 %v1864
        %v1899 = vunpack.c.l.b16 %v1865
        %v1900 = vunpack.c.l.b16 %v1866
        %v1901 = vunpack.c.l.b16 %v1867
        %v1902 = vunpack.c.l.b16 %v1868
        %v1903 = vunpack.c.l.b16 %v1869
        %v1904 = vunpack.c.l.b16 %v1870
        %v1905 = vunpack.c.l.b16 %v1871
        %v1906 = vunpack.c.l.b16 %v1872
        %v1907 = vunpack.c.l.b16 %v1873
        %v1908 = vunpack.c.l.b16 %v1874
        %v1909 = vpack.c.b16 %v1894, %v1893
        %v1910 = vpack.c.b16 %v1896, %v1895
        %v1911 = vpack.c.b16 %v1898, %v1897
        %v1912 = vpack.c.b16 %v1900, %v1899
        %v1913 = vpack.c.b16 %v1902, %v1901
        %v1914 = vpack.c.b16 %v1904, %v1903
        %v1915 = vpack.c.b16 %v1906, %v1905
        %v1916 = vpack.c.b16 %v1908, %v1907
        %v1918 = vsel %vm478, %v1909, 0
        %v1921 = vsel %vm478, %v1910, 0
        %v1924 = vsel %vm478, %v1911, 0
        %v1927 = vsel %vm478, %v1912, 0
        %v1930 = vsel %vm478, %v1913, 0
        %v1933 = vsel %vm478, %v1914, 0
        %v1936 = vsel %vm478, %v1915, 0
        %v1939 = vsel %vm478, %v1916, 0
        %v1942 = vsel %vm503, %v1876, 0
        %1944 = vmatprep.subr.bf16.mxu0 0
        %1945 = vmatpush1.bf16.msra.mxu0 0
        %1946 = vmatprep.subr.bf16.mxu0 0
        %1947 = vmatpush1.bf16.msra.mxu0 0
        %1948 = vmatprep.subr.bf16.mxu0 0
        %1949 = vmatpush1.bf16.msra.mxu0 0
        %1950 = vmatprep.subr.bf16.mxu0 0
        %1951 = vmatpush1.bf16.msra.mxu0 0
        %1952 = vmatprep.subr.bf16.mxu0 0
        %1953 = vmatpush1.bf16.msra.mxu0 0
        %1954 = vmatprep.subr.bf16.mxu0 0
        %1955 = vmatpush1.bf16.msra.mxu0 0
        %1956 = vmatprep.subr.bf16.mxu0 0
        %1957 = vmatpush1.bf16.msra.mxu0 0
        %1958 = vmatprep.subr.bf16.mxu0 0
        %1959 = vmatpush1.bf16.msra.mxu0 %v1942
        %1960 = vmatprep.subr.bf16.mxu0 0
        %1961 = vmatpush2.bf16.msra.mxu0 0
        %1962 = vmatprep.subr.bf16.mxu0 0
        %1963 = vmatpush2.bf16.msra.mxu0 0
        %1964 = vmatprep.subr.bf16.mxu0 0
        %1965 = vmatpush2.bf16.msra.mxu0 0
        %1966 = vmatprep.subr.bf16.mxu0 0
        %1967 = vmatpush2.bf16.msra.mxu0 0
        %1968 = vmatprep.subr.bf16.mxu0 0
        %1969 = vmatpush2.bf16.msra.mxu0 0
        %1970 = vmatprep.subr.bf16.mxu0 0
        %1971 = vmatpush2.bf16.msra.mxu0 0
        %1972 = vmatprep.subr.bf16.mxu0 0
        %1973 = vmatpush2.bf16.msra.mxu0 0
        %1974 = vmatprep.subr.bf16.mxu0 0
        %1975 = vmatpush2.bf16.msra.mxu0 0
        %1976 = vmatprep.mubr.bf16.mxu0 0
        %1977 = vmatmul.mubr.bf16.gmra.mxu0 %v1918
        %v1978 = vpop.f32.mrf.mxu0
        %v1979 = vadd.f32 0.0, %v1978
        %v1980 = vpop.f32.mrf.mxu0
        %v1981 = vpop.f32.mrf.mxu0
        %v1982 = vadd.f32 0.0, %v1981
        %v1983 = vpop.f32.mrf.mxu0
        %1984 = vmatprep.mubr.bf16.mxu0 0
        %1985 = vmatmul.mubr.bf16.gmra.mxu0 %v1921
        %v1986 = vpop.f32.mrf.mxu0
        %v1987 = vadd.f32 0.0, %v1986
        %v1988 = vpop.f32.mrf.mxu0
        %v1989 = vpop.f32.mrf.mxu0
        %v1990 = vadd.f32 0.0, %v1989
        %v1991 = vpop.f32.mrf.mxu0
        %1992 = vmatprep.mubr.bf16.mxu0 0
        %1993 = vmatmul.mubr.bf16.gmra.mxu0 %v1924
        %v1994 = vpop.f32.mrf.mxu0
        %v1995 = vadd.f32 0.0, %v1994
        %v1996 = vpop.f32.mrf.mxu0
        %v1997 = vpop.f32.mrf.mxu0
        %v1998 = vadd.f32 0.0, %v1997
        %v1999 = vpop.f32.mrf.mxu0
        %2000 = vmatprep.mubr.bf16.mxu0 0
        %2001 = vmatmul.mubr.bf16.gmra.mxu0 %v1927
        %v2002 = vpop.f32.mrf.mxu0
        %v2003 = vadd.f32 0.0, %v2002
        %v2004 = vpop.f32.mrf.mxu0
        %v2005 = vpop.f32.mrf.mxu0
        %v2006 = vadd.f32 0.0, %v2005
        %v2007 = vpop.f32.mrf.mxu0
        %2008 = vmatprep.mubr.bf16.mxu0 0
        %2009 = vmatmul.mubr.bf16.gmra.mxu0 %v1930
        %v2010 = vpop.f32.mrf.mxu0
        %v2011 = vadd.f32 0.0, %v2010
        %v2012 = vpop.f32.mrf.mxu0
        %v2013 = vpop.f32.mrf.mxu0
        %v2014 = vadd.f32 0.0, %v2013
        %v2015 = vpop.f32.mrf.mxu0
        %2016 = vmatprep.mubr.bf16.mxu0 0
        %2017 = vmatmul.mubr.bf16.gmra.mxu0 %v1933
        %v2018 = vpop.f32.mrf.mxu0
        %v2019 = vadd.f32 0.0, %v2018
        %v2020 = vpop.f32.mrf.mxu0
        %v2021 = vpop.f32.mrf.mxu0
        %v2022 = vadd.f32 0.0, %v2021
        %v2023 = vpop.f32.mrf.mxu0
        %2024 = vmatprep.mubr.bf16.mxu0 0
        %2025 = vmatmul.mubr.bf16.gmra.mxu0 %v1936
        %v2026 = vpop.f32.mrf.mxu0
        %v2027 = vadd.f32 0.0, %v2026
        %v2028 = vpop.f32.mrf.mxu0
        %v2029 = vpop.f32.mrf.mxu0
        %v2030 = vadd.f32 0.0, %v2029
        %v2031 = vpop.f32.mrf.mxu0
        %2032 = vmatprep.mubr.bf16.mxu0 0
        %2033 = vmatmul.mubr.bf16.gmra.mxu0 %v1939
        %v2034 = vpop.f32.mrf.mxu0
        %v2035 = vadd.f32 0.0, %v2034
        %v2036 = vpop.f32.mrf.mxu0
        %v2037 = vpop.f32.mrf.mxu0
        %v2038 = vadd.f32 0.0, %v2037
        %v2039 = vpop.f32.mrf.mxu0
        %2040 = vdwg.mxu0
        %v2041 = vadd.f32 %v1839, %v1979
        %v2042 = vadd.f32 %v1840, %v1982
        %v2043 = vadd.f32 %v1841, %v1987
        %v2044 = vadd.f32 %v1842, %v1990
        %v2045 = vadd.f32 %v1843, %v1995
        %v2046 = vadd.f32 %v1844, %v1998
        %v2047 = vadd.f32 %v1845, %v2003
        %v2048 = vadd.f32 %v1846, %v2006
        %v2049 = vadd.f32 %v1847, %v2011
        %v2050 = vadd.f32 %v1848, %v2014
        %v2051 = vadd.f32 %v1849, %v2019
        %v2052 = vadd.f32 %v1850, %v2022
        %v2053 = vadd.f32 %v1851, %v2027
        %v2054 = vadd.f32 %v1852, %v2030
        %v2055 = vadd.f32 %v1853, %v2035
        %v2056 = vadd.f32 %v1854, %v2038
        %v2057 = vld [vmem:[%s1858] sm:$0xf]
        %v2058 = vld [vmem:[%s1858 + $0x4] sm:$0xf]
        %v2059 = vld [vmem:[%s1858 + $0x8] sm:$0x1]
        %v2060 = vld [vmem:[%s1858 + $0xc] sm:$0xf]
        %v2061 = vld [vmem:[%s1858 + $0x10] sm:$0xf]
        %v2062 = vld [vmem:[%s1858 + $0x14] sm:$0x1]
        %v2063 = vld [vmem:[%s1858 + $0x18] sm:$0xf]
        %v2064 = vld [vmem:[%s1858 + $0x1c] sm:$0xf]
        %v2065 = vld [vmem:[%s1858 + $0x20] sm:$0x1]
        %v2066 = vld [vmem:[%s1858 + $0x24] sm:$0xf]
        %v2067 = vld [vmem:[%s1858 + $0x28] sm:$0xf]
        %v2068 = vld [vmem:[%s1858 + $0x2c] sm:$0x1]
        %v2069 = vld [vmem:[%s1858 + $0x30] sm:$0xf]
        %v2070 = vld [vmem:[%s1858 + $0x34] sm:$0xf]
        %v2071 = vld [vmem:[%s1858 + $0x38] sm:$0x1]
        %v2072 = vld [vmem:[%s1858 + $0x3c] sm:$0xf]
        %v2073 = vld [vmem:[%s1858 + $0x40] sm:$0xf]
        %v2074 = vld [vmem:[%s1858 + $0x44] sm:$0x1]
        %v2075 = vld [vmem:[%s1858 + $0x48] sm:$0xf]
        %v2076 = vld [vmem:[%s1858 + $0x4c] sm:$0xf]
        %v2077 = vld [vmem:[%s1858 + $0x50] sm:$0x1]
        %v2078 = vld [vmem:[%s1858 + $0x54] sm:$0xf]
        %v2079 = vld [vmem:[%s1858 + $0x58] sm:$0xf]
        %v2080 = vld [vmem:[%s1858 + $0x5c] sm:$0x1]
        %v2082 = vshrl.u32 %v2057, 16
        %v2084 = vrot.slane %v2082, 4
        %v2085 = vshll.u32 %v2057, 16
        %v2087 = vrot.slane %v2085, 5
        %v2088 = vor.u32 %v2084, %v2087
        %v2089 = vrot.slane %v2088, 4
        %v2091 = vshll.u32 %v2058, 16
        %v2093 = vrot.slane %v2091, 5
        %v2094 = vsel %vm259, %v2089, %v2093
        %v2095 = vshrl.u32 %v2058, 16
        %v2097 = vrot.slane %v2095, 4
        %v2098 = vor.u32 %v2097, %v2093
        %v2099 = vrot.slane %v2098, 4
        %v2101 = vshll.u32 %v2059, 16
        %v2103 = vrot.slane %v2101, 5
        %v2104 = vsel %vm259, %v2099, %v2103
        %v2106 = vshrl.u32 %v2060, 16
        %v2108 = vrot.slane %v2106, 4
        %v2109 = vshll.u32 %v2060, 16
        %v2111 = vrot.slane %v2109, 5
        %v2112 = vor.u32 %v2108, %v2111
        %v2113 = vrot.slane %v2112, 4
        %v2115 = vshll.u32 %v2061, 16
        %v2117 = vrot.slane %v2115, 5
        %v2118 = vsel %vm259, %v2113, %v2117
        %v2119 = vshrl.u32 %v2061, 16
        %v2121 = vrot.slane %v2119, 4
        %v2122 = vor.u32 %v2121, %v2117
        %v2123 = vrot.slane %v2122, 4
        %v2125 = vshll.u32 %v2062, 16
        %v2127 = vrot.slane %v2125, 5
        %v2128 = vsel %vm259, %v2123, %v2127
        %v2130 = vshrl.u32 %v2063, 16
        %v2132 = vrot.slane %v2130, 4
        %v2133 = vshll.u32 %v2063, 16
        %v2135 = vrot.slane %v2133, 5
        %v2136 = vor.u32 %v2132, %v2135
        %v2137 = vrot.slane %v2136, 4
        %v2139 = vshll.u32 %v2064, 16
        %v2141 = vrot.slane %v2139, 5
        %v2142 = vsel %vm259, %v2137, %v2141
        %v2143 = vshrl.u32 %v2064, 16
        %v2145 = vrot.slane %v2143, 4
        %v2146 = vor.u32 %v2145, %v2141
        %v2147 = vrot.slane %v2146, 4
        %v2149 = vshll.u32 %v2065, 16
        %v2151 = vrot.slane %v2149, 5
        %v2152 = vsel %vm259, %v2147, %v2151
        %v2154 = vshrl.u32 %v2066, 16
        %v2156 = vrot.slane %v2154, 4
        %v2157 = vshll.u32 %v2066, 16
        %v2159 = vrot.slane %v2157, 5
        %v2160 = vor.u32 %v2156, %v2159
        %v2161 = vrot.slane %v2160, 4
        %v2163 = vshll.u32 %v2067, 16
        %v2165 = vrot.slane %v2163, 5
        %v2166 = vsel %vm259, %v2161, %v2165
        %v2167 = vshrl.u32 %v2067, 16
        %v2169 = vrot.slane %v2167, 4
        %v2170 = vor.u32 %v2169, %v2165
        %v2171 = vrot.slane %v2170, 4
        %v2173 = vshll.u32 %v2068, 16
        %v2175 = vrot.slane %v2173, 5
        %v2176 = vsel %vm259, %v2171, %v2175
        %v2178 = vshrl.u32 %v2069, 16
        %v2180 = vrot.slane %v2178, 4
        %v2181 = vshll.u32 %v2069, 16
        %v2183 = vrot.slane %v2181, 5
        %v2184 = vor.u32 %v2180, %v2183
        %v2185 = vrot.slane %v2184, 4
        %v2187 = vshll.u32 %v2070, 16
        %v2189 = vrot.slane %v2187, 5
        %v2190 = vsel %vm259, %v2185, %v2189
        %v2191 = vshrl.u32 %v2070, 16
        %v2193 = vrot.slane %v2191, 4
        %v2194 = vor.u32 %v2193, %v2189
        %v2195 = vrot.slane %v2194, 4
        %v2197 = vshll.u32 %v2071, 16
        %v2199 = vrot.slane %v2197, 5
        %v2200 = vsel %vm259, %v2195, %v2199
        %v2202 = vshrl.u32 %v2072, 16
        %v2204 = vrot.slane %v2202, 4
        %v2205 = vshll.u32 %v2072, 16
        %v2207 = vrot.slane %v2205, 5
        %v2208 = vor.u32 %v2204, %v2207
        %v2209 = vrot.slane %v2208, 4
        %v2211 = vshll.u32 %v2073, 16
        %v2213 = vrot.slane %v2211, 5
        %v2214 = vsel %vm259, %v2209, %v2213
        %v2215 = vshrl.u32 %v2073, 16
        %v2217 = vrot.slane %v2215, 4
        %v2218 = vor.u32 %v2217, %v2213
        %v2219 = vrot.slane %v2218, 4
        %v2221 = vshll.u32 %v2074, 16
        %v2223 = vrot.slane %v2221, 5
        %v2224 = vsel %vm259, %v2219, %v2223
        %v2226 = vshrl.u32 %v2075, 16
        %v2228 = vrot.slane %v2226, 4
        %v2229 = vshll.u32 %v2075, 16
        %v2231 = vrot.slane %v2229, 5
        %v2232 = vor.u32 %v2228, %v2231
        %v2233 = vrot.slane %v2232, 4
        %v2235 = vshll.u32 %v2076, 16
        %v2237 = vrot.slane %v2235, 5
        %v2238 = vsel %vm259, %v2233, %v2237
        %v2239 = vshrl.u32 %v2076, 16
        %v2241 = vrot.slane %v2239, 4
        %v2242 = vor.u32 %v2241, %v2237
        %v2243 = vrot.slane %v2242, 4
        %v2245 = vshll.u32 %v2077, 16
        %v2247 = vrot.slane %v2245, 5
        %v2248 = vsel %vm259, %v2243, %v2247
        %v2250 = vshrl.u32 %v2078, 16
        %v2252 = vrot.slane %v2250, 4
        %v2253 = vshll.u32 %v2078, 16
        %v2255 = vrot.slane %v2253, 5
        %v2256 = vor.u32 %v2252, %v2255
        %v2257 = vrot.slane %v2256, 4
        %v2259 = vshll.u32 %v2079, 16
        %v2261 = vrot.slane %v2259, 5
        %v2262 = vsel %vm259, %v2257, %v2261
        %v2263 = vshrl.u32 %v2079, 16
        %v2265 = vrot.slane %v2263, 4
        %v2266 = vor.u32 %v2265, %v2261
        %v2267 = vrot.slane %v2266, 4
        %v2269 = vshll.u32 %v2080, 16
        %v2271 = vrot.slane %v2269, 5
        %v2272 = vsel %vm259, %v2267, %v2271
        %s2273 = scalar_lea.vmem %s221, 14
        %v2274 = vld [vmem:[%s2273] sm:$0x3]
        %v2275 = vunpack.c.l.b16 %v2094
        %v2276 = vunpack.c.l.b16 %v2104
        %v2277 = vunpack.c.l.b16 %v2118
        %v2278 = vunpack.c.l.b16 %v2128
        %v2279 = vunpack.c.l.b16 %v2142
        %v2280 = vunpack.c.l.b16 %v2152
        %v2281 = vunpack.c.l.b16 %v2166
        %v2282 = vunpack.c.l.b16 %v2176
        %v2283 = vunpack.c.l.b16 %v2190
        %v2284 = vunpack.c.l.b16 %v2200
        %v2285 = vunpack.c.l.b16 %v2214
        %v2286 = vunpack.c.l.b16 %v2224
        %v2287 = vunpack.c.l.b16 %v2238
        %v2288 = vunpack.c.l.b16 %v2248
        %v2289 = vunpack.c.l.b16 %v2262
        %v2290 = vunpack.c.l.b16 %v2272
        %v2291 = vpack.c.b16 %v2276, %v2275
        %v2292 = vpack.c.b16 %v2278, %v2277
        %v2293 = vpack.c.b16 %v2280, %v2279
        %v2294 = vpack.c.b16 %v2282, %v2281
        %v2295 = vpack.c.b16 %v2284, %v2283
        %v2296 = vpack.c.b16 %v2286, %v2285
        %v2297 = vpack.c.b16 %v2288, %v2287
        %v2298 = vpack.c.b16 %v2290, %v2289
        %v2300 = vsel %vm478, %v2291, 0
        %v2303 = vsel %vm478, %v2292, 0
        %v2306 = vsel %vm478, %v2293, 0
        %v2309 = vsel %vm478, %v2294, 0
        %v2312 = vsel %vm478, %v2295, 0
        %v2315 = vsel %vm478, %v2296, 0
        %v2318 = vsel %vm478, %v2297, 0
        %v2321 = vsel %vm478, %v2298, 0
        %v2324 = vsel %vm503, %v2274, 0
        %2326 = vmatprep.subr.bf16.mxu0 0
        %2327 = vmatpush1.bf16.msra.mxu0 0
        %2328 = vmatprep.subr.bf16.mxu0 0
        %2329 = vmatpush1.bf16.msra.mxu0 0
        %2330 = vmatprep.subr.bf16.mxu0 0
        %2331 = vmatpush1.bf16.msra.mxu0 0
        %2332 = vmatprep.subr.bf16.mxu0 0
        %2333 = vmatpush1.bf16.msra.mxu0 0
        %2334 = vmatprep.subr.bf16.mxu0 0
        %2335 = vmatpush1.bf16.msra.mxu0 0
        %2336 = vmatprep.subr.bf16.mxu0 0
        %2337 = vmatpush1.bf16.msra.mxu0 0
        %2338 = vmatprep.subr.bf16.mxu0 0
        %2339 = vmatpush1.bf16.msra.mxu0 0
        %2340 = vmatprep.subr.bf16.mxu0 0
        %2341 = vmatpush1.bf16.msra.mxu0 %v2324
        %2342 = vmatprep.subr.bf16.mxu0 0
        %2343 = vmatpush2.bf16.msra.mxu0 0
        %2344 = vmatprep.subr.bf16.mxu0 0
        %2345 = vmatpush2.bf16.msra.mxu0 0
        %2346 = vmatprep.subr.bf16.mxu0 0
        %2347 = vmatpush2.bf16.msra.mxu0 0
        %2348 = vmatprep.subr.bf16.mxu0 0
        %2349 = vmatpush2.bf16.msra.mxu0 0
        %2350 = vmatprep.subr.bf16.mxu0 0
        %2351 = vmatpush2.bf16.msra.mxu0 0
        %2352 = vmatprep.subr.bf16.mxu0 0
        %2353 = vmatpush2.bf16.msra.mxu0 0
        %2354 = vmatprep.subr.bf16.mxu0 0
        %2355 = vmatpush2.bf16.msra.mxu0 0
        %2356 = vmatprep.subr.bf16.mxu0 0
        %2357 = vmatpush2.bf16.msra.mxu0 0
        %2358 = vmatprep.mubr.bf16.mxu0 0
        %2359 = vmatmul.mubr.bf16.gmra.mxu0 %v2300
        %v2360 = vpop.f32.mrf.mxu0
        %v2361 = vadd.f32 0.0, %v2360
        %v2362 = vpop.f32.mrf.mxu0
        %v2363 = vpop.f32.mrf.mxu0
        %v2364 = vadd.f32 0.0, %v2363
        %v2365 = vpop.f32.mrf.mxu0
        %2366 = vmatprep.mubr.bf16.mxu0 0
        %2367 = vmatmul.mubr.bf16.gmra.mxu0 %v2303
        %v2368 = vpop.f32.mrf.mxu0
        %v2369 = vadd.f32 0.0, %v2368
        %v2370 = vpop.f32.mrf.mxu0
        %v2371 = vpop.f32.mrf.mxu0
        %v2372 = vadd.f32 0.0, %v2371
        %v2373 = vpop.f32.mrf.mxu0
        %2374 = vmatprep.mubr.bf16.mxu0 0
        %2375 = vmatmul.mubr.bf16.gmra.mxu0 %v2306
        %v2376 = vpop.f32.mrf.mxu0
        %v2377 = vadd.f32 0.0, %v2376
        %v2378 = vpop.f32.mrf.mxu0
        %v2379 = vpop.f32.mrf.mxu0
        %v2380 = vadd.f32 0.0, %v2379
        %v2381 = vpop.f32.mrf.mxu0
        %2382 = vmatprep.mubr.bf16.mxu0 0
        %2383 = vmatmul.mubr.bf16.gmra.mxu0 %v2309
        %v2384 = vpop.f32.mrf.mxu0
        %v2385 = vadd.f32 0.0, %v2384
        %v2386 = vpop.f32.mrf.mxu0
        %v2387 = vpop.f32.mrf.mxu0
        %v2388 = vadd.f32 0.0, %v2387
        %v2389 = vpop.f32.mrf.mxu0
        %2390 = vmatprep.mubr.bf16.mxu0 0
        %2391 = vmatmul.mubr.bf16.gmra.mxu0 %v2312
        %v2392 = vpop.f32.mrf.mxu0
        %v2393 = vadd.f32 0.0, %v2392
        %v2394 = vpop.f32.mrf.mxu0
        %v2395 = vpop.f32.mrf.mxu0
        %v2396 = vadd.f32 0.0, %v2395
        %v2397 = vpop.f32.mrf.mxu0
        %2398 = vmatprep.mubr.bf16.mxu0 0
        %2399 = vmatmul.mubr.bf16.gmra.mxu0 %v2315
        %v2400 = vpop.f32.mrf.mxu0
        %v2401 = vadd.f32 0.0, %v2400
        %v2402 = vpop.f32.mrf.mxu0
        %v2403 = vpop.f32.mrf.mxu0
        %v2404 = vadd.f32 0.0, %v2403
        %v2405 = vpop.f32.mrf.mxu0
        %2406 = vmatprep.mubr.bf16.mxu0 0
        %2407 = vmatmul.mubr.bf16.gmra.mxu0 %v2318
        %v2408 = vpop.f32.mrf.mxu0
        %v2409 = vadd.f32 0.0, %v2408
        %v2410 = vpop.f32.mrf.mxu0
        %v2411 = vpop.f32.mrf.mxu0
        %v2412 = vadd.f32 0.0, %v2411
        %v2413 = vpop.f32.mrf.mxu0
        %2414 = vmatprep.mubr.bf16.mxu0 0
        %2415 = vmatmul.mubr.bf16.gmra.mxu0 %v2321
        %v2416 = vpop.f32.mrf.mxu0
        %v2417 = vadd.f32 0.0, %v2416
        %v2418 = vpop.f32.mrf.mxu0
        %v2419 = vpop.f32.mrf.mxu0
        %v2420 = vadd.f32 0.0, %v2419
        %v2421 = vpop.f32.mrf.mxu0
        %2422 = vdwg.mxu0
        %v2423 = vadd.f32 %v2041, %v2361
        %v2424 = vadd.f32 %v2042, %v2364
        %v2425 = vadd.f32 %v2043, %v2369
        %v2426 = vadd.f32 %v2044, %v2372
        %v2427 = vadd.f32 %v2045, %v2377
        %v2428 = vadd.f32 %v2046, %v2380
        %v2429 = vadd.f32 %v2047, %v2385
        %v2430 = vadd.f32 %v2048, %v2388
        %v2431 = vadd.f32 %v2049, %v2393
        %v2432 = vadd.f32 %v2050, %v2396
        %v2433 = vadd.f32 %v2051, %v2401
        %v2434 = vadd.f32 %v2052, %v2404
        %v2435 = vadd.f32 %v2053, %v2409
        %v2436 = vadd.f32 %v2054, %v2412
        %v2437 = vadd.f32 %v2055, %v2417
        %v2438 = vadd.f32 %v2056, %v2420
        %v2439 = vld [vmem:[%s1858] sm:$0xe]
        %v2440 = vld [vmem:[%s1858 + $0xc] sm:$0xe]
        %v2441 = vld [vmem:[%s1858 + $0x18] sm:$0xe]
        %v2442 = vld [vmem:[%s1858 + $0x24] sm:$0xe]
        %v2443 = vld [vmem:[%s1858 + $0x30] sm:$0xe]
        %v2444 = vld [vmem:[%s1858 + $0x3c] sm:$0xe]
        %v2445 = vld [vmem:[%s1858 + $0x48] sm:$0xe]
        %v2446 = vld [vmem:[%s1858 + $0x54] sm:$0xe]
        %v2471 = vrot.slane %v2439, 5
        %v2472 = vrot.slane %v2471, 4
        %v2473 = vrot.slane %v2058, 5
        %v2474 = vsel %vm794, %v2472, %v2473
        %v2475 = vrot.slane %v2473, 4
        %v2476 = vrot.slane %v2059, 5
        %v2477 = vsel %vm794, %v2475, %v2476
        %v2478 = vrot.slane %v2440, 5
        %v2479 = vrot.slane %v2478, 4
        %v2480 = vrot.slane %v2061, 5
        %v2481 = vsel %vm794, %v2479, %v2480
        %v2482 = vrot.slane %v2480, 4
        %v2483 = vrot.slane %v2062, 5
        %v2484 = vsel %vm794, %v2482, %v2483
        %v2485 = vrot.slane %v2441, 5
        %v2486 = vrot.slane %v2485, 4
        %v2487 = vrot.slane %v2064, 5
        %v2488 = vsel %vm794, %v2486, %v2487
        %v2489 = vrot.slane %v2487, 4
        %v2490 = vrot.slane %v2065, 5
        %v2491 = vsel %vm794, %v2489, %v2490
        %v2492 = vrot.slane %v2442, 5
        %v2493 = vrot.slane %v2492, 4
        %v2494 = vrot.slane %v2067, 5
        %v2495 = vsel %vm794, %v2493, %v2494
        %v2496 = vrot.slane %v2494, 4
        %v2497 = vrot.slane %v2068, 5
        %v2498 = vsel %vm794, %v2496, %v2497
        %v2499 = vrot.slane %v2443, 5
        %v2500 = vrot.slane %v2499, 4
        %v2501 = vrot.slane %v2070, 5
        %v2502 = vsel %vm794, %v2500, %v2501
        %v2503 = vrot.slane %v2501, 4
        %v2504 = vrot.slane %v2071, 5
        %v2505 = vsel %vm794, %v2503, %v2504
        %v2506 = vrot.slane %v2444, 5
        %v2507 = vrot.slane %v2506, 4
        %v2508 = vrot.slane %v2073, 5
        %v2509 = vsel %vm794, %v2507, %v2508
        %v2510 = vrot.slane %v2508, 4
        %v2511 = vrot.slane %v2074, 5
        %v2512 = vsel %vm794, %v2510, %v2511
        %v2513 = vrot.slane %v2445, 5
        %v2514 = vrot.slane %v2513, 4
        %v2515 = vrot.slane %v2076, 5
        %v2516 = vsel %vm794, %v2514, %v2515
        %v2517 = vrot.slane %v2515, 4
        %v2518 = vrot.slane %v2077, 5
        %v2519 = vsel %vm794, %v2517, %v2518
        %v2520 = vrot.slane %v2446, 5
        %v2521 = vrot.slane %v2520, 4
        %v2522 = vrot.slane %v2079, 5
        %v2523 = vsel %vm794, %v2521, %v2522
        %v2524 = vrot.slane %v2522, 4
        %v2525 = vrot.slane %v2080, 5
        %v2526 = vsel %vm794, %v2524, %v2525
        %s2527 = scalar_lea.vmem %s221, 16
        %v2528 = vld [vmem:[%s2527] sm:$0x3]
        %v2529 = vunpack.c.l.b16 %v2474
        %v2530 = vunpack.c.l.b16 %v2477
        %v2531 = vunpack.c.l.b16 %v2481
        %v2532 = vunpack.c.l.b16 %v2484
        %v2533 = vunpack.c.l.b16 %v2488
        %v2534 = vunpack.c.l.b16 %v2491
        %v2535 = vunpack.c.l.b16 %v2495
        %v2536 = vunpack.c.l.b16 %v2498
        %v2537 = vunpack.c.l.b16 %v2502
        %v2538 = vunpack.c.l.b16 %v2505
        %v2539 = vunpack.c.l.b16 %v2509
        %v2540 = vunpack.c.l.b16 %v2512
        %v2541 = vunpack.c.l.b16 %v2516
        %v2542 = vunpack.c.l.b16 %v2519
        %v2543 = vunpack.c.l.b16 %v2523
        %v2544 = vunpack.c.l.b16 %v2526
        %v2545 = vpack.c.b16 %v2530, %v2529
        %v2546 = vpack.c.b16 %v2532, %v2531
        %v2547 = vpack.c.b16 %v2534, %v2533
        %v2548 = vpack.c.b16 %v2536, %v2535
        %v2549 = vpack.c.b16 %v2538, %v2537
        %v2550 = vpack.c.b16 %v2540, %v2539
        %v2551 = vpack.c.b16 %v2542, %v2541
        %v2552 = vpack.c.b16 %v2544, %v2543
        %v2554 = vsel %vm478, %v2545, 0
        %v2557 = vsel %vm478, %v2546, 0
        %v2560 = vsel %vm478, %v2547, 0
        %v2563 = vsel %vm478, %v2548, 0
        %v2566 = vsel %vm478, %v2549, 0
        %v2569 = vsel %vm478, %v2550, 0
        %v2572 = vsel %vm478, %v2551, 0
        %v2575 = vsel %vm478, %v2552, 0
        %v2578 = vsel %vm503, %v2528, 0
        %2580 = vmatprep.subr.bf16.mxu0 0
        %2581 = vmatpush1.bf16.msra.mxu0 0
        %2582 = vmatprep.subr.bf16.mxu0 0
        %2583 = vmatpush1.bf16.msra.mxu0 0
        %2584 = vmatprep.subr.bf16.mxu0 0
        %2585 = vmatpush1.bf16.msra.mxu0 0
        %2586 = vmatprep.subr.bf16.mxu0 0
        %2587 = vmatpush1.bf16.msra.mxu0 0
        %2588 = vmatprep.subr.bf16.mxu0 0
        %2589 = vmatpush1.bf16.msra.mxu0 0
        %2590 = vmatprep.subr.bf16.mxu0 0
        %2591 = vmatpush1.bf16.msra.mxu0 0
        %2592 = vmatprep.subr.bf16.mxu0 0
        %2593 = vmatpush1.bf16.msra.mxu0 0
        %2594 = vmatprep.subr.bf16.mxu0 0
        %2595 = vmatpush1.bf16.msra.mxu0 %v2578
        %2596 = vmatprep.subr.bf16.mxu0 0
        %2597 = vmatpush2.bf16.msra.mxu0 0
        %2598 = vmatprep.subr.bf16.mxu0 0
        %2599 = vmatpush2.bf16.msra.mxu0 0
        %2600 = vmatprep.subr.bf16.mxu0 0
        %2601 = vmatpush2.bf16.msra.mxu0 0
        %2602 = vmatprep.subr.bf16.mxu0 0
        %2603 = vmatpush2.bf16.msra.mxu0 0
        %2604 = vmatprep.subr.bf16.mxu0 0
        %2605 = vmatpush2.bf16.msra.mxu0 0
        %2606 = vmatprep.subr.bf16.mxu0 0
        %2607 = vmatpush2.bf16.msra.mxu0 0
        %2608 = vmatprep.subr.bf16.mxu0 0
        %2609 = vmatpush2.bf16.msra.mxu0 0
        %2610 = vmatprep.subr.bf16.mxu0 0
        %2611 = vmatpush2.bf16.msra.mxu0 0
        %2612 = vmatprep.mubr.bf16.mxu0 0
        %2613 = vmatmul.mubr.bf16.gmra.mxu0 %v2554
        %v2614 = vpop.f32.mrf.mxu0
        %v2615 = vadd.f32 0.0, %v2614
        %v2616 = vpop.f32.mrf.mxu0
        %v2617 = vpop.f32.mrf.mxu0
        %v2618 = vadd.f32 0.0, %v2617
        %v2619 = vpop.f32.mrf.mxu0
        %2620 = vmatprep.mubr.bf16.mxu0 0
        %2621 = vmatmul.mubr.bf16.gmra.mxu0 %v2557
        %v2622 = vpop.f32.mrf.mxu0
        %v2623 = vadd.f32 0.0, %v2622
        %v2624 = vpop.f32.mrf.mxu0
        %v2625 = vpop.f32.mrf.mxu0
        %v2626 = vadd.f32 0.0, %v2625
        %v2627 = vpop.f32.mrf.mxu0
        %2628 = vmatprep.mubr.bf16.mxu0 0
        %2629 = vmatmul.mubr.bf16.gmra.mxu0 %v2560
        %v2630 = vpop.f32.mrf.mxu0
        %v2631 = vadd.f32 0.0, %v2630
        %v2632 = vpop.f32.mrf.mxu0
        %v2633 = vpop.f32.mrf.mxu0
        %v2634 = vadd.f32 0.0, %v2633
        %v2635 = vpop.f32.mrf.mxu0
        %2636 = vmatprep.mubr.bf16.mxu0 0
        %2637 = vmatmul.mubr.bf16.gmra.mxu0 %v2563
        %v2638 = vpop.f32.mrf.mxu0
        %v2639 = vadd.f32 0.0, %v2638
        %v2640 = vpop.f32.mrf.mxu0
        %v2641 = vpop.f32.mrf.mxu0
        %v2642 = vadd.f32 0.0, %v2641
        %v2643 = vpop.f32.mrf.mxu0
        %2644 = vmatprep.mubr.bf16.mxu0 0
        %2645 = vmatmul.mubr.bf16.gmra.mxu0 %v2566
        %v2646 = vpop.f32.mrf.mxu0
        %v2647 = vadd.f32 0.0, %v2646
        %v2648 = vpop.f32.mrf.mxu0
        %v2649 = vpop.f32.mrf.mxu0
        %v2650 = vadd.f32 0.0, %v2649
        %v2651 = vpop.f32.mrf.mxu0
        %2652 = vmatprep.mubr.bf16.mxu0 0
        %2653 = vmatmul.mubr.bf16.gmra.mxu0 %v2569
        %v2654 = vpop.f32.mrf.mxu0
        %v2655 = vadd.f32 0.0, %v2654
        %v2656 = vpop.f32.mrf.mxu0
        %v2657 = vpop.f32.mrf.mxu0
        %v2658 = vadd.f32 0.0, %v2657
        %v2659 = vpop.f32.mrf.mxu0
        %2660 = vmatprep.mubr.bf16.mxu0 0
        %2661 = vmatmul.mubr.bf16.gmra.mxu0 %v2572
        %v2662 = vpop.f32.mrf.mxu0
        %v2663 = vadd.f32 0.0, %v2662
        %v2664 = vpop.f32.mrf.mxu0
        %v2665 = vpop.f32.mrf.mxu0
        %v2666 = vadd.f32 0.0, %v2665
        %v2667 = vpop.f32.mrf.mxu0
        %2668 = vmatprep.mubr.bf16.mxu0 0
        %2669 = vmatmul.mubr.bf16.gmra.mxu0 %v2575
        %v2670 = vpop.f32.mrf.mxu0
        %v2671 = vadd.f32 0.0, %v2670
        %v2672 = vpop.f32.mrf.mxu0
        %v2673 = vpop.f32.mrf.mxu0
        %v2674 = vadd.f32 0.0, %v2673
        %v2675 = vpop.f32.mrf.mxu0
        %2676 = vdwg.mxu0
        %v2677 = vadd.f32 %v2423, %v2615
        %v2678 = vadd.f32 %v2424, %v2618
        %v2679 = vadd.f32 %v2425, %v2623
        %v2680 = vadd.f32 %v2426, %v2626
        %v2681 = vadd.f32 %v2427, %v2631
        %v2682 = vadd.f32 %v2428, %v2634
        %v2683 = vadd.f32 %v2429, %v2639
        %v2684 = vadd.f32 %v2430, %v2642
        %v2685 = vadd.f32 %v2431, %v2647
        %v2686 = vadd.f32 %v2432, %v2650
        %v2687 = vadd.f32 %v2433, %v2655
        %v2688 = vadd.f32 %v2434, %v2658
        %v2689 = vadd.f32 %v2435, %v2663
        %v2690 = vadd.f32 %v2436, %v2666
        %v2691 = vadd.f32 %v2437, %v2671
        %v2692 = vadd.f32 %v2438, %v2674
        %v2693 = vld [vmem:[%s225] sm:$0x1]
        %v2694 = vlaneseq
        %v2695 = vshrl.u32 %v2694, 7
        %v2696 = vsub.s32 0, %v2695
        %v2697 = vrot.slane %v2693, %v2696
        %v2698 = vmul.f32 %v2677, %v2697
        %v2699 = vmul.f32 %v2678, %v2697
        %v2700 = vmul.f32 %v2679, %v2697
        %v2701 = vmul.f32 %v2680, %v2697
        %v2702 = vmul.f32 %v2681, %v2697
        %v2703 = vmul.f32 %v2682, %v2697
        %v2704 = vmul.f32 %v2683, %v2697
        %v2705 = vmul.f32 %v2684, %v2697
        %v2706 = vmul.f32 %v2685, %v2697
        %v2707 = vmul.f32 %v2686, %v2697
        %v2708 = vmul.f32 %v2687, %v2697
        %v2709 = vmul.f32 %v2688, %v2697
        %v2710 = vmul.f32 %v2689, %v2697
        %v2711 = vmul.f32 %v2690, %v2697
        %v2712 = vmul.f32 %v2691, %v2697
        %v2713 = vmul.f32 %v2692, %v2697
        %v2714 = vld [vmem:[%s225 + $0x1] sm:$0x1]
        %v2715 = vlaneseq
        %v2716 = vshrl.u32 %v2715, 7
        %v2717 = vsub.s32 0, %v2716
        %v2718 = vrot.slane %v2714, %v2717
        %v2719 = vadd.f32 %v2698, %v2718
        %v2720 = vadd.f32 %v2699, %v2718
        %v2721 = vadd.f32 %v2700, %v2718
        %v2722 = vadd.f32 %v2701, %v2718
        %v2723 = vadd.f32 %v2702, %v2718
        %v2724 = vadd.f32 %v2703, %v2718
        %v2725 = vadd.f32 %v2704, %v2718
        %v2726 = vadd.f32 %v2705, %v2718
        %v2727 = vadd.f32 %v2706, %v2718
        %v2728 = vadd.f32 %v2707, %v2718
        %v2729 = vadd.f32 %v2708, %v2718
        %v2730 = vadd.f32 %v2709, %v2718
        %v2731 = vadd.f32 %v2710, %v2718
        %v2732 = vadd.f32 %v2711, %v2718
        %v2733 = vadd.f32 %v2712, %v2718
        %v2734 = vadd.f32 %v2713, %v2718
        %v2735 = vmax.f32 %v2719, 0.0
        %v2736 = vmax.f32 %v2720, 0.0
        %v2737 = vmax.f32 %v2721, 0.0
        %v2738 = vmax.f32 %v2722, 0.0
        %v2739 = vmax.f32 %v2723, 0.0
        %v2740 = vmax.f32 %v2724, 0.0
        %v2741 = vmax.f32 %v2725, 0.0
        %v2742 = vmax.f32 %v2726, 0.0
        %v2743 = vmax.f32 %v2727, 0.0
        %v2744 = vmax.f32 %v2728, 0.0
        %v2745 = vmax.f32 %v2729, 0.0
        %v2746 = vmax.f32 %v2730, 0.0
        %v2747 = vmax.f32 %v2731, 0.0
        %v2748 = vmax.f32 %v2732, 0.0
        %v2749 = vmax.f32 %v2733, 0.0
        %v2750 = vmax.f32 %v2734, 0.0
        %2751 = vst [vmem:[%s212] sm:$0xff] %v2735
        %2752 = vst [vmem:[%s212 + $0x8] sm:$0xff] %v2736
        %2753 = vst [vmem:[%s212 + $0x10] sm:$0xff] %v2737
        %2754 = vst [vmem:[%s212 + $0x18] sm:$0xff] %v2738
        %2755 = vst [vmem:[%s212 + $0x20] sm:$0xff] %v2739
        %2756 = vst [vmem:[%s212 + $0x28] sm:$0xff] %v2740
        %2757 = vst [vmem:[%s212 + $0x30] sm:$0xff] %v2741
        %2758 = vst [vmem:[%s212 + $0x38] sm:$0xff] %v2742
        %2759 = vst [vmem:[%s212 + $0x40] sm:$0xff] %v2743
        %2760 = vst [vmem:[%s212 + $0x48] sm:$0xff] %v2744
        %2761 = vst [vmem:[%s212 + $0x50] sm:$0xff] %v2745
        %2762 = vst [vmem:[%s212 + $0x58] sm:$0xff] %v2746
        %2763 = vst [vmem:[%s212 + $0x60] sm:$0xff] %v2747
        %2764 = vst [vmem:[%s212 + $0x68] sm:$0xff] %v2748
        %2765 = vst [vmem:[%s212 + $0x70] sm:$0xff] %v2749
        %2766 = vst [vmem:[%s212 + $0x78] sm:$0xff] %v2750
        %s2767 = sand.u32 %s126, 1
        %s2768 = scalar_lea.sflag [#allocation3], %s2767
        %s2769 = sand.u32 %s126, 1
        %s2770 = smul.addr %s2769, 128
        %s2771 = scalar_lea.vmem [#allocation2], %s2770
        // Predicated region
        $region33: #{tpu_custom_call.1} parent=31 // pred_check
          %p2772 = pneg %p136
        $region34: #{tpu_custom_call.1} parent=31 // pred_check_branch
          %2774 = sbr.rel (%p2772) target = $region36
        $region35: #{tpu_custom_call.1} parent=31 // pred_region
          %s2775 = smul.u32 8, %s23
          %s2777 = ssub.s32 2048, 2048
          %2778 = vsyncadd %s2768, %s2777
          %s2779 = smul.addr %s2775, 2
          %s2780 = sadd.s32 %s24, %s2779
          %s2781 = smul.addr %s22, 32
          %s2782 = sadd.s32 %s2780, %s2781
          %s2783 = smul.addr %s2782, 128
          %s2784 = scalar_lea.hbm %s3, %s2783
          %s2785 = sshll.u32 %s2771, 4
          %s2786 = int_to_ptr.vmem [resolvable:$true] %s2785
          %2791 = dma.vmem_to_hbm [thread:$0]  %s2786, 2048, %s2784, %s2768, 128, 128, 8
        $region36: #{tpu_custom_call.1} parent=31 // pred_fallthru
          _
      $region32: #{tpu_custom_call.1} parent=5 // pred_fallthru
        _
      %p2792 = scmp.le.s32.totalorder 2, %s12
      // Predicated region
      $region37: #{tpu_custom_call.1} parent=5 // pred_check
        %p2793 = pneg %p2792
      $region38: #{tpu_custom_call.1} parent=5 // pred_check_branch
        %2795 = sbr.rel (%p2793) target = $region40
      $region39: #{tpu_custom_call.1} parent=5 // pred_region
        %s2796 = ssub.s32 %s12, 2
        // Predicated region
        $region41: #{tpu_custom_call.1} parent=39 // pred_check
          %p2797 = pneg %p142
        $region42: #{tpu_custom_call.1} parent=39 // pred_check_branch
          %2799 = sbr.rel (%p2797) target = $region44
        $region43: #{tpu_custom_call.1} parent=39 // pred_region
          %s2800 = sand.u32 %s127, 1
          %s2801 = scalar_lea.sflag [#allocation3], %s2800
          %s2802 = sand.u32 %s127, 1
          %s2803 = smul.addr %s2802, 128
          %s2804 = scalar_lea.vmem [#allocation2], %s2803
          %2805 = dma.done %s2801, 2048
        $region44: #{tpu_custom_call.1} parent=39 // pred_fallthru
          _
      $region40: #{tpu_custom_call.1} parent=5 // pred_fallthru
        _
    $region6: #{tpu_custom_call.1} parent=1 // loop_footer
      %s16 = sadd.s32 1, %s12
    $region7: #{tpu_custom_call.1} parent=1 // loop_footer_branch
      %11 = sbr.rel target = $region3
    $region8: #{tpu_custom_call.1} parent=1 // loop_exit
      _
    %2806 = vsyncpa [#allocation3], 1
    %s2807 = scalar_lea.sflag [#allocation3], 1
    %2808 = vsyncpa %s2807, 1

// kernel: tpu_custom_call.1
$region0: #{tpu_custom_call.1}
  #allocation0 [shape = 'u32[]', space=smem, size = 0x4, offset = 0x4, fixed_abs, tag = 'smem constant byte address 0x4 - core index']
  #allocation1 [shape = 'u32[144,128]{1,0:T(1,128)}', space=vmem, size = 0x12000, scoped, tag = 'internal scratch']
  %s0 = inlined_call_operand.hbm [shape: bf16[512,128], index: 0, kind: input, shape index: {}]
  %s1 = inlined_call_operand.hbm [shape: bf16[128,128], index: 1, kind: input, shape index: {}]
  %s2 = inlined_call_operand.vmem [shape: f32[2,128], index: 2, kind: input, shape index: {}]
  %s3 = inlined_call_operand.hbm [shape: f32[512,128], index: 3, kind: output, shape index: {}]
  %s4 = sld [smem:[#allocation0]]
  $region30: #{tpu_custom_call.1} parent=0
    _
  %s6 = ssub.s32 1, %s4
  %s7 = scalar_select 0, %s6, %s4
  $region1: #{tpu_custom_call.1} parent=0
    #allocation2 [shape = 'u8[131072]{0}', space=vmem, size = 0x20000, scoped, tag = 'input window, operand 0, single buffered']
    #allocation3 [shape = 's32[1]{0}', space=sflag, size = 0x4, scoped, tag = 'scoped memory for tpu_custom_call.1']
    #allocation4 [shape = 's32[1]{0}', space=sflag, size = 0x4, scoped, tag = 'scoped memory for tpu_custom_call.1']
    #allocation5 [shape = 'u8[32768]{0}', space=vmem, size = 0x8000, scoped, tag = 'input window, operand 1, single buffered']
    #allocation6 [shape = 's32[1]{0}', space=sflag, size = 0x4, scoped, tag = 'scoped memory for tpu_custom_call.1']
    #allocation7 [shape = 'u8[262144]{0}', space=vmem, size = 0x40000, scoped, tag = 'output window, operand 0, single buffered']
    %8 = vsyncpa [#allocation3], 0
    %9 = vsyncpa [#allocation6], 0
    %10 = vsyncpa [#allocation4], 0
    // Predicated region
    $region2: #{tpu_custom_call.1} parent=1 // pred_check
      _
    $region3: #{tpu_custom_call.1} parent=1 // pred_check_branch
      %12 = sbr.rel (0) target = $region5
    $region4: #{tpu_custom_call.1} parent=1 // pred_region
      %s14 = ssub.s32 4096, 4096
      %15 = vsyncadd [#allocation3], %s14
      %s16 = sshll.u32 [#allocation2], 4
      %s17 = int_to_ptr.vmem [resolvable:$true] %s16
      %22 = dma.hbm_to_vmem [thread:$0]  %s0, 4096, %s17, [#allocation3], 64, 64, 4
    $region5: #{tpu_custom_call.1} parent=1 // pred_fallthru
      _
    // Predicated region
    $region6: #{tpu_custom_call.1} parent=1 // pred_check
      _
    $region7: #{tpu_custom_call.1} parent=1 // pred_check_branch
      %24 = sbr.rel (0) target = $region9
    $region8: #{tpu_custom_call.1} parent=1 // pred_region
      %s26 = ssub.s32 1024, 1024
      %27 = vsyncadd [#allocation6], %s26
      %s28 = sshll.u32 [#allocation5], 4
      %s29 = int_to_ptr.vmem [resolvable:$true] %s28
      %34 = dma.hbm_to_vmem [thread:$0]  %s1, 1024, %s29, [#allocation6], 64, 64, 4
    $region9: #{tpu_custom_call.1} parent=1 // pred_fallthru
      _
    // Predicated region
    $region10: #{tpu_custom_call.1} parent=1 // pred_check
      _
    $region11: #{tpu_custom_call.1} parent=1 // pred_check_branch
      %36 = sbr.rel (0) target = $region13
    $region12: #{tpu_custom_call.1} parent=1 // pred_region
      _
    $region13: #{tpu_custom_call.1} parent=1 // pred_fallthru
      _
    // Predicated region
    $region14: #{tpu_custom_call.1} parent=1 // pred_check
      _
    $region15: #{tpu_custom_call.1} parent=1 // pred_check_branch
      %38 = sbr.rel (0) target = $region17
    $region16: #{tpu_custom_call.1} parent=1 // pred_region
      %39 = dma.done [#allocation3], 4096
    $region17: #{tpu_custom_call.1} parent=1 // pred_fallthru
      _
    // Predicated region
    $region18: #{tpu_custom_call.1} parent=1 // pred_check
      _
    $region19: #{tpu_custom_call.1} parent=1 // pred_check_branch
      %41 = sbr.rel (0) target = $region21
    $region20: #{tpu_custom_call.1} parent=1 // pred_region
      %42 = dma.done [#allocation6], 1024
    $region21: #{tpu_custom_call.1} parent=1 // pred_fallthru
      _
    %v44 = vld [vmem:[#allocation2] sm:$0xf]
    %v45 = vld [vmem:[#allocation2 + $0x4] sm:$0xf]
    %v46 = vld [vmem:[#allocation2 + $0x8] sm:$0xf]
    %v47 = vld [vmem:[#allocation2 + $0xc] sm:$0xf]
    %v48 = vld [vmem:[#allocation2 + $0x10] sm:$0xf]
    %v49 = vld [vmem:[#allocation2 + $0x14] sm:$0xf]
    %v50 = vld [vmem:[#allocation2 + $0x18] sm:$0xf]
    %v51 = vld [vmem:[#allocation2 + $0x1c] sm:$0xf]
    %v52 = vld [vmem:[#allocation2 + $0x20] sm:$0xf]
    %v53 = vld [vmem:[#allocation2 + $0x24] sm:$0xf]
    %v54 = vld [vmem:[#allocation2 + $0x28] sm:$0xf]
    %v55 = vld [vmem:[#allocation2 + $0x2c] sm:$0xf]
    %v56 = vld [vmem:[#allocation2 + $0x30] sm:$0xf]
    %v57 = vld [vmem:[#allocation2 + $0x34] sm:$0xf]
    %v58 = vld [vmem:[#allocation2 + $0x38] sm:$0xf]
    %v59 = vld [vmem:[#allocation2 + $0x3c] sm:$0xf]
    %v60 = vld [vmem:[#allocation2 + $0x40] sm:$0xf]
    %v61 = vld [vmem:[#allocation2 + $0x44] sm:$0xf]
    %v62 = vld [vmem:[#allocation2 + $0x48] sm:$0xf]
    %v63 = vld [vmem:[#allocation2 + $0x4c] sm:$0xf]
    %v64 = vld [vmem:[#allocation2 + $0x50] sm:$0xf]
    %v65 = vld [vmem:[#allocation2 + $0x54] sm:$0xf]
    %v66 = vld [vmem:[#allocation2 + $0x58] sm:$0xf]
    %v67 = vld [vmem:[#allocation2 + $0x5c] sm:$0xf]
    %v68 = vld [vmem:[#allocation2 + $0x60] sm:$0xf]
    %v69 = vld [vmem:[#allocation2 + $0x64] sm:$0xf]
    %v70 = vld [vmem:[#allocation2 + $0x68] sm:$0xf]
    %v71 = vld [vmem:[#allocation2 + $0x6c] sm:$0xf]
    %v72 = vld [vmem:[#allocation2 + $0x70] sm:$0xf]
    %v73 = vld [vmem:[#allocation2 + $0x74] sm:$0xf]
    %v74 = vld [vmem:[#allocation2 + $0x78] sm:$0xf]
    %v75 = vld [vmem:[#allocation2 + $0x7c] sm:$0xf]
    %v76 = vld [vmem:[#allocation2 + $0x80] sm:$0xf]
    %v77 = vld [vmem:[#allocation2 + $0x84] sm:$0xf]
    %v78 = vld [vmem:[#allocation2 + $0x88] sm:$0xf]
    %v79 = vld [vmem:[#allocation2 + $0x8c] sm:$0xf]
    %v80 = vld [vmem:[#allocation2 + $0x90] sm:$0xf]
    %v81 = vld [vmem:[#allocation2 + $0x94] sm:$0xf]
    %v82 = vld [vmem:[#allocation2 + $0x98] sm:$0xf]
    %v83 = vld [vmem:[#allocation2 + $0x9c] sm:$0xf]
    %v84 = vld [vmem:[#allocation2 + $0xa0] sm:$0xf]
    %v85 = vld [vmem:[#allocation2 + $0xa4] sm:$0xf]
    %v86 = vld [vmem:[#allocation2 + $0xa8] sm:$0xf]
    %v87 = vld [vmem:[#allocation2 + $0xac] sm:$0xf]
    %v88 = vld [vmem:[#allocation2 + $0xb0] sm:$0xf]
    %v89 = vld [vmem:[#allocation2 + $0xb4] sm:$0xf]
    %v90 = vld [vmem:[#allocation2 + $0xb8] sm:$0xf]
    %v91 = vld [vmem:[#allocation2 + $0xbc] sm:$0xf]
    %v92 = vld [vmem:[#allocation2 + $0xc0] sm:$0xf]
    %v93 = vld [vmem:[#allocation2 + $0xc4] sm:$0xf]
    %v94 = vld [vmem:[#allocation2 + $0xc8] sm:$0xf]
    %v95 = vld [vmem:[#allocation2 + $0xcc] sm:$0xf]
    %v96 = vld [vmem:[#allocation2 + $0xd0] sm:$0xf]
    %v97 = vld [vmem:[#allocation2 + $0xd4] sm:$0xf]
    %v98 = vld [vmem:[#allocation2 + $0xd8] sm:$0xf]
    %v99 = vld [vmem:[#allocation2 + $0xdc] sm:$0xf]
    %v100 = vld [vmem:[#allocation2 + $0xe0] sm:$0xf]
    %v101 = vld [vmem:[#allocation2 + $0xe4] sm:$0xf]
    %v102 = vld [vmem:[#allocation2 + $0xe8] sm:$0xf]
    %v103 = vld [vmem:[#allocation2 + $0xec] sm:$0xf]
    %v104 = vld [vmem:[#allocation2 + $0xf0] sm:$0xf]
    %v105 = vld [vmem:[#allocation2 + $0xf4] sm:$0xf]
    %v106 = vld [vmem:[#allocation2 + $0xf8] sm:$0xf]
    %v107 = vld [vmem:[#allocation2 + $0xfc] sm:$0xf]
    %v108 = vld [vmem:[#allocation5] sm:$0xf]
    %v109 = vld [vmem:[#allocation5 + $0x4] sm:$0xf]
    %v110 = vld [vmem:[#allocation5 + $0x8] sm:$0xf]
    %v111 = vld [vmem:[#allocation5 + $0xc] sm:$0xf]
    %v112 = vld [vmem:[#allocation5 + $0x10] sm:$0xf]
    %v113 = vld [vmem:[#allocation5 + $0x14] sm:$0xf]
    %v114 = vld [vmem:[#allocation5 + $0x18] sm:$0xf]
    %v115 = vld [vmem:[#allocation5 + $0x1c] sm:$0xf]
    %v116 = vld [vmem:[#allocation5 + $0x20] sm:$0xf]
    %v117 = vld [vmem:[#allocation5 + $0x24] sm:$0xf]
    %v118 = vld [vmem:[#allocation5 + $0x28] sm:$0xf]
    %v119 = vld [vmem:[#allocation5 + $0x2c] sm:$0xf]
    %v120 = vld [vmem:[#allocation5 + $0x30] sm:$0xf]
    %v121 = vld [vmem:[#allocation5 + $0x34] sm:$0xf]
    %v122 = vld [vmem:[#allocation5 + $0x38] sm:$0xf]
    %v123 = vld [vmem:[#allocation5 + $0x3c] sm:$0xf]
    %v188 = vunpack.c.l.b16 %v44
    %v189 = vunpack.c.l.b16 %v45
    %v190 = vunpack.c.l.b16 %v46
    %v191 = vunpack.c.l.b16 %v47
    %v192 = vunpack.c.l.b16 %v48
    %v193 = vunpack.c.l.b16 %v49
    %v194 = vunpack.c.l.b16 %v50
    %v195 = vunpack.c.l.b16 %v51
    %v196 = vunpack.c.l.b16 %v52
    %v197 = vunpack.c.l.b16 %v53
    %v198 = vunpack.c.l.b16 %v54
    %v199 = vunpack.c.l.b16 %v55
    %v200 = vunpack.c.l.b16 %v56
    %v201 = vunpack.c.l.b16 %v57
    %v202 = vunpack.c.l.b16 %v58
    %v203 = vunpack.c.l.b16 %v59
    %v204 = vunpack.c.l.b16 %v60
    %v205 = vunpack.c.l.b16 %v61
    %v206 = vunpack.c.l.b16 %v62
    %v207 = vunpack.c.l.b16 %v63
    %v208 = vunpack.c.l.b16 %v64
    %v209 = vunpack.c.l.b16 %v65
    %v210 = vunpack.c.l.b16 %v66
    %v211 = vunpack.c.l.b16 %v67
    %v212 = vunpack.c.l.b16 %v68
    %v213 = vunpack.c.l.b16 %v69
    %v214 = vunpack.c.l.b16 %v70
    %v215 = vunpack.c.l.b16 %v71
    %v216 = vunpack.c.l.b16 %v72
    %v217 = vunpack.c.l.b16 %v73
    %v218 = vunpack.c.l.b16 %v74
    %v219 = vunpack.c.l.b16 %v75
    %v220 = vunpack.c.l.b16 %v76
    %v221 = vunpack.c.l.b16 %v77
    %v222 = vunpack.c.l.b16 %v78
    %v223 = vunpack.c.l.b16 %v79
    %v224 = vunpack.c.l.b16 %v80
    %v225 = vunpack.c.l.b16 %v81
    %v226 = vunpack.c.l.b16 %v82
    %v227 = vunpack.c.l.b16 %v83
    %v228 = vunpack.c.l.b16 %v84
    %v229 = vunpack.c.l.b16 %v85
    %v230 = vunpack.c.l.b16 %v86
    %v231 = vunpack.c.l.b16 %v87
    %v232 = vunpack.c.l.b16 %v88
    %v233 = vunpack.c.l.b16 %v89
    %v234 = vunpack.c.l.b16 %v90
    %v235 = vunpack.c.l.b16 %v91
    %v236 = vunpack.c.l.b16 %v92
    %v237 = vunpack.c.l.b16 %v93
    %v238 = vunpack.c.l.b16 %v94
    %v239 = vunpack.c.l.b16 %v95
    %v240 = vunpack.c.l.b16 %v96
    %v241 = vunpack.c.l.b16 %v97
    %v242 = vunpack.c.l.b16 %v98
    %v243 = vunpack.c.l.b16 %v99
    %v244 = vunpack.c.l.b16 %v100
    %v245 = vunpack.c.l.b16 %v101
    %v246 = vunpack.c.l.b16 %v102
    %v247 = vunpack.c.l.b16 %v103
    %v248 = vunpack.c.l.b16 %v104
    %v249 = vunpack.c.l.b16 %v105
    %v250 = vunpack.c.l.b16 %v106
    %v251 = vunpack.c.l.b16 %v107
    %v252 = vpack.c.b16 %v189, %v188
    %v253 = vpack.c.b16 %v191, %v190
    %v254 = vpack.c.b16 %v193, %v192
    %v255 = vpack.c.b16 %v195, %v194
    %v256 = vpack.c.b16 %v197, %v196
    %v257 = vpack.c.b16 %v199, %v198
    %v258 = vpack.c.b16 %v201, %v200
    %v259 = vpack.c.b16 %v203, %v202
    %v260 = vpack.c.b16 %v205, %v204
    %v261 = vpack.c.b16 %v207, %v206
    %v262 = vpack.c.b16 %v209, %v208
    %v263 = vpack.c.b16 %v211, %v210
    %v264 = vpack.c.b16 %v213, %v212
    %v265 = vpack.c.b16 %v215, %v214
    %v266 = vpack.c.b16 %v217, %v216
    %v267 = vpack.c.b16 %v219, %v218
    %v268 = vpack.c.b16 %v221, %v220
    %v269 = vpack.c.b16 %v223, %v222
    %v270 = vpack.c.b16 %v225, %v224
    %v271 = vpack.c.b16 %v227, %v226
    %v272 = vpack.c.b16 %v229, %v228
    %v273 = vpack.c.b16 %v231, %v230
    %v274 = vpack.c.b16 %v233, %v232
    %v275 = vpack.c.b16 %v235, %v234
    %v276 = vpack.c.b16 %v237, %v236
    %v277 = vpack.c.b16 %v239, %v238
    %v278 = vpack.c.b16 %v241, %v240
    %v279 = vpack.c.b16 %v243, %v242
    %v280 = vpack.c.b16 %v245, %v244
    %v281 = vpack.c.b16 %v247, %v246
    %v282 = vpack.c.b16 %v249, %v248
    %v283 = vpack.c.b16 %v251, %v250
    %v332 = vunpack.c.l.b16 %v108
    %v333 = vunpack.c.l.b16 %v109
    %v334 = vunpack.c.l.b16 %v110
    %v335 = vunpack.c.l.b16 %v111
    %v336 = vunpack.c.l.b16 %v112
    %v337 = vunpack.c.l.b16 %v113
    %v338 = vunpack.c.l.b16 %v114
    %v339 = vunpack.c.l.b16 %v115
    %v340 = vunpack.c.l.b16 %v116
    %v341 = vunpack.c.l.b16 %v117
    %v342 = vunpack.c.l.b16 %v118
    %v343 = vunpack.c.l.b16 %v119
    %v344 = vunpack.c.l.b16 %v120
    %v345 = vunpack.c.l.b16 %v121
    %v346 = vunpack.c.l.b16 %v122
    %v347 = vunpack.c.l.b16 %v123
    %v348 = vpack.c.b16 %v333, %v332
    %v349 = vpack.c.b16 %v335, %v334
    %v350 = vpack.c.b16 %v337, %v336
    %v351 = vpack.c.b16 %v339, %v338
    %v352 = vpack.c.b16 %v341, %v340
    %v353 = vpack.c.b16 %v343, %v342
    %v354 = vpack.c.b16 %v345, %v344
    %v355 = vpack.c.b16 %v347, %v346
    %364 = vmatprep.subr.bf16.mxu0 0
    %365 = vmatpush1.bf16.msra.mxu0 %v355
    %366 = vmatprep.subr.bf16.mxu0 0
    %367 = vmatpush1.bf16.msra.mxu0 %v354
    %368 = vmatprep.subr.bf16.mxu0 0
    %369 = vmatpush1.bf16.msra.mxu0 %v353
    %370 = vmatprep.subr.bf16.mxu0 0
    %371 = vmatpush1.bf16.msra.mxu0 %v352
    %372 = vmatprep.subr.bf16.mxu0 0
    %373 = vmatpush1.bf16.msra.mxu0 %v351
    %374 = vmatprep.subr.bf16.mxu0 0
    %375 = vmatpush1.bf16.msra.mxu0 %v350
    %376 = vmatprep.subr.bf16.mxu0 0
    %377 = vmatpush1.bf16.msra.mxu0 %v349
    %378 = vmatprep.subr.bf16.mxu0 0
    %379 = vmatpush1.bf16.msra.mxu0 %v348
    %380 = vmatprep.subr.bf16.mxu0 0
    %381 = vmatpush2.bf16.msra.mxu0 0
    %382 = vmatprep.subr.bf16.mxu0 0
    %383 = vmatpush2.bf16.msra.mxu0 0
    %384 = vmatprep.subr.bf16.mxu0 0
    %385 = vmatpush2.bf16.msra.mxu0 0
    %386 = vmatprep.subr.bf16.mxu0 0
    %387 = vmatpush2.bf16.msra.mxu0 0
    %388 = vmatprep.subr.bf16.mxu0 0
    %389 = vmatpush2.bf16.msra.mxu0 0
    %390 = vmatprep.subr.bf16.mxu0 0
    %391 = vmatpush2.bf16.msra.mxu0 0
    %392 = vmatprep.subr.bf16.mxu0 0
    %393 = vmatpush2.bf16.msra.mxu0 0
    %394 = vmatprep.subr.bf16.mxu0 0
    %395 = vmatpush2.bf16.msra.mxu0 0
    %396 = vmatprep.mubr.bf16.mxu0 0
    %397 = vmatmul.mubr.bf16.gmra.mxu0 %v252
    %v398 = vpop.f32.mrf.mxu0
    %v399 = vadd.f32 0.0, %v398
    %v400 = vpop.f32.mrf.mxu0
    %v401 = vpop.f32.mrf.mxu0
    %v402 = vadd.f32 0.0, %v401
    %v403 = vpop.f32.mrf.mxu0
    %404 = vmatprep.mubr.bf16.mxu0 0
    %405 = vmatmul.mubr.bf16.gmra.mxu0 %v253
    %v406 = vpop.f32.mrf.mxu0
    %v407 = vadd.f32 0.0, %v406
    %v408 = vpop.f32.mrf.mxu0
    %v409 = vpop.f32.mrf.mxu0
    %v410 = vadd.f32 0.0, %v409
    %v411 = vpop.f32.mrf.mxu0
    %412 = vmatprep.mubr.bf16.mxu0 0
    %413 = vmatmul.mubr.bf16.gmra.mxu0 %v254
    %v414 = vpop.f32.mrf.mxu0
    %v415 = vadd.f32 0.0, %v414
    %v416 = vpop.f32.mrf.mxu0
    %v417 = vpop.f32.mrf.mxu0
    %v418 = vadd.f32 0.0, %v417
    %v419 = vpop.f32.mrf.mxu0
    %420 = vmatprep.mubr.bf16.mxu0 0
    %421 = vmatmul.mubr.bf16.gmra.mxu0 %v255
    %v422 = vpop.f32.mrf.mxu0
    %v423 = vadd.f32 0.0, %v422
    %v424 = vpop.f32.mrf.mxu0
    %v425 = vpop.f32.mrf.mxu0
    %v426 = vadd.f32 0.0, %v425
    %v427 = vpop.f32.mrf.mxu0
    %428 = vmatprep.mubr.bf16.mxu0 0
    %429 = vmatmul.mubr.bf16.gmra.mxu0 %v256
    %v430 = vpop.f32.mrf.mxu0
    %v431 = vadd.f32 0.0, %v430
    %v432 = vpop.f32.mrf.mxu0
    %v433 = vpop.f32.mrf.mxu0
    %v434 = vadd.f32 0.0, %v433
    %v435 = vpop.f32.mrf.mxu0
    %436 = vmatprep.mubr.bf16.mxu0 0
    %437 = vmatmul.mubr.bf16.gmra.mxu0 %v257
    %v438 = vpop.f32.mrf.mxu0
    %v439 = vadd.f32 0.0, %v438
    %v440 = vpop.f32.mrf.mxu0
    %v441 = vpop.f32.mrf.mxu0
    %v442 = vadd.f32 0.0, %v441
    %v443 = vpop.f32.mrf.mxu0
    %444 = vmatprep.mubr.bf16.mxu0 0
    %445 = vmatmul.mubr.bf16.gmra.mxu0 %v258
    %v446 = vpop.f32.mrf.mxu0
    %v447 = vadd.f32 0.0, %v446
    %v448 = vpop.f32.mrf.mxu0
    %v449 = vpop.f32.mrf.mxu0
    %v450 = vadd.f32 0.0, %v449
    %v451 = vpop.f32.mrf.mxu0
    %452 = vmatprep.mubr.bf16.mxu0 0
    %453 = vmatmul.mubr.bf16.gmra.mxu0 %v259
    %v454 = vpop.f32.mrf.mxu0
    %v455 = vadd.f32 0.0, %v454
    %v456 = vpop.f32.mrf.mxu0
    %v457 = vpop.f32.mrf.mxu0
    %v458 = vadd.f32 0.0, %v457
    %v459 = vpop.f32.mrf.mxu0
    %460 = vmatprep.mubr.bf16.mxu0 0
    %461 = vmatmul.mubr.bf16.gmra.mxu0 %v260
    %v462 = vpop.f32.mrf.mxu0
    %v463 = vadd.f32 0.0, %v462
    %v464 = vpop.f32.mrf.mxu0
    %v465 = vpop.f32.mrf.mxu0
    %v466 = vadd.f32 0.0, %v465
    %v467 = vpop.f32.mrf.mxu0
    %468 = vmatprep.mubr.bf16.mxu0 0
    %469 = vmatmul.mubr.bf16.gmra.mxu0 %v261
    %v470 = vpop.f32.mrf.mxu0
    %v471 = vadd.f32 0.0, %v470
    %v472 = vpop.f32.mrf.mxu0
    %v473 = vpop.f32.mrf.mxu0
    %v474 = vadd.f32 0.0, %v473
    %v475 = vpop.f32.mrf.mxu0
    %476 = vmatprep.mubr.bf16.mxu0 0
    %477 = vmatmul.mubr.bf16.gmra.mxu0 %v262
    %v478 = vpop.f32.mrf.mxu0
    %v479 = vadd.f32 0.0, %v478
    %v480 = vpop.f32.mrf.mxu0
    %v481 = vpop.f32.mrf.mxu0
    %v482 = vadd.f32 0.0, %v481
    %v483 = vpop.f32.mrf.mxu0
    %484 = vmatprep.mubr.bf16.mxu0 0
    %485 = vmatmul.mubr.bf16.gmra.mxu0 %v263
    %v486 = vpop.f32.mrf.mxu0
    %v487 = vadd.f32 0.0, %v486
    %v488 = vpop.f32.mrf.mxu0
    %v489 = vpop.f32.mrf.mxu0
    %v490 = vadd.f32 0.0, %v489
    %v491 = vpop.f32.mrf.mxu0
    %492 = vmatprep.mubr.bf16.mxu0 0
    %493 = vmatmul.mubr.bf16.gmra.mxu0 %v264
    %v494 = vpop.f32.mrf.mxu0
    %v495 = vadd.f32 0.0, %v494
    %v496 = vpop.f32.mrf.mxu0
    %v497 = vpop.f32.mrf.mxu0
    %v498 = vadd.f32 0.0, %v497
    %v499 = vpop.f32.mrf.mxu0
    %500 = vmatprep.mubr.bf16.mxu0 0
    %501 = vmatmul.mubr.bf16.gmra.mxu0 %v265
    %v502 = vpop.f32.mrf.mxu0
    %v503 = vadd.f32 0.0, %v502
    %v504 = vpop.f32.mrf.mxu0
    %v505 = vpop.f32.mrf.mxu0
    %v506 = vadd.f32 0.0, %v505
    %v507 = vpop.f32.mrf.mxu0
    %508 = vmatprep.mubr.bf16.mxu0 0
    %509 = vmatmul.mubr.bf16.gmra.mxu0 %v266
    %v510 = vpop.f32.mrf.mxu0
    %v511 = vadd.f32 0.0, %v510
    %v512 = vpop.f32.mrf.mxu0
    %v513 = vpop.f32.mrf.mxu0
    %v514 = vadd.f32 0.0, %v513
    %v515 = vpop.f32.mrf.mxu0
    %516 = vmatprep.mubr.bf16.mxu0 0
    %517 = vmatmul.mubr.bf16.gmra.mxu0 %v267
    %v518 = vpop.f32.mrf.mxu0
    %v519 = vadd.f32 0.0, %v518
    %v520 = vpop.f32.mrf.mxu0
    %v521 = vpop.f32.mrf.mxu0
    %v522 = vadd.f32 0.0, %v521
    %v523 = vpop.f32.mrf.mxu0
    %524 = vmatprep.mubr.bf16.mxu0 0
    %525 = vmatmul.mubr.bf16.gmra.mxu0 %v268
    %v526 = vpop.f32.mrf.mxu0
    %v527 = vadd.f32 0.0, %v526
    %v528 = vpop.f32.mrf.mxu0
    %v529 = vpop.f32.mrf.mxu0
    %v530 = vadd.f32 0.0, %v529
    %v531 = vpop.f32.mrf.mxu0
    %532 = vmatprep.mubr.bf16.mxu0 0
    %533 = vmatmul.mubr.bf16.gmra.mxu0 %v269
    %v534 = vpop.f32.mrf.mxu0
    %v535 = vadd.f32 0.0, %v534
    %v536 = vpop.f32.mrf.mxu0
    %v537 = vpop.f32.mrf.mxu0
    %v538 = vadd.f32 0.0, %v537
    %v539 = vpop.f32.mrf.mxu0
    %540 = vmatprep.mubr.bf16.mxu0 0
    %541 = vmatmul.mubr.bf16.gmra.mxu0 %v270
    %v542 = vpop.f32.mrf.mxu0
    %v543 = vadd.f32 0.0, %v542
    %v544 = vpop.f32.mrf.mxu0
    %v545 = vpop.f32.mrf.mxu0
    %v546 = vadd.f32 0.0, %v545
    %v547 = vpop.f32.mrf.mxu0
    %548 = vmatprep.mubr.bf16.mxu0 0
    %549 = vmatmul.mubr.bf16.gmra.mxu0 %v271
    %v550 = vpop.f32.mrf.mxu0
    %v551 = vadd.f32 0.0, %v550
    %v552 = vpop.f32.mrf.mxu0
    %v553 = vpop.f32.mrf.mxu0
    %v554 = vadd.f32 0.0, %v553
    %v555 = vpop.f32.mrf.mxu0
    %556 = vmatprep.mubr.bf16.mxu0 0
    %557 = vmatmul.mubr.bf16.gmra.mxu0 %v272
    %v558 = vpop.f32.mrf.mxu0
    %v559 = vadd.f32 0.0, %v558
    %v560 = vpop.f32.mrf.mxu0
    %v561 = vpop.f32.mrf.mxu0
    %v562 = vadd.f32 0.0, %v561
    %v563 = vpop.f32.mrf.mxu0
    %564 = vmatprep.mubr.bf16.mxu0 0
    %565 = vmatmul.mubr.bf16.gmra.mxu0 %v273
    %v566 = vpop.f32.mrf.mxu0
    %v567 = vadd.f32 0.0, %v566
    %v568 = vpop.f32.mrf.mxu0
    %v569 = vpop.f32.mrf.mxu0
    %v570 = vadd.f32 0.0, %v569
    %v571 = vpop.f32.mrf.mxu0
    %572 = vmatprep.mubr.bf16.mxu0 0
    %573 = vmatmul.mubr.bf16.gmra.mxu0 %v274
    %v574 = vpop.f32.mrf.mxu0
    %v575 = vadd.f32 0.0, %v574
    %v576 = vpop.f32.mrf.mxu0
    %v577 = vpop.f32.mrf.mxu0
    %v578 = vadd.f32 0.0, %v577
    %v579 = vpop.f32.mrf.mxu0
    %580 = vmatprep.mubr.bf16.mxu0 0
    %581 = vmatmul.mubr.bf16.gmra.mxu0 %v275
    %v582 = vpop.f32.mrf.mxu0
    %v583 = vadd.f32 0.0, %v582
    %v584 = vpop.f32.mrf.mxu0
    %v585 = vpop.f32.mrf.mxu0
    %v586 = vadd.f32 0.0, %v585
    %v587 = vpop.f32.mrf.mxu0
    %588 = vmatprep.mubr.bf16.mxu0 0
    %589 = vmatmul.mubr.bf16.gmra.mxu0 %v276
    %v590 = vpop.f32.mrf.mxu0
    %v591 = vadd.f32 0.0, %v590
    %v592 = vpop.f32.mrf.mxu0
    %v593 = vpop.f32.mrf.mxu0
    %v594 = vadd.f32 0.0, %v593
    %v595 = vpop.f32.mrf.mxu0
    %596 = vmatprep.mubr.bf16.mxu0 0
    %597 = vmatmul.mubr.bf16.gmra.mxu0 %v277
    %v598 = vpop.f32.mrf.mxu0
    %v599 = vadd.f32 0.0, %v598
    %v600 = vpop.f32.mrf.mxu0
    %v601 = vpop.f32.mrf.mxu0
    %v602 = vadd.f32 0.0, %v601
    %v603 = vpop.f32.mrf.mxu0
    %604 = vmatprep.mubr.bf16.mxu0 0
    %605 = vmatmul.mubr.bf16.gmra.mxu0 %v278
    %v606 = vpop.f32.mrf.mxu0
    %v607 = vadd.f32 0.0, %v606
    %v608 = vpop.f32.mrf.mxu0
    %v609 = vpop.f32.mrf.mxu0
    %v610 = vadd.f32 0.0, %v609
    %v611 = vpop.f32.mrf.mxu0
    %612 = vmatprep.mubr.bf16.mxu0 0
    %613 = vmatmul.mubr.bf16.gmra.mxu0 %v279
    %v614 = vpop.f32.mrf.mxu0
    %v615 = vadd.f32 0.0, %v614
    %v616 = vpop.f32.mrf.mxu0
    %v617 = vpop.f32.mrf.mxu0
    %v618 = vadd.f32 0.0, %v617
    %v619 = vpop.f32.mrf.mxu0
    %620 = vmatprep.mubr.bf16.mxu0 0
    %621 = vmatmul.mubr.bf16.gmra.mxu0 %v280
    %v622 = vpop.f32.mrf.mxu0
    %v623 = vadd.f32 0.0, %v622
    %v624 = vpop.f32.mrf.mxu0
    %v625 = vpop.f32.mrf.mxu0
    %v626 = vadd.f32 0.0, %v625
    %v627 = vpop.f32.mrf.mxu0
    %628 = vmatprep.mubr.bf16.mxu0 0
    %629 = vmatmul.mubr.bf16.gmra.mxu0 %v281
    %v630 = vpop.f32.mrf.mxu0
    %v631 = vadd.f32 0.0, %v630
    %v632 = vpop.f32.mrf.mxu0
    %v633 = vpop.f32.mrf.mxu0
    %v634 = vadd.f32 0.0, %v633
    %v635 = vpop.f32.mrf.mxu0
    %636 = vmatprep.mubr.bf16.mxu0 0
    %637 = vmatmul.mubr.bf16.gmra.mxu0 %v282
    %v638 = vpop.f32.mrf.mxu0
    %v639 = vadd.f32 0.0, %v638
    %v640 = vpop.f32.mrf.mxu0
    %v641 = vpop.f32.mrf.mxu0
    %v642 = vadd.f32 0.0, %v641
    %v643 = vpop.f32.mrf.mxu0
    %644 = vmatprep.mubr.bf16.mxu0 0
    %645 = vmatmul.mubr.bf16.gmra.mxu0 %v283
    %v646 = vpop.f32.mrf.mxu0
    %v647 = vadd.f32 0.0, %v646
    %v648 = vpop.f32.mrf.mxu0
    %v649 = vpop.f32.mrf.mxu0
    %v650 = vadd.f32 0.0, %v649
    %v651 = vpop.f32.mrf.mxu0
    %652 = vdwg.mxu0
    %v653 = vld [vmem:[%s2] sm:$0x1]
    %v654 = vlaneseq
    %v655 = vshrl.u32 %v654, 7
    %v656 = vsub.s32 0, %v655
    %v657 = vrot.slane %v653, %v656
    %v658 = vmul.f32 %v399, %v657
    %v659 = vmul.f32 %v402, %v657
    %v660 = vmul.f32 %v407, %v657
    %v661 = vmul.f32 %v410, %v657
    %v662 = vmul.f32 %v415, %v657
    %v663 = vmul.f32 %v418, %v657
    %v664 = vmul.f32 %v423, %v657
    %v665 = vmul.f32 %v426, %v657
    %v666 = vmul.f32 %v431, %v657
    %v667 = vmul.f32 %v434, %v657
    %v668 = vmul.f32 %v439, %v657
    %v669 = vmul.f32 %v442, %v657
    %v670 = vmul.f32 %v447, %v657
    %v671 = vmul.f32 %v450, %v657
    %v672 = vmul.f32 %v455, %v657
    %v673 = vmul.f32 %v458, %v657
    %v674 = vmul.f32 %v463, %v657
    %v675 = vmul.f32 %v466, %v657
    %v676 = vmul.f32 %v471, %v657
    %v677 = vmul.f32 %v474, %v657
    %v678 = vmul.f32 %v479, %v657
    %v679 = vmul.f32 %v482, %v657
    %v680 = vmul.f32 %v487, %v657
    %v681 = vmul.f32 %v490, %v657
    %v682 = vmul.f32 %v495, %v657
    %v683 = vmul.f32 %v498, %v657
    %v684 = vmul.f32 %v503, %v657
    %v685 = vmul.f32 %v506, %v657
    %v686 = vmul.f32 %v511, %v657
    %v687 = vmul.f32 %v514, %v657
    %v688 = vmul.f32 %v519, %v657
    %v689 = vmul.f32 %v522, %v657
    %v690 = vmul.f32 %v527, %v657
    %v691 = vmul.f32 %v530, %v657
    %v692 = vmul.f32 %v535, %v657
    %v693 = vmul.f32 %v538, %v657
    %v694 = vmul.f32 %v543, %v657
    %v695 = vmul.f32 %v546, %v657
    %v696 = vmul.f32 %v551, %v657
    %v697 = vmul.f32 %v554, %v657
    %v698 = vmul.f32 %v559, %v657
    %v699 = vmul.f32 %v562, %v657
    %v700 = vmul.f32 %v567, %v657
    %v701 = vmul.f32 %v570, %v657
    %v702 = vmul.f32 %v575, %v657
    %v703 = vmul.f32 %v578, %v657
    %v704 = vmul.f32 %v583, %v657
    %v705 = vmul.f32 %v586, %v657
    %v706 = vmul.f32 %v591, %v657
    %v707 = vmul.f32 %v594, %v657
    %v708 = vmul.f32 %v599, %v657
    %v709 = vmul.f32 %v602, %v657
    %v710 = vmul.f32 %v607, %v657
    %v711 = vmul.f32 %v610, %v657
    %v712 = vmul.f32 %v615, %v657
    %v713 = vmul.f32 %v618, %v657
    %v714 = vmul.f32 %v623, %v657
    %v715 = vmul.f32 %v626, %v657
    %v716 = vmul.f32 %v631, %v657
    %v717 = vmul.f32 %v634, %v657
    %v718 = vmul.f32 %v639, %v657
    %v719 = vmul.f32 %v642, %v657
    %v720 = vmul.f32 %v647, %v657
    %v721 = vmul.f32 %v650, %v657
    %v722 = vld [vmem:[%s2 + $0x1] sm:$0x1]
    %v723 = vlaneseq
    %v724 = vshrl.u32 %v723, 7
    %v725 = vsub.s32 0, %v724
    %v726 = vrot.slane %v722, %v725
    %v727 = vadd.f32 %v658, %v726
    %v728 = vadd.f32 %v659, %v726
    %v729 = vadd.f32 %v660, %v726
    %v730 = vadd.f32 %v661, %v726
    %v731 = vadd.f32 %v662, %v726
    %v732 = vadd.f32 %v663, %v726
    %v733 = vadd.f32 %v664, %v726
    %v734 = vadd.f32 %v665, %v726
    %v735 = vadd.f32 %v666, %v726
    %v736 = vadd.f32 %v667, %v726
    %v737 = vadd.f32 %v668, %v726
    %v738 = vadd.f32 %v669, %v726
    %v739 = vadd.f32 %v670, %v726
    %v740 = vadd.f32 %v671, %v726
    %v741 = vadd.f32 %v672, %v726
    %v742 = vadd.f32 %v673, %v726
    %v743 = vadd.f32 %v674, %v726
    %v744 = vadd.f32 %v675, %v726
    %v745 = vadd.f32 %v676, %v726
    %v746 = vadd.f32 %v677, %v726
    %v747 = vadd.f32 %v678, %v726
    %v748 = vadd.f32 %v679, %v726
    %v749 = vadd.f32 %v680, %v726
    %v750 = vadd.f32 %v681, %v726
    %v751 = vadd.f32 %v682, %v726
    %v752 = vadd.f32 %v683, %v726
    %v753 = vadd.f32 %v684, %v726
    %v754 = vadd.f32 %v685, %v726
    %v755 = vadd.f32 %v686, %v726
    %v756 = vadd.f32 %v687, %v726
    %v757 = vadd.f32 %v688, %v726
    %v758 = vadd.f32 %v689, %v726
    %v759 = vadd.f32 %v690, %v726
    %v760 = vadd.f32 %v691, %v726
    %v761 = vadd.f32 %v692, %v726
    %v762 = vadd.f32 %v693, %v726
    %v763 = vadd.f32 %v694, %v726
    %v764 = vadd.f32 %v695, %v726
    %v765 = vadd.f32 %v696, %v726
    %v766 = vadd.f32 %v697, %v726
    %v767 = vadd.f32 %v698, %v726
    %v768 = vadd.f32 %v699, %v726
    %v769 = vadd.f32 %v700, %v726
    %v770 = vadd.f32 %v701, %v726
    %v771 = vadd.f32 %v702, %v726
    %v772 = vadd.f32 %v703, %v726
    %v773 = vadd.f32 %v704, %v726
    %v774 = vadd.f32 %v705, %v726
    %v775 = vadd.f32 %v706, %v726
    %v776 = vadd.f32 %v707, %v726
    %v777 = vadd.f32 %v708, %v726
    %v778 = vadd.f32 %v709, %v726
    %v779 = vadd.f32 %v710, %v726
    %v780 = vadd.f32 %v711, %v726
    %v781 = vadd.f32 %v712, %v726
    %v782 = vadd.f32 %v713, %v726
    %v783 = vadd.f32 %v714, %v726
    %v784 = vadd.f32 %v715, %v726
    %v785 = vadd.f32 %v716, %v726
    %v786 = vadd.f32 %v717, %v726
    %v787 = vadd.f32 %v718, %v726
    %v788 = vadd.f32 %v719, %v726
    %v789 = vadd.f32 %v720, %v726
    %v790 = vadd.f32 %v721, %v726
    %v791 = vmax.f32 %v727, 0.0
    %v792 = vmax.f32 %v728, 0.0
    %v793 = vmax.f32 %v729, 0.0
    %v794 = vmax.f32 %v730, 0.0
    %v795 = vmax.f32 %v731, 0.0
    %v796 = vmax.f32 %v732, 0.0
    %v797 = vmax.f32 %v733, 0.0
    %v798 = vmax.f32 %v734, 0.0
    %v799 = vmax.f32 %v735, 0.0
    %v800 = vmax.f32 %v736, 0.0
    %v801 = vmax.f32 %v737, 0.0
    %v802 = vmax.f32 %v738, 0.0
    %v803 = vmax.f32 %v739, 0.0
    %v804 = vmax.f32 %v740, 0.0
    %v805 = vmax.f32 %v741, 0.0
    %v806 = vmax.f32 %v742, 0.0
    %v807 = vmax.f32 %v743, 0.0
    %v808 = vmax.f32 %v744, 0.0
    %v809 = vmax.f32 %v745, 0.0
    %v810 = vmax.f32 %v746, 0.0
    %v811 = vmax.f32 %v747, 0.0
    %v812 = vmax.f32 %v748, 0.0
    %v813 = vmax.f32 %v749, 0.0
    %v814 = vmax.f32 %v750, 0.0
    %v815 = vmax.f32 %v751, 0.0
    %v816 = vmax.f32 %v752, 0.0
    %v817 = vmax.f32 %v753, 0.0
    %v818 = vmax.f32 %v754, 0.0
    %v819 = vmax.f32 %v755, 0.0
    %v820 = vmax.f32 %v756, 0.0
    %v821 = vmax.f32 %v757, 0.0
    %v822 = vmax.f32 %v758, 0.0
    %v823 = vmax.f32 %v759, 0.0
    %v824 = vmax.f32 %v760, 0.0
    %v825 = vmax.f32 %v761, 0.0
    %v826 = vmax.f32 %v762, 0.0
    %v827 = vmax.f32 %v763, 0.0
    %v828 = vmax.f32 %v764, 0.0
    %v829 = vmax.f32 %v765, 0.0
    %v830 = vmax.f32 %v766, 0.0
    %v831 = vmax.f32 %v767, 0.0
    %v832 = vmax.f32 %v768, 0.0
    %v833 = vmax.f32 %v769, 0.0
    %v834 = vmax.f32 %v770, 0.0
    %v835 = vmax.f32 %v771, 0.0
    %v836 = vmax.f32 %v772, 0.0
    %v837 = vmax.f32 %v773, 0.0
    %v838 = vmax.f32 %v774, 0.0
    %v839 = vmax.f32 %v775, 0.0
    %v840 = vmax.f32 %v776, 0.0
    %v841 = vmax.f32 %v777, 0.0
    %v842 = vmax.f32 %v778, 0.0
    %v843 = vmax.f32 %v779, 0.0
    %v844 = vmax.f32 %v780, 0.0
    %v845 = vmax.f32 %v781, 0.0
    %v846 = vmax.f32 %v782, 0.0
    %v847 = vmax.f32 %v783, 0.0
    %v848 = vmax.f32 %v784, 0.0
    %v849 = vmax.f32 %v785, 0.0
    %v850 = vmax.f32 %v786, 0.0
    %v851 = vmax.f32 %v787, 0.0
    %v852 = vmax.f32 %v788, 0.0
    %v853 = vmax.f32 %v789, 0.0
    %v854 = vmax.f32 %v790, 0.0
    %855 = vst [vmem:[#allocation7] sm:$0xff] %v791
    %856 = vst [vmem:[#allocation7 + $0x8] sm:$0xff] %v792
    %857 = vst [vmem:[#allocation7 + $0x10] sm:$0xff] %v793
    %858 = vst [vmem:[#allocation7 + $0x18] sm:$0xff] %v794
    %859 = vst [vmem:[#allocation7 + $0x20] sm:$0xff] %v795
    %860 = vst [vmem:[#allocation7 + $0x28] sm:$0xff] %v796
    %861 = vst [vmem:[#allocation7 + $0x30] sm:$0xff] %v797
    %862 = vst [vmem:[#allocation7 + $0x38] sm:$0xff] %v798
    %863 = vst [vmem:[#allocation7 + $0x40] sm:$0xff] %v799
    %864 = vst [vmem:[#allocation7 + $0x48] sm:$0xff] %v800
    %865 = vst [vmem:[#allocation7 + $0x50] sm:$0xff] %v801
    %866 = vst [vmem:[#allocation7 + $0x58] sm:$0xff] %v802
    %867 = vst [vmem:[#allocation7 + $0x60] sm:$0xff] %v803
    %868 = vst [vmem:[#allocation7 + $0x68] sm:$0xff] %v804
    %869 = vst [vmem:[#allocation7 + $0x70] sm:$0xff] %v805
    %870 = vst [vmem:[#allocation7 + $0x78] sm:$0xff] %v806
    %871 = vst [vmem:[#allocation7 + $0x80] sm:$0xff] %v807
    %872 = vst [vmem:[#allocation7 + $0x88] sm:$0xff] %v808
    %873 = vst [vmem:[#allocation7 + $0x90] sm:$0xff] %v809
    %874 = vst [vmem:[#allocation7 + $0x98] sm:$0xff] %v810
    %875 = vst [vmem:[#allocation7 + $0xa0] sm:$0xff] %v811
    %876 = vst [vmem:[#allocation7 + $0xa8] sm:$0xff] %v812
    %877 = vst [vmem:[#allocation7 + $0xb0] sm:$0xff] %v813
    %878 = vst [vmem:[#allocation7 + $0xb8] sm:$0xff] %v814
    %879 = vst [vmem:[#allocation7 + $0xc0] sm:$0xff] %v815
    %880 = vst [vmem:[#allocation7 + $0xc8] sm:$0xff] %v816
    %881 = vst [vmem:[#allocation7 + $0xd0] sm:$0xff] %v817
    %882 = vst [vmem:[#allocation7 + $0xd8] sm:$0xff] %v818
    %883 = vst [vmem:[#allocation7 + $0xe0] sm:$0xff] %v819
    %884 = vst [vmem:[#allocation7 + $0xe8] sm:$0xff] %v820
    %885 = vst [vmem:[#allocation7 + $0xf0] sm:$0xff] %v821
    %886 = vst [vmem:[#allocation7 + $0xf8] sm:$0xff] %v822
    %887 = vst [vmem:[#allocation7 + $0x100] sm:$0xff] %v823
    %888 = vst [vmem:[#allocation7 + $0x108] sm:$0xff] %v824
    %889 = vst [vmem:[#allocation7 + $0x110] sm:$0xff] %v825
    %890 = vst [vmem:[#allocation7 + $0x118] sm:$0xff] %v826
    %891 = vst [vmem:[#allocation7 + $0x120] sm:$0xff] %v827
    %892 = vst [vmem:[#allocation7 + $0x128] sm:$0xff] %v828
    %893 = vst [vmem:[#allocation7 + $0x130] sm:$0xff] %v829
    %894 = vst [vmem:[#allocation7 + $0x138] sm:$0xff] %v830
    %895 = vst [vmem:[#allocation7 + $0x140] sm:$0xff] %v831
    %896 = vst [vmem:[#allocation7 + $0x148] sm:$0xff] %v832
    %897 = vst [vmem:[#allocation7 + $0x150] sm:$0xff] %v833
    %898 = vst [vmem:[#allocation7 + $0x158] sm:$0xff] %v834
    %899 = vst [vmem:[#allocation7 + $0x160] sm:$0xff] %v835
    %900 = vst [vmem:[#allocation7 + $0x168] sm:$0xff] %v836
    %901 = vst [vmem:[#allocation7 + $0x170] sm:$0xff] %v837
    %902 = vst [vmem:[#allocation7 + $0x178] sm:$0xff] %v838
    %903 = vst [vmem:[#allocation7 + $0x180] sm:$0xff] %v839
    %904 = vst [vmem:[#allocation7 + $0x188] sm:$0xff] %v840
    %905 = vst [vmem:[#allocation7 + $0x190] sm:$0xff] %v841
    %906 = vst [vmem:[#allocation7 + $0x198] sm:$0xff] %v842
    %907 = vst [vmem:[#allocation7 + $0x1a0] sm:$0xff] %v843
    %908 = vst [vmem:[#allocation7 + $0x1a8] sm:$0xff] %v844
    %909 = vst [vmem:[#allocation7 + $0x1b0] sm:$0xff] %v845
    %910 = vst [vmem:[#allocation7 + $0x1b8] sm:$0xff] %v846
    %911 = vst [vmem:[#allocation7 + $0x1c0] sm:$0xff] %v847
    %912 = vst [vmem:[#allocation7 + $0x1c8] sm:$0xff] %v848
    %913 = vst [vmem:[#allocation7 + $0x1d0] sm:$0xff] %v849
    %914 = vst [vmem:[#allocation7 + $0x1d8] sm:$0xff] %v850
    %915 = vst [vmem:[#allocation7 + $0x1e0] sm:$0xff] %v851
    %916 = vst [vmem:[#allocation7 + $0x1e8] sm:$0xff] %v852
    %917 = vst [vmem:[#allocation7 + $0x1f0] sm:$0xff] %v853
    %918 = vst [vmem:[#allocation7 + $0x1f8] sm:$0xff] %v854
    // Predicated region
    $region22: #{tpu_custom_call.1} parent=1 // pred_check
      _
    $region23: #{tpu_custom_call.1} parent=1 // pred_check_branch
      %920 = sbr.rel (0) target = $region25
    $region24: #{tpu_custom_call.1} parent=1 // pred_region
      %s922 = ssub.s32 8192, 8192
      %923 = vsyncadd [#allocation4], %s922
      %s924 = sshll.u32 [#allocation7], 4
      %s925 = int_to_ptr.vmem [resolvable:$true] %s924
      %930 = dma.vmem_to_hbm [thread:$0]  %s925, 8192, %s3, [#allocation4], 128, 128, 8
    $region25: #{tpu_custom_call.1} parent=1 // pred_fallthru
      _
    // Predicated region
    $region26: #{tpu_custom_call.1} parent=1 // pred_check
      _
    $region27: #{tpu_custom_call.1} parent=1 // pred_check_branch
      %932 = sbr.rel (0) target = $region29
    $region28: #{tpu_custom_call.1} parent=1 // pred_region
      %933 = dma.done [#allocation4], 8192
    $region29: #{tpu_custom_call.1} parent=1 // pred_fallthru
      _
    %934 = vsyncpa [#allocation3], 1
    %935 = vsyncpa [#allocation6], 1
    %936 = vsyncpa [#allocation4], 1

</llo_original>
